<compile_context>
chip_gen: v6e
topology: v6e:2x2x1
jax: 0.10.0
libtpu: 0.0.40
codegen_flags: <defaults>
</compile_context>

<pallas_src>
import jax
import jax.numpy as jnp
from jax.experimental import pallas as pl
from jax.experimental.pallas import tpu as pltpu

VMEM_SPEC = pl.BlockSpec(memory_space=pltpu.MemorySpace.VMEM)


# ------------------------------ fused kernel --------------------------------

def _make_fused_decoder_kernel(num_layers):
    def kernel(*refs):
        (hidden_ref, emb_ref, feat_ref, w_map_ref, b_map_ref,
         w_out_ref, b_out_ref) = refs[:7]
        layer_refs = refs[7:7 + 4 * num_layers]
        out_ref, hn_ref, gi_ref, seq_ref = refs[7 + 4 * num_layers:]

        _, N, Hp = hidden_ref.shape           # padded hidden width
        R = emb_ref.shape[0]                  # S * N rows (all timesteps flattened)
        S = R // N

        # ---- input prep (all timesteps at once): feature map + relu(embedding) ----
        m = jnp.dot(feat_ref[...].astype(jnp.bfloat16), w_map_ref[...],
                    preferred_element_type=jnp.float32) + b_map_ref[...]
        m_b = m.astype(jnp.bfloat16)                                  # mapped feature (R, Hp)
        e_b = jnp.maximum(emb_ref[...], 0.0).astype(jnp.bfloat16)     # relu(embed)    (R, Hp)

        for l in range(num_layers):
            w_ih_ref, w_hh_ref, b_gi_ref, b_hn_ref = layer_refs[4 * l: 4 * l + 4]
            last = (l == num_layers - 1)

            # -- gi for ALL timesteps: single fused (R, I) x (I, 3Hp) matmul per operand --
            if l == 0:
                gi = (jnp.dot(m_b, w_ih_ref[0], preferred_element_type=jnp.float32)
                      + jnp.dot(e_b, w_ih_ref[1], preferred_element_type=jnp.float32))
            else:
                gi = jnp.dot(seq_ref[...], w_ih_ref[0],
                             preferred_element_type=jnp.float32)
            # b_ih (all gates) + b_hh (r, z) are pre-folded into b_gi on the host.
            gi_ref[...] = gi + b_gi_ref[...]

            b_hn = b_hn_ref[...]              # (1, Hp), hoisted out of the time loop

            # -- sequential recurrence: ONE h @ W_hh matmul + gate math per step --
            def step(t, h):
                lo = pl.multiple_of(t * N, N)
                gi_t = gi_ref[pl.ds(lo, N), :]                            # (N, 3Hp) f32
                gh = jnp.dot(h.astype(jnp.bfloat16), w_hh_ref[...],       # one MXU issue
                             preferred_element_type=jnp.float32)          # (N, 3Hp) f32
                rz = jax.nn.sigmoid(gi_t[:, :2 * Hp] + gh[:, :2 * Hp])    # fused r/z sigmoid
                r = rz[:, :Hp]
                z = rz[:, Hp:]
                n = jnp.tanh(gi_t[:, 2 * Hp:] + r * (gh[:, 2 * Hp:] + b_hn))
                h_new = (1.0 - z) * n + z * h

                if last:
                    # only timestep 0 of the top layer feeds the output head
                    @pl.when(t == 0)
                    def _():
                        seq_ref[pl.ds(lo, N), :] = h_new.astype(jnp.bfloat16)
                else:
                    seq_ref[pl.ds(lo, N), :] = h_new.astype(jnp.bfloat16)
                return h_new

            hn_ref[l] = jax.lax.fori_loop(0, S, step, hidden_ref[l], unroll=True)

        # ---- output head: Linear + LogSoftmax on timestep 0 of the top layer ----
        logits = jnp.dot(seq_ref[0:N, :], w_out_ref[...],
                         preferred_element_type=jnp.float32) + b_out_ref[...]
        s = logits - jnp.max(logits, axis=-1, keepdims=True)
        out_ref[...] = s - jnp.log(jnp.sum(jnp.exp(s), axis=-1, keepdims=True))

    return kernel


# ------------------------------ wrapper --------------------------------------

def decoder_forward(kparams, num_layers, input_ids, hidden, feature):
    """input_ids: (S, N) int32, hidden: (L, N, E) f32, feature: (S, N, F) f32."""
    S, N = input_ids.shape
    L, _, H = hidden.shape
    F = feature.shape[-1]
    V = kparams["embedding"].shape[0]
    Hp = kparams["w_map_t"].shape[1]
    Fp = kparams["w_map_t"].shape[0]
    Vp = kparams["w_out_t"].shape[1]
    R = S * N

    # Host-side glue: embedding row-gather + lane padding of the runtime inputs.
    emb2d = jnp.take(kparams["embedding"], input_ids.reshape(R), axis=0)     # (R, Hp)
    feat2d = jnp.pad(feature.reshape(R, F), ((0, 0), (0, Fp - F)))           # (R, Fp)
    hidden_p = jnp.pad(hidden, ((0, 0), (0, 0), (0, Hp - H)))                # (L, N, Hp)

    inputs = [hidden_p, emb2d, feat2d, kparams["w_map_t"], kparams["b_map"],
              kparams["w_out_t"], kparams["b_out"]]
    for l in range(L):
        inputs += [kparams[f"w_ih_{l}"], kparams[f"w_hh_{l}"],
                   kparams[f"b_gi_{l}"], kparams[f"b_hn_{l}"]]

    # Scoped-VMEM budget from the actual resident footprint (inputs + outputs + scratch).
    resident = sum(int(x.size) * x.dtype.itemsize for x in inputs)
    resident += (N * Vp + L * N * Hp + R * 3 * Hp) * 4 + R * Hp * 2
    vmem_limit = int(min(64 * 1024 * 1024, max(2 * resident + (2 << 20), 8 << 20)))

    out, h_n = pl.pallas_call(
        _make_fused_decoder_kernel(L),
        out_shape=(jax.ShapeDtypeStruct((N, Vp), jnp.float32),
                   jax.ShapeDtypeStruct((L, N, Hp), jnp.float32)),
        in_specs=[VMEM_SPEC] * len(inputs),
        out_specs=(VMEM_SPEC, VMEM_SPEC),
        scratch_shapes=[pltpu.VMEM((R, 3 * Hp), jnp.float32),    # gi: all timesteps, gate-packed
                        pltpu.VMEM((R, Hp), jnp.bfloat16)],      # per-layer output sequence
        input_output_aliases={0: 1},   # reuse the (padded) incoming hidden buffer for h_n
        compiler_params=pltpu.CompilerParams(vmem_limit_bytes=vmem_limit),
    )(*inputs)
    return out[:, :V], h_n[..., :H]


# --------------------------- parameters --------------------------------------

def init_decoder_params(key, feature_size, output_size, embed_size, num_layers):
    """PyTorch-layout f32 parameters (used directly by the pure-JAX reference)."""
    ks = jax.random.split(key, 8 + 4 * num_layers)
    p = {
        "embedding": 0.1 * jax.random.normal(ks[0], (output_size, embed_size), jnp.float32),
        "w_map": 0.1 * jax.random.normal(ks[1], (embed_size, feature_size), jnp.float32),
        "b_map": 0.1 * jax.random.normal(ks[2], (1, embed_size), jnp.float32),
        "w_out": 0.1 * jax.random.normal(ks[3], (output_size, embed_size), jnp.float32),
        "b_out": 0.1 * jax.random.normal(ks[4], (1, output_size), jnp.float32),
    }
    for l in range(num_layers):
        in_sz = 2 * embed_size if l == 0 else embed_size
        k0, k1, k2, k3 = ks[8 + 4 * l: 12 + 4 * l]
        p[f"w_ih_{l}"] = 0.1 * jax.random.normal(k0, (3 * embed_size, in_sz), jnp.float32)
        p[f"w_hh_{l}"] = 0.1 * jax.random.normal(k1, (3 * embed_size, embed_size), jnp.float32)
        p[f"b_ih_{l}"] = 0.1 * jax.random.normal(k2, (1, 3 * embed_size), jnp.float32)
        p[f"b_hh_{l}"] = 0.1 * jax.random.normal(k3, (1, 3 * embed_size), jnp.float32)
    return p


def _round_up(x, m):
    return (x + m - 1) // m * m


def prepare_kernel_params(params, num_layers):
    """Pad to lane-aligned tiles, pre-transpose, gate-pack and bf16-cast the weights (host, once)."""
    E = params["embedding"].shape[1]
    V = params["w_out"].shape[0]
    F = params["w_map"].shape[1]
    H = E
    Hp = _round_up(H, 128)
    Vp = _round_up(V, 128)
    Fp = _round_up(F, 128)

    def pad2(a, rows, cols, fill=0.0):
        return jnp.pad(a, ((0, rows - a.shape[0]), (0, cols - a.shape[1])),
                       constant_values=fill)

    def pack_gates(w_t, rows_out):
        # (rows_in, 3H) -> (rows_out, 3*Hp): each gate block zero-padded to Hp lanes
        return jnp.concatenate(
            [pad2(w_t[:, g * H:(g + 1) * H], rows_out, Hp) for g in range(3)], axis=1)

    kp = {
        # embedding table padded on the embed axis so the host-side gather yields (R, Hp)
        "embedding": pad2(params["embedding"], V, Hp),
        "w_map_t": pad2(params["w_map"].T, Fp, Hp).astype(jnp.bfloat16),     # (Fp, Hp)
        "b_map": pad2(params["b_map"], 1, Hp),                               # (1, Hp)
        "w_out_t": pad2(params["w_out"].T, Hp, Vp).astype(jnp.bfloat16),     # (Hp, Vp)
        # padded vocab columns get a very negative bias so log-softmax ignores them
        "b_out": jnp.pad(params["b_out"], ((0, 0), (0, Vp - V)),
                         constant_values=-1e30),                             # (1, Vp)
    }
    for l in range(num_layers):
        w_ih_t = params[f"w_ih_{l}"].T     # (I, 3H), PyTorch gate order r|z|n
        w_hh_t = params[f"w_hh_{l}"].T     # (H, 3H)
        b_ih = params[f"b_ih_{l}"][0]      # (3H,)
        b_hh = params[f"b_hh_{l}"][0]      # (3H,)

        if l == 0:
            # layer-0 input is concat(mapped_feature, relu(embedding)); split halves on host
            kp[f"w_ih_{l}"] = jnp.stack(
                [pack_gates(w_ih_t[:E], Hp),
                 pack_gates(w_ih_t[E:], Hp)]).astype(jnp.bfloat16)               # (2, Hp, 3Hp)
        else:
            kp[f"w_ih_{l}"] = pack_gates(w_ih_t, Hp)[None].astype(jnp.bfloat16)  # (1, Hp, 3Hp)
        kp[f"w_hh_{l}"] = pack_gates(w_hh_t, Hp).astype(jnp.bfloat16)            # (Hp, 3Hp)

        # fold b_ih (all gates) + b_hh (r, z only) into the precomputed gi bias
        gi_bias = []
        for g in range(3):
            bg = b_ih[g * H:(g + 1) * H]
            if g < 2:
                bg = bg + b_hh[g * H:(g + 1) * H]
            gi_bias.append(jnp.pad(bg, (0, Hp - H)))
        kp[f"b_gi_{l}"] = jnp.concatenate(gi_bias)[None, :]                      # (1, 3Hp)
        kp[f"b_hn_{l}"] = jnp.pad(b_hh[2 * H:], (0, Hp - H))[None, :]            # (1, Hp)
    return kp


# --------------------------- pure-JAX reference -------------------------------

def decoder_ref(params, num_layers, input_ids, hidden, feature):
    S, N = input_ids.shape
    E = params["embedding"].shape[1]
    emb = jnp.maximum(jnp.take(params["embedding"], input_ids, axis=0), 0.0)
    feat = feature @ params["w_map"].T + params["b_map"][0]
    layer_in = jnp.concatenate([feat, emb], axis=2)
    new_hidden = []
    for l in range(num_layers):
        h = hidden[l]
        outs = []
        for t in range(S):
            gi = layer_in[t] @ params[f"w_ih_{l}"].T + params[f"b_ih_{l}"][0]
            gh = h @ params[f"w_hh_{l}"].T + params[f"b_hh_{l}"][0]
            r = jax.nn.sigmoid(gi[:, :E] + gh[:, :E])
            z = jax.nn.sigmoid(gi[:, E:2 * E] + gh[:, E:2 * E])
            n = jnp.tanh(gi[:, 2 * E:] + r * gh[:, 2 * E:])
            h = (1.0 - z) * n + z * h
            outs.append(h)
        layer_in = jnp.stack(outs, axis=0)
        new_hidden.append(h)
    logits = layer_in[0] @ params["w_out"].T + params["b_out"][0]
    return jax.nn.log_softmax(logits, axis=1), jnp.stack(new_hidden, axis=0)


if __name__ == "__main__":
    feature_size, output_size, embed_size, num_layers = 32, 16, 32, 2
    seq, batch = 4, 8

    key = jax.random.PRNGKey(0)
    kp_, ki, kh, kf = jax.random.split(key, 4)

    params = init_decoder_params(kp_, feature_size, output_size, embed_size, num_layers)
    kparams = prepare_kernel_params(params, num_layers)

    input_ids = jax.random.randint(ki, (seq, batch), 0, output_size, dtype=jnp.int32)
    hidden = 0.1 * jax.random.normal(kh, (num_layers, batch, embed_size), jnp.float32)
    feature = jax.random.normal(kf, (seq, batch, feature_size), jnp.float32)

    fwd = jax.jit(decoder_forward, static_argnums=(1,))
    out, h_n = fwd(kparams, num_layers, input_ids, hidden, feature)
    out = jax.block_until_ready(out)
    h_n = jax.block_until_ready(h_n)

    ref_out, ref_h = decoder_ref(params, num_layers, input_ids, hidden, feature)
    assert out.shape == (batch, output_size)
    assert h_n.shape == (num_layers, batch, embed_size)
    assert jnp.allclose(out, ref_out, atol=5e-2, rtol=5e-2)
    assert jnp.allclose(h_n, ref_h, atol=5e-2, rtol=5e-2)

    print("KERNEL_OK")
</pallas_src>

<mosaic_0001>
module attributes {stable_mosaic.version = 11 : i64} {
  func.func @kernel(%arg0: memref<2x8x128xf32, #tpu.memory_space<vmem>>, %arg1: memref<32x128xf32, #tpu.memory_space<vmem>>, %arg2: memref<32x128xf32, #tpu.memory_space<vmem>>, %arg3: memref<128x128xbf16, #tpu.memory_space<vmem>>, %arg4: memref<1x128xf32, #tpu.memory_space<vmem>>, %arg5: memref<128x128xbf16, #tpu.memory_space<vmem>>, %arg6: memref<1x128xf32, #tpu.memory_space<vmem>>, %arg7: memref<2x128x384xbf16, #tpu.memory_space<vmem>>, %arg8: memref<128x384xbf16, #tpu.memory_space<vmem>>, %arg9: memref<1x384xf32, #tpu.memory_space<vmem>>, %arg10: memref<1x128xf32, #tpu.memory_space<vmem>>, %arg11: memref<1x128x384xbf16, #tpu.memory_space<vmem>>, %arg12: memref<128x384xbf16, #tpu.memory_space<vmem>>, %arg13: memref<1x384xf32, #tpu.memory_space<vmem>>, %arg14: memref<1x128xf32, #tpu.memory_space<vmem>>, %arg15: memref<8x128xf32, #tpu.memory_space<vmem>>, %arg16: memref<2x8x128xf32, #tpu.memory_space<vmem>>, %arg17: memref<32x384xf32, #tpu.memory_space<vmem>>, %arg18: memref<32x128xbf16, #tpu.memory_space<vmem>>) attributes {dimension_semantics = [], scalar_prefetch = 0 : i64, scratch_operands = 2 : i64, tpu.core_type = #tpu.core_type<tc>} {
    %c0 = arith.constant 0 : index
    %c0_0 = arith.constant 0 : index
    %0 = vector.load %arg2[%c0, %c0_0] : memref<32x128xf32, #tpu.memory_space<vmem>>, vector<32x128xf32>
    %1 = arith.truncf %0 : vector<32x128xf32> to vector<32x128xbf16>
    %c0_1 = arith.constant 0 : index
    %c0_2 = arith.constant 0 : index
    %2 = vector.load %arg3[%c0_1, %c0_2] : memref<128x128xbf16, #tpu.memory_space<vmem>>, vector<128x128xbf16>
    %cst = arith.constant dense<0.000000e+00> : vector<32x128xf32>
    %3 = tpu.matmul %1, %2, %cst {dimension_numbers = #tpu.dot_dimension_numbers<[1], [0], [0], [1], [0, 0, 1, 1], [], []>} : vector<32x128xbf16>, vector<128x128xbf16>, vector<32x128xf32> -> vector<32x128xf32>
    %c0_3 = arith.constant 0 : index
    %c0_4 = arith.constant 0 : index
    %4 = vector.load %arg4[%c0_3, %c0_4] : memref<1x128xf32, #tpu.memory_space<vmem>>, vector<1x128xf32>
    %5 = vector.broadcast %4 : vector<1x128xf32> to vector<32x128xf32>
    %6 = arith.addf %3, %5 : vector<32x128xf32>
    %7 = arith.truncf %6 : vector<32x128xf32> to vector<32x128xbf16>
    %c0_5 = arith.constant 0 : index
    %c0_6 = arith.constant 0 : index
    %8 = vector.load %arg1[%c0_5, %c0_6] : memref<32x128xf32, #tpu.memory_space<vmem>>, vector<32x128xf32>
    %cst_7 = arith.constant 0.000000e+00 : f32
    %9 = vector.broadcast %cst_7 : f32 to vector<32x128xf32>
    %10 = arith.maximumf %8, %9 : vector<32x128xf32>
    %11 = arith.truncf %10 : vector<32x128xf32> to vector<32x128xbf16>
    %c0_8 = arith.constant 0 : index
    %c0_9 = arith.constant 0 : index
    %c0_10 = arith.constant 0 : index
    %12 = vector.load %arg7[%c0_8, %c0_9, %c0_10] : memref<2x128x384xbf16, #tpu.memory_space<vmem>>, vector<1x128x384xbf16>
    %13 = vector.shape_cast %12 : vector<1x128x384xbf16> to vector<128x384xbf16>
    %cst_11 = arith.constant dense<0.000000e+00> : vector<32x384xf32>
    %14 = tpu.matmul %7, %13, %cst_11 {dimension_numbers = #tpu.dot_dimension_numbers<[1], [0], [0], [1], [0, 0, 1, 1], [], []>} : vector<32x128xbf16>, vector<128x384xbf16>, vector<32x384xf32> -> vector<32x384xf32>
    %c1 = arith.constant 1 : index
    %c0_12 = arith.constant 0 : index
    %c0_13 = arith.constant 0 : index
    %15 = vector.load %arg7[%c1, %c0_12, %c0_13] : memref<2x128x384xbf16, #tpu.memory_space<vmem>>, vector<1x128x384xbf16>
    %16 = vector.shape_cast %15 : vector<1x128x384xbf16> to vector<128x384xbf16>
    %cst_14 = arith.constant dense<0.000000e+00> : vector<32x384xf32>
    %17 = tpu.matmul %11, %16, %cst_14 {dimension_numbers = #tpu.dot_dimension_numbers<[1], [0], [0], [1], [0, 0, 1, 1], [], []>} : vector<32x128xbf16>, vector<128x384xbf16>, vector<32x384xf32> -> vector<32x384xf32>
    %18 = arith.addf %14, %17 : vector<32x384xf32>
    %c0_15 = arith.constant 0 : index
    %c0_16 = arith.constant 0 : index
    %19 = vector.load %arg9[%c0_15, %c0_16] : memref<1x384xf32, #tpu.memory_space<vmem>>, vector<1x384xf32>
    %20 = vector.broadcast %19 : vector<1x384xf32> to vector<32x384xf32>
    %21 = arith.addf %18, %20 : vector<32x384xf32>
    %c0_17 = arith.constant 0 : index
    %c0_18 = arith.constant 0 : index
    %22 = vector.load %arg17[%c0_17, %c0_18] : memref<32x384xf32, #tpu.memory_space<vmem>>, vector<32x384xf32>
    tpu.vector_store %arg17[%c0_17, %c0_18], %21 {strides = array<i32>} : memref<32x384xf32, #tpu.memory_space<vmem>>, vector<32x384xf32>,
    %c0_19 = arith.constant 0 : index
    %c0_20 = arith.constant 0 : index
    %23 = vector.load %arg10[%c0_19, %c0_20] : memref<1x128xf32, #tpu.memory_space<vmem>>, vector<1x128xf32>
    %c0_21 = arith.constant 0 : index
    %c0_22 = arith.constant 0 : index
    %c0_23 = arith.constant 0 : index
    %24 = vector.load %arg0[%c0_21, %c0_22, %c0_23] : memref<2x8x128xf32, #tpu.memory_space<vmem>>, vector<1x8x128xf32>
    %25 = vector.shape_cast %24 : vector<1x8x128xf32> to vector<8x128xf32>
    %c0_i32 = arith.constant 0 : i32
    %c8_i32 = arith.constant 8 : i32
    %26 = arith.muli %c0_i32, %c8_i32 : i32
    %27 = tpu.assume_multiple %26, 8 : i32
    %28 = arith.index_cast %27 : i32 to index
    %c0_24 = arith.constant 0 : index
    %29 = vector.load %arg17[%28, %c0_24] : memref<32x384xf32, #tpu.memory_space<vmem>>, vector<8x384xf32>
    %30 = arith.truncf %25 : vector<8x128xf32> to vector<8x128xbf16>
    %c0_25 = arith.constant 0 : index
    %c0_26 = arith.constant 0 : index
    %31 = vector.load %arg8[%c0_25, %c0_26] : memref<128x384xbf16, #tpu.memory_space<vmem>>, vector<128x384xbf16>
    %cst_27 = arith.constant dense<0.000000e+00> : vector<8x384xf32>
    %32 = tpu.matmul %30, %31, %cst_27 {dimension_numbers = #tpu.dot_dimension_numbers<[1], [0], [0], [1], [0, 0, 1, 1], [], []>} : vector<8x128xbf16>, vector<128x384xbf16>, vector<8x384xf32> -> vector<8x384xf32>
    %33 = vector.extract_strided_slice %29 {offsets = [0, 0], sizes = [8, 256], strides = [1, 1]} : vector<8x384xf32> to vector<8x256xf32>
    %34 = vector.extract_strided_slice %32 {offsets = [0, 0], sizes = [8, 256], strides = [1, 1]} : vector<8x384xf32> to vector<8x256xf32>
    %35 = arith.addf %33, %34 : vector<8x256xf32>
    %36 = arith.negf %35 : vector<8x256xf32>
    %37 = math.exp %36 : vector<8x256xf32>
    %cst_28 = arith.constant 1.000000e+00 : f32
    %38 = vector.broadcast %cst_28 : f32 to vector<8x256xf32>
    %39 = arith.addf %38, %37 : vector<8x256xf32>
    %40 = arith.divf %38, %39 : vector<8x256xf32>
    %41 = vector.extract_strided_slice %40 {offsets = [0, 0], sizes = [8, 128], strides = [1, 1]} : vector<8x256xf32> to vector<8x128xf32>
    %42 = vector.extract_strided_slice %40 {offsets = [0, 128], sizes = [8, 128], strides = [1, 1]} : vector<8x256xf32> to vector<8x128xf32>
    %43 = vector.extract_strided_slice %29 {offsets = [0, 256], sizes = [8, 128], strides = [1, 1]} : vector<8x384xf32> to vector<8x128xf32>
    %44 = vector.extract_strided_slice %32 {offsets = [0, 256], sizes = [8, 128], strides = [1, 1]} : vector<8x384xf32> to vector<8x128xf32>
    %45 = vector.broadcast %23 : vector<1x128xf32> to vector<8x128xf32>
    %46 = arith.addf %44, %45 : vector<8x128xf32>
    %47 = arith.mulf %41, %46 : vector<8x128xf32>
    %48 = arith.addf %43, %47 : vector<8x128xf32>
    %49 = math.tanh %48 : vector<8x128xf32>
    %cst_29 = arith.constant 1.000000e+00 : f32
    %50 = vector.broadcast %cst_29 : f32 to vector<8x128xf32>
    %51 = arith.subf %50, %42 : vector<8x128xf32>
    %52 = arith.mulf %51, %49 : vector<8x128xf32>
    %53 = arith.mulf %42, %25 : vector<8x128xf32>
    %54 = arith.addf %52, %53 : vector<8x128xf32>
    %55 = arith.truncf %54 : vector<8x128xf32> to vector<8x128xbf16>
    %56 = arith.index_cast %27 : i32 to index
    %c0_30 = arith.constant 0 : index
    %57 = vector.load %arg18[%56, %c0_30] : memref<32x128xbf16, #tpu.memory_space<vmem>>, vector<8x128xbf16>
    tpu.vector_store %arg18[%56, %c0_30], %55 {strides = array<i32>} : memref<32x128xbf16, #tpu.memory_space<vmem>>, vector<8x128xbf16>,
    %c1_i32 = arith.constant 1 : i32
    %c8_i32_31 = arith.constant 8 : i32
    %58 = arith.muli %c1_i32, %c8_i32_31 : i32
    %59 = tpu.assume_multiple %58, 8 : i32
    %60 = arith.index_cast %59 : i32 to index
    %c0_32 = arith.constant 0 : index
    %61 = vector.load %arg17[%60, %c0_32] : memref<32x384xf32, #tpu.memory_space<vmem>>, vector<8x384xf32>
    %62 = arith.truncf %54 : vector<8x128xf32> to vector<8x128xbf16>
    %c0_33 = arith.constant 0 : index
    %c0_34 = arith.constant 0 : index
    %63 = vector.load %arg8[%c0_33, %c0_34] : memref<128x384xbf16, #tpu.memory_space<vmem>>, vector<128x384xbf16>
    %cst_35 = arith.constant dense<0.000000e+00> : vector<8x384xf32>
    %64 = tpu.matmul %62, %63, %cst_35 {dimension_numbers = #tpu.dot_dimension_numbers<[1], [0], [0], [1], [0, 0, 1, 1], [], []>} : vector<8x128xbf16>, vector<128x384xbf16>, vector<8x384xf32> -> vector<8x384xf32>
    %65 = vector.extract_strided_slice %61 {offsets = [0, 0], sizes = [8, 256], strides = [1, 1]} : vector<8x384xf32> to vector<8x256xf32>
    %66 = vector.extract_strided_slice %64 {offsets = [0, 0], sizes = [8, 256], strides = [1, 1]} : vector<8x384xf32> to vector<8x256xf32>
    %67 = arith.addf %65, %66 : vector<8x256xf32>
    %68 = arith.negf %67 : vector<8x256xf32>
    %69 = math.exp %68 : vector<8x256xf32>
    %cst_36 = arith.constant 1.000000e+00 : f32
    %70 = vector.broadcast %cst_36 : f32 to vector<8x256xf32>
    %71 = arith.addf %70, %69 : vector<8x256xf32>
    %72 = arith.divf %70, %71 : vector<8x256xf32>
    %73 = vector.extract_strided_slice %72 {offsets = [0, 0], sizes = [8, 128], strides = [1, 1]} : vector<8x256xf32> to vector<8x128xf32>
    %74 = vector.extract_strided_slice %72 {offsets = [0, 128], sizes = [8, 128], strides = [1, 1]} : vector<8x256xf32> to vector<8x128xf32>
    %75 = vector.extract_strided_slice %61 {offsets = [0, 256], sizes = [8, 128], strides = [1, 1]} : vector<8x384xf32> to vector<8x128xf32>
    %76 = vector.extract_strided_slice %64 {offsets = [0, 256], sizes = [8, 128], strides = [1, 1]} : vector<8x384xf32> to vector<8x128xf32>
    %77 = vector.broadcast %23 : vector<1x128xf32> to vector<8x128xf32>
    %78 = arith.addf %76, %77 : vector<8x128xf32>
    %79 = arith.mulf %73, %78 : vector<8x128xf32>
    %80 = arith.addf %75, %79 : vector<8x128xf32>
    %81 = math.tanh %80 : vector<8x128xf32>
    %cst_37 = arith.constant 1.000000e+00 : f32
    %82 = vector.broadcast %cst_37 : f32 to vector<8x128xf32>
    %83 = arith.subf %82, %74 : vector<8x128xf32>
    %84 = arith.mulf %83, %81 : vector<8x128xf32>
    %85 = arith.mulf %74, %54 : vector<8x128xf32>
    %86 = arith.addf %84, %85 : vector<8x128xf32>
    %87 = arith.truncf %86 : vector<8x128xf32> to vector<8x128xbf16>
    %88 = arith.index_cast %59 : i32 to index
    %c0_38 = arith.constant 0 : index
    %89 = vector.load %arg18[%88, %c0_38] : memref<32x128xbf16, #tpu.memory_space<vmem>>, vector<8x128xbf16>
    tpu.vector_store %arg18[%88, %c0_38], %87 {strides = array<i32>} : memref<32x128xbf16, #tpu.memory_space<vmem>>, vector<8x128xbf16>,
    %c2_i32 = arith.constant 2 : i32
    %c8_i32_39 = arith.constant 8 : i32
    %90 = arith.muli %c2_i32, %c8_i32_39 : i32
    %91 = tpu.assume_multiple %90, 8 : i32
    %92 = arith.index_cast %91 : i32 to index
    %c0_40 = arith.constant 0 : index
    %93 = vector.load %arg17[%92, %c0_40] : memref<32x384xf32, #tpu.memory_space<vmem>>, vector<8x384xf32>
    %94 = arith.truncf %86 : vector<8x128xf32> to vector<8x128xbf16>
    %c0_41 = arith.constant 0 : index
    %c0_42 = arith.constant 0 : index
    %95 = vector.load %arg8[%c0_41, %c0_42] : memref<128x384xbf16, #tpu.memory_space<vmem>>, vector<128x384xbf16>
    %cst_43 = arith.constant dense<0.000000e+00> : vector<8x384xf32>
    %96 = tpu.matmul %94, %95, %cst_43 {dimension_numbers = #tpu.dot_dimension_numbers<[1], [0], [0], [1], [0, 0, 1, 1], [], []>} : vector<8x128xbf16>, vector<128x384xbf16>, vector<8x384xf32> -> vector<8x384xf32>
    %97 = vector.extract_strided_slice %93 {offsets = [0, 0], sizes = [8, 256], strides = [1, 1]} : vector<8x384xf32> to vector<8x256xf32>
    %98 = vector.extract_strided_slice %96 {offsets = [0, 0], sizes = [8, 256], strides = [1, 1]} : vector<8x384xf32> to vector<8x256xf32>
    %99 = arith.addf %97, %98 : vector<8x256xf32>
    %100 = arith.negf %99 : vector<8x256xf32>
    %101 = math.exp %100 : vector<8x256xf32>
    %cst_44 = arith.constant 1.000000e+00 : f32
    %102 = vector.broadcast %cst_44 : f32 to vector<8x256xf32>
    %103 = arith.addf %102, %101 : vector<8x256xf32>
    %104 = arith.divf %102, %103 : vector<8x256xf32>
    %105 = vector.extract_strided_slice %104 {offsets = [0, 0], sizes = [8, 128], strides = [1, 1]} : vector<8x256xf32> to vector<8x128xf32>
    %106 = vector.extract_strided_slice %104 {offsets = [0, 128], sizes = [8, 128], strides = [1, 1]} : vector<8x256xf32> to vector<8x128xf32>
    %107 = vector.extract_strided_slice %93 {offsets = [0, 256], sizes = [8, 128], strides = [1, 1]} : vector<8x384xf32> to vector<8x128xf32>
    %108 = vector.extract_strided_slice %96 {offsets = [0, 256], sizes = [8, 128], strides = [1, 1]} : vector<8x384xf32> to vector<8x128xf32>
    %109 = vector.broadcast %23 : vector<1x128xf32> to vector<8x128xf32>
    %110 = arith.addf %108, %109 : vector<8x128xf32>
    %111 = arith.mulf %105, %110 : vector<8x128xf32>
    %112 = arith.addf %107, %111 : vector<8x128xf32>
    %113 = math.tanh %112 : vector<8x128xf32>
    %cst_45 = arith.constant 1.000000e+00 : f32
    %114 = vector.broadcast %cst_45 : f32 to vector<8x128xf32>
    %115 = arith.subf %114, %106 : vector<8x128xf32>
    %116 = arith.mulf %115, %113 : vector<8x128xf32>
    %117 = arith.mulf %106, %86 : vector<8x128xf32>
    %118 = arith.addf %116, %117 : vector<8x128xf32>
    %119 = arith.truncf %118 : vector<8x128xf32> to vector<8x128xbf16>
    %120 = arith.index_cast %91 : i32 to index
    %c0_46 = arith.constant 0 : index
    %121 = vector.load %arg18[%120, %c0_46] : memref<32x128xbf16, #tpu.memory_space<vmem>>, vector<8x128xbf16>
    tpu.vector_store %arg18[%120, %c0_46], %119 {strides = array<i32>} : memref<32x128xbf16, #tpu.memory_space<vmem>>, vector<8x128xbf16>,
    %c3_i32 = arith.constant 3 : i32
    %c8_i32_47 = arith.constant 8 : i32
    %122 = arith.muli %c3_i32, %c8_i32_47 : i32
    %123 = tpu.assume_multiple %122, 8 : i32
    %124 = arith.index_cast %123 : i32 to index
    %c0_48 = arith.constant 0 : index
    %125 = vector.load %arg17[%124, %c0_48] : memref<32x384xf32, #tpu.memory_space<vmem>>, vector<8x384xf32>
    %126 = arith.truncf %118 : vector<8x128xf32> to vector<8x128xbf16>
    %c0_49 = arith.constant 0 : index
    %c0_50 = arith.constant 0 : index
    %127 = vector.load %arg8[%c0_49, %c0_50] : memref<128x384xbf16, #tpu.memory_space<vmem>>, vector<128x384xbf16>
    %cst_51 = arith.constant dense<0.000000e+00> : vector<8x384xf32>
    %128 = tpu.matmul %126, %127, %cst_51 {dimension_numbers = #tpu.dot_dimension_numbers<[1], [0], [0], [1], [0, 0, 1, 1], [], []>} : vector<8x128xbf16>, vector<128x384xbf16>, vector<8x384xf32> -> vector<8x384xf32>
    %129 = vector.extract_strided_slice %125 {offsets = [0, 0], sizes = [8, 256], strides = [1, 1]} : vector<8x384xf32> to vector<8x256xf32>
    %130 = vector.extract_strided_slice %128 {offsets = [0, 0], sizes = [8, 256], strides = [1, 1]} : vector<8x384xf32> to vector<8x256xf32>
    %131 = arith.addf %129, %130 : vector<8x256xf32>
    %132 = arith.negf %131 : vector<8x256xf32>
    %133 = math.exp %132 : vector<8x256xf32>
    %cst_52 = arith.constant 1.000000e+00 : f32
    %134 = vector.broadcast %cst_52 : f32 to vector<8x256xf32>
    %135 = arith.addf %134, %133 : vector<8x256xf32>
    %136 = arith.divf %134, %135 : vector<8x256xf32>
    %137 = vector.extract_strided_slice %136 {offsets = [0, 0], sizes = [8, 128], strides = [1, 1]} : vector<8x256xf32> to vector<8x128xf32>
    %138 = vector.extract_strided_slice %136 {offsets = [0, 128], sizes = [8, 128], strides = [1, 1]} : vector<8x256xf32> to vector<8x128xf32>
    %139 = vector.extract_strided_slice %125 {offsets = [0, 256], sizes = [8, 128], strides = [1, 1]} : vector<8x384xf32> to vector<8x128xf32>
    %140 = vector.extract_strided_slice %128 {offsets = [0, 256], sizes = [8, 128], strides = [1, 1]} : vector<8x384xf32> to vector<8x128xf32>
    %141 = vector.broadcast %23 : vector<1x128xf32> to vector<8x128xf32>
    %142 = arith.addf %140, %141 : vector<8x128xf32>
    %143 = arith.mulf %137, %142 : vector<8x128xf32>
    %144 = arith.addf %139, %143 : vector<8x128xf32>
    %145 = math.tanh %144 : vector<8x128xf32>
    %cst_53 = arith.constant 1.000000e+00 : f32
    %146 = vector.broadcast %cst_53 : f32 to vector<8x128xf32>
    %147 = arith.subf %146, %138 : vector<8x128xf32>
    %148 = arith.mulf %147, %145 : vector<8x128xf32>
    %149 = arith.mulf %138, %118 : vector<8x128xf32>
    %150 = arith.addf %148, %149 : vector<8x128xf32>
    %151 = arith.truncf %150 : vector<8x128xf32> to vector<8x128xbf16>
    %152 = arith.index_cast %123 : i32 to index
    %c0_54 = arith.constant 0 : index
    %153 = vector.load %arg18[%152, %c0_54] : memref<32x128xbf16, #tpu.memory_space<vmem>>, vector<8x128xbf16>
    tpu.vector_store %arg18[%152, %c0_54], %151 {strides = array<i32>} : memref<32x128xbf16, #tpu.memory_space<vmem>>, vector<8x128xbf16>,
    %c4_i32 = arith.constant 4 : i32
    %c0_55 = arith.constant 0 : index
    %c0_56 = arith.constant 0 : index
    %c0_57 = arith.constant 0 : index
    %154 = vector.load %arg16[%c0_55, %c0_56, %c0_57] : memref<2x8x128xf32, #tpu.memory_space<vmem>>, vector<1x8x128xf32>
    %155 = vector.shape_cast %154 : vector<1x8x128xf32> to vector<8x128xf32>
    %156 = vector.shape_cast %150 : vector<8x128xf32> to vector<1x8x128xf32>
    tpu.vector_store %arg16[%c0_55, %c0_56, %c0_57], %156 {strides = array<i32>} : memref<2x8x128xf32, #tpu.memory_space<vmem>>, vector<1x8x128xf32>,
    %c0_58 = arith.constant 0 : index
    %c0_59 = arith.constant 0 : index
    %157 = vector.load %arg18[%c0_58, %c0_59] : memref<32x128xbf16, #tpu.memory_space<vmem>>, vector<32x128xbf16>
    %c0_60 = arith.constant 0 : index
    %c0_61 = arith.constant 0 : index
    %c0_62 = arith.constant 0 : index
    %158 = vector.load %arg11[%c0_60, %c0_61, %c0_62] : memref<1x128x384xbf16, #tpu.memory_space<vmem>>, vector<1x128x384xbf16>
    %159 = vector.shape_cast %158 : vector<1x128x384xbf16> to vector<128x384xbf16>
    %cst_63 = arith.constant dense<0.000000e+00> : vector<32x384xf32>
    %160 = tpu.matmul %157, %159, %cst_63 {dimension_numbers = #tpu.dot_dimension_numbers<[1], [0], [0], [1], [0, 0, 1, 1], [], []>} : vector<32x128xbf16>, vector<128x384xbf16>, vector<32x384xf32> -> vector<32x384xf32>
    %c0_64 = arith.constant 0 : index
    %c0_65 = arith.constant 0 : index
    %161 = vector.load %arg13[%c0_64, %c0_65] : memref<1x384xf32, #tpu.memory_space<vmem>>, vector<1x384xf32>
    %162 = vector.broadcast %161 : vector<1x384xf32> to vector<32x384xf32>
    %163 = arith.addf %160, %162 : vector<32x384xf32>
    %c0_66 = arith.constant 0 : index
    %c0_67 = arith.constant 0 : index
    %164 = vector.load %arg17[%c0_66, %c0_67] : memref<32x384xf32, #tpu.memory_space<vmem>>, vector<32x384xf32>
    tpu.vector_store %arg17[%c0_66, %c0_67], %163 {strides = array<i32>} : memref<32x384xf32, #tpu.memory_space<vmem>>, vector<32x384xf32>,
    %c0_68 = arith.constant 0 : index
    %c0_69 = arith.constant 0 : index
    %165 = vector.load %arg14[%c0_68, %c0_69] : memref<1x128xf32, #tpu.memory_space<vmem>>, vector<1x128xf32>
    %c1_70 = arith.constant 1 : index
    %c0_71 = arith.constant 0 : index
    %c0_72 = arith.constant 0 : index
    %166 = vector.load %arg0[%c1_70, %c0_71, %c0_72] : memref<2x8x128xf32, #tpu.memory_space<vmem>>, vector<1x8x128xf32>
    %167 = vector.shape_cast %166 : vector<1x8x128xf32> to vector<8x128xf32>
    %c0_i32_73 = arith.constant 0 : i32
    %c8_i32_74 = arith.constant 8 : i32
    %168 = arith.muli %c0_i32_73, %c8_i32_74 : i32
    %169 = tpu.assume_multiple %168, 8 : i32
    %170 = arith.index_cast %169 : i32 to index
    %c0_75 = arith.constant 0 : index
    %171 = vector.load %arg17[%170, %c0_75] : memref<32x384xf32, #tpu.memory_space<vmem>>, vector<8x384xf32>
    %172 = arith.truncf %167 : vector<8x128xf32> to vector<8x128xbf16>
    %c0_76 = arith.constant 0 : index
    %c0_77 = arith.constant 0 : index
    %173 = vector.load %arg12[%c0_76, %c0_77] : memref<128x384xbf16, #tpu.memory_space<vmem>>, vector<128x384xbf16>
    %cst_78 = arith.constant dense<0.000000e+00> : vector<8x384xf32>
    %174 = tpu.matmul %172, %173, %cst_78 {dimension_numbers = #tpu.dot_dimension_numbers<[1], [0], [0], [1], [0, 0, 1, 1], [], []>} : vector<8x128xbf16>, vector<128x384xbf16>, vector<8x384xf32> -> vector<8x384xf32>
    %175 = vector.extract_strided_slice %171 {offsets = [0, 0], sizes = [8, 256], strides = [1, 1]} : vector<8x384xf32> to vector<8x256xf32>
    %176 = vector.extract_strided_slice %174 {offsets = [0, 0], sizes = [8, 256], strides = [1, 1]} : vector<8x384xf32> to vector<8x256xf32>
    %177 = arith.addf %175, %176 : vector<8x256xf32>
    %178 = arith.negf %177 : vector<8x256xf32>
    %179 = math.exp %178 : vector<8x256xf32>
    %cst_79 = arith.constant 1.000000e+00 : f32
    %180 = vector.broadcast %cst_79 : f32 to vector<8x256xf32>
    %181 = arith.addf %180, %179 : vector<8x256xf32>
    %182 = arith.divf %180, %181 : vector<8x256xf32>
    %183 = vector.extract_strided_slice %182 {offsets = [0, 0], sizes = [8, 128], strides = [1, 1]} : vector<8x256xf32> to vector<8x128xf32>
    %184 = vector.extract_strided_slice %182 {offsets = [0, 128], sizes = [8, 128], strides = [1, 1]} : vector<8x256xf32> to vector<8x128xf32>
    %185 = vector.extract_strided_slice %171 {offsets = [0, 256], sizes = [8, 128], strides = [1, 1]} : vector<8x384xf32> to vector<8x128xf32>
    %186 = vector.extract_strided_slice %174 {offsets = [0, 256], sizes = [8, 128], strides = [1, 1]} : vector<8x384xf32> to vector<8x128xf32>
    %187 = vector.broadcast %165 : vector<1x128xf32> to vector<8x128xf32>
    %188 = arith.addf %186, %187 : vector<8x128xf32>
    %189 = arith.mulf %183, %188 : vector<8x128xf32>
    %190 = arith.addf %185, %189 : vector<8x128xf32>
    %191 = math.tanh %190 : vector<8x128xf32>
    %cst_80 = arith.constant 1.000000e+00 : f32
    %192 = vector.broadcast %cst_80 : f32 to vector<8x128xf32>
    %193 = arith.subf %192, %184 : vector<8x128xf32>
    %194 = arith.mulf %193, %191 : vector<8x128xf32>
    %195 = arith.mulf %184, %167 : vector<8x128xf32>
    %196 = arith.addf %194, %195 : vector<8x128xf32>
    %c0_i32_81 = arith.constant 0 : i32
    %197 = arith.cmpi eq, %c0_i32_73, %c0_i32_81 : i32
    %198 = arith.extui %197 : i1 to i32
    %c0_i32_82 = arith.constant 0 : i32
    %199 = arith.cmpi ne, %198, %c0_i32_82 : i32
    scf.if %199 {
      %316 = arith.truncf %196 : vector<8x128xf32> to vector<8x128xbf16>
      %317 = arith.index_cast %169 : i32 to index
      %c0_128 = arith.constant 0 : index
      %318 = vector.load %arg18[%317, %c0_128] : memref<32x128xbf16, #tpu.memory_space<vmem>>, vector<8x128xbf16>
      tpu.vector_store %arg18[%317, %c0_128], %316 {strides = array<i32>} : memref<32x128xbf16, #tpu.memory_space<vmem>>, vector<8x128xbf16>,
    } else {
    }
    %c1_i32_83 = arith.constant 1 : i32
    %c8_i32_84 = arith.constant 8 : i32
    %200 = arith.muli %c1_i32_83, %c8_i32_84 : i32
    %201 = tpu.assume_multiple %200, 8 : i32
    %202 = arith.index_cast %201 : i32 to index
    %c0_85 = arith.constant 0 : index
    %203 = vector.load %arg17[%202, %c0_85] : memref<32x384xf32, #tpu.memory_space<vmem>>, vector<8x384xf32>
    %204 = arith.truncf %196 : vector<8x128xf32> to vector<8x128xbf16>
    %c0_86 = arith.constant 0 : index
    %c0_87 = arith.constant 0 : index
    %205 = vector.load %arg12[%c0_86, %c0_87] : memref<128x384xbf16, #tpu.memory_space<vmem>>, vector<128x384xbf16>
    %cst_88 = arith.constant dense<0.000000e+00> : vector<8x384xf32>
    %206 = tpu.matmul %204, %205, %cst_88 {dimension_numbers = #tpu.dot_dimension_numbers<[1], [0], [0], [1], [0, 0, 1, 1], [], []>} : vector<8x128xbf16>, vector<128x384xbf16>, vector<8x384xf32> -> vector<8x384xf32>
    %207 = vector.extract_strided_slice %203 {offsets = [0, 0], sizes = [8, 256], strides = [1, 1]} : vector<8x384xf32> to vector<8x256xf32>
    %208 = vector.extract_strided_slice %206 {offsets = [0, 0], sizes = [8, 256], strides = [1, 1]} : vector<8x384xf32> to vector<8x256xf32>
    %209 = arith.addf %207, %208 : vector<8x256xf32>
    %210 = arith.negf %209 : vector<8x256xf32>
    %211 = math.exp %210 : vector<8x256xf32>
    %cst_89 = arith.constant 1.000000e+00 : f32
    %212 = vector.broadcast %cst_89 : f32 to vector<8x256xf32>
    %213 = arith.addf %212, %211 : vector<8x256xf32>
    %214 = arith.divf %212, %213 : vector<8x256xf32>
    %215 = vector.extract_strided_slice %214 {offsets = [0, 0], sizes = [8, 128], strides = [1, 1]} : vector<8x256xf32> to vector<8x128xf32>
    %216 = vector.extract_strided_slice %214 {offsets = [0, 128], sizes = [8, 128], strides = [1, 1]} : vector<8x256xf32> to vector<8x128xf32>
    %217 = vector.extract_strided_slice %203 {offsets = [0, 256], sizes = [8, 128], strides = [1, 1]} : vector<8x384xf32> to vector<8x128xf32>
    %218 = vector.extract_strided_slice %206 {offsets = [0, 256], sizes = [8, 128], strides = [1, 1]} : vector<8x384xf32> to vector<8x128xf32>
    %219 = vector.broadcast %165 : vector<1x128xf32> to vector<8x128xf32>
    %220 = arith.addf %218, %219 : vector<8x128xf32>
    %221 = arith.mulf %215, %220 : vector<8x128xf32>
    %222 = arith.addf %217, %221 : vector<8x128xf32>
    %223 = math.tanh %222 : vector<8x128xf32>
    %cst_90 = arith.constant 1.000000e+00 : f32
    %224 = vector.broadcast %cst_90 : f32 to vector<8x128xf32>
    %225 = arith.subf %224, %216 : vector<8x128xf32>
    %226 = arith.mulf %225, %223 : vector<8x128xf32>
    %227 = arith.mulf %216, %196 : vector<8x128xf32>
    %228 = arith.addf %226, %227 : vector<8x128xf32>
    %c0_i32_91 = arith.constant 0 : i32
    %229 = arith.cmpi eq, %c1_i32_83, %c0_i32_91 : i32
    %230 = arith.extui %229 : i1 to i32
    %c0_i32_92 = arith.constant 0 : i32
    %231 = arith.cmpi ne, %230, %c0_i32_92 : i32
    scf.if %231 {
      %316 = arith.truncf %228 : vector<8x128xf32> to vector<8x128xbf16>
      %317 = arith.index_cast %201 : i32 to index
      %c0_128 = arith.constant 0 : index
      %318 = vector.load %arg18[%317, %c0_128] : memref<32x128xbf16, #tpu.memory_space<vmem>>, vector<8x128xbf16>
      tpu.vector_store %arg18[%317, %c0_128], %316 {strides = array<i32>} : memref<32x128xbf16, #tpu.memory_space<vmem>>, vector<8x128xbf16>,
    } else {
    }
    %c2_i32_93 = arith.constant 2 : i32
    %c8_i32_94 = arith.constant 8 : i32
    %232 = arith.muli %c2_i32_93, %c8_i32_94 : i32
    %233 = tpu.assume_multiple %232, 8 : i32
    %234 = arith.index_cast %233 : i32 to index
    %c0_95 = arith.constant 0 : index
    %235 = vector.load %arg17[%234, %c0_95] : memref<32x384xf32, #tpu.memory_space<vmem>>, vector<8x384xf32>
    %236 = arith.truncf %228 : vector<8x128xf32> to vector<8x128xbf16>
    %c0_96 = arith.constant 0 : index
    %c0_97 = arith.constant 0 : index
    %237 = vector.load %arg12[%c0_96, %c0_97] : memref<128x384xbf16, #tpu.memory_space<vmem>>, vector<128x384xbf16>
    %cst_98 = arith.constant dense<0.000000e+00> : vector<8x384xf32>
    %238 = tpu.matmul %236, %237, %cst_98 {dimension_numbers = #tpu.dot_dimension_numbers<[1], [0], [0], [1], [0, 0, 1, 1], [], []>} : vector<8x128xbf16>, vector<128x384xbf16>, vector<8x384xf32> -> vector<8x384xf32>
    %239 = vector.extract_strided_slice %235 {offsets = [0, 0], sizes = [8, 256], strides = [1, 1]} : vector<8x384xf32> to vector<8x256xf32>
    %240 = vector.extract_strided_slice %238 {offsets = [0, 0], sizes = [8, 256], strides = [1, 1]} : vector<8x384xf32> to vector<8x256xf32>
    %241 = arith.addf %239, %240 : vector<8x256xf32>
    %242 = arith.negf %241 : vector<8x256xf32>
    %243 = math.exp %242 : vector<8x256xf32>
    %cst_99 = arith.constant 1.000000e+00 : f32
    %244 = vector.broadcast %cst_99 : f32 to vector<8x256xf32>
    %245 = arith.addf %244, %243 : vector<8x256xf32>
    %246 = arith.divf %244, %245 : vector<8x256xf32>
    %247 = vector.extract_strided_slice %246 {offsets = [0, 0], sizes = [8, 128], strides = [1, 1]} : vector<8x256xf32> to vector<8x128xf32>
    %248 = vector.extract_strided_slice %246 {offsets = [0, 128], sizes = [8, 128], strides = [1, 1]} : vector<8x256xf32> to vector<8x128xf32>
    %249 = vector.extract_strided_slice %235 {offsets = [0, 256], sizes = [8, 128], strides = [1, 1]} : vector<8x384xf32> to vector<8x128xf32>
    %250 = vector.extract_strided_slice %238 {offsets = [0, 256], sizes = [8, 128], strides = [1, 1]} : vector<8x384xf32> to vector<8x128xf32>
    %251 = vector.broadcast %165 : vector<1x128xf32> to vector<8x128xf32>
    %252 = arith.addf %250, %251 : vector<8x128xf32>
    %253 = arith.mulf %247, %252 : vector<8x128xf32>
    %254 = arith.addf %249, %253 : vector<8x128xf32>
    %255 = math.tanh %254 : vector<8x128xf32>
    %cst_100 = arith.constant 1.000000e+00 : f32
    %256 = vector.broadcast %cst_100 : f32 to vector<8x128xf32>
    %257 = arith.subf %256, %248 : vector<8x128xf32>
    %258 = arith.mulf %257, %255 : vector<8x128xf32>
    %259 = arith.mulf %248, %228 : vector<8x128xf32>
    %260 = arith.addf %258, %259 : vector<8x128xf32>
    %c0_i32_101 = arith.constant 0 : i32
    %261 = arith.cmpi eq, %c2_i32_93, %c0_i32_101 : i32
    %262 = arith.extui %261 : i1 to i32
    %c0_i32_102 = arith.constant 0 : i32
    %263 = arith.cmpi ne, %262, %c0_i32_102 : i32
    scf.if %263 {
      %316 = arith.truncf %260 : vector<8x128xf32> to vector<8x128xbf16>
      %317 = arith.index_cast %233 : i32 to index
      %c0_128 = arith.constant 0 : index
      %318 = vector.load %arg18[%317, %c0_128] : memref<32x128xbf16, #tpu.memory_space<vmem>>, vector<8x128xbf16>
      tpu.vector_store %arg18[%317, %c0_128], %316 {strides = array<i32>} : memref<32x128xbf16, #tpu.memory_space<vmem>>, vector<8x128xbf16>,
    } else {
    }
    %c3_i32_103 = arith.constant 3 : i32
    %c8_i32_104 = arith.constant 8 : i32
    %264 = arith.muli %c3_i32_103, %c8_i32_104 : i32
    %265 = tpu.assume_multiple %264, 8 : i32
    %266 = arith.index_cast %265 : i32 to index
    %c0_105 = arith.constant 0 : index
    %267 = vector.load %arg17[%266, %c0_105] : memref<32x384xf32, #tpu.memory_space<vmem>>, vector<8x384xf32>
    %268 = arith.truncf %260 : vector<8x128xf32> to vector<8x128xbf16>
    %c0_106 = arith.constant 0 : index
    %c0_107 = arith.constant 0 : index
    %269 = vector.load %arg12[%c0_106, %c0_107] : memref<128x384xbf16, #tpu.memory_space<vmem>>, vector<128x384xbf16>
    %cst_108 = arith.constant dense<0.000000e+00> : vector<8x384xf32>
    %270 = tpu.matmul %268, %269, %cst_108 {dimension_numbers = #tpu.dot_dimension_numbers<[1], [0], [0], [1], [0, 0, 1, 1], [], []>} : vector<8x128xbf16>, vector<128x384xbf16>, vector<8x384xf32> -> vector<8x384xf32>
    %271 = vector.extract_strided_slice %267 {offsets = [0, 0], sizes = [8, 256], strides = [1, 1]} : vector<8x384xf32> to vector<8x256xf32>
    %272 = vector.extract_strided_slice %270 {offsets = [0, 0], sizes = [8, 256], strides = [1, 1]} : vector<8x384xf32> to vector<8x256xf32>
    %273 = arith.addf %271, %272 : vector<8x256xf32>
    %274 = arith.negf %273 : vector<8x256xf32>
    %275 = math.exp %274 : vector<8x256xf32>
    %cst_109 = arith.constant 1.000000e+00 : f32
    %276 = vector.broadcast %cst_109 : f32 to vector<8x256xf32>
    %277 = arith.addf %276, %275 : vector<8x256xf32>
    %278 = arith.divf %276, %277 : vector<8x256xf32>
    %279 = vector.extract_strided_slice %278 {offsets = [0, 0], sizes = [8, 128], strides = [1, 1]} : vector<8x256xf32> to vector<8x128xf32>
    %280 = vector.extract_strided_slice %278 {offsets = [0, 128], sizes = [8, 128], strides = [1, 1]} : vector<8x256xf32> to vector<8x128xf32>
    %281 = vector.extract_strided_slice %267 {offsets = [0, 256], sizes = [8, 128], strides = [1, 1]} : vector<8x384xf32> to vector<8x128xf32>
    %282 = vector.extract_strided_slice %270 {offsets = [0, 256], sizes = [8, 128], strides = [1, 1]} : vector<8x384xf32> to vector<8x128xf32>
    %283 = vector.broadcast %165 : vector<1x128xf32> to vector<8x128xf32>
    %284 = arith.addf %282, %283 : vector<8x128xf32>
    %285 = arith.mulf %279, %284 : vector<8x128xf32>
    %286 = arith.addf %281, %285 : vector<8x128xf32>
    %287 = math.tanh %286 : vector<8x128xf32>
    %cst_110 = arith.constant 1.000000e+00 : f32
    %288 = vector.broadcast %cst_110 : f32 to vector<8x128xf32>
    %289 = arith.subf %288, %280 : vector<8x128xf32>
    %290 = arith.mulf %289, %287 : vector<8x128xf32>
    %291 = arith.mulf %280, %260 : vector<8x128xf32>
    %292 = arith.addf %290, %291 : vector<8x128xf32>
    %c0_i32_111 = arith.constant 0 : i32
    %293 = arith.cmpi eq, %c3_i32_103, %c0_i32_111 : i32
    %294 = arith.extui %293 : i1 to i32
    %c0_i32_112 = arith.constant 0 : i32
    %295 = arith.cmpi ne, %294, %c0_i32_112 : i32
    scf.if %295 {
      %316 = arith.truncf %292 : vector<8x128xf32> to vector<8x128xbf16>
      %317 = arith.index_cast %265 : i32 to index
      %c0_128 = arith.constant 0 : index
      %318 = vector.load %arg18[%317, %c0_128] : memref<32x128xbf16, #tpu.memory_space<vmem>>, vector<8x128xbf16>
      tpu.vector_store %arg18[%317, %c0_128], %316 {strides = array<i32>} : memref<32x128xbf16, #tpu.memory_space<vmem>>, vector<8x128xbf16>,
    } else {
    }
    %c4_i32_113 = arith.constant 4 : i32
    %c1_114 = arith.constant 1 : index
    %c0_115 = arith.constant 0 : index
    %c0_116 = arith.constant 0 : index
    %296 = vector.load %arg16[%c1_114, %c0_115, %c0_116] : memref<2x8x128xf32, #tpu.memory_space<vmem>>, vector<1x8x128xf32>
    %297 = vector.shape_cast %296 : vector<1x8x128xf32> to vector<8x128xf32>
    %298 = vector.shape_cast %292 : vector<8x128xf32> to vector<1x8x128xf32>
    tpu.vector_store %arg16[%c1_114, %c0_115, %c0_116], %298 {strides = array<i32>} : memref<2x8x128xf32, #tpu.memory_space<vmem>>, vector<1x8x128xf32>,
    %c0_117 = arith.constant 0 : index
    %c0_118 = arith.constant 0 : index
    %299 = vector.load %arg18[%c0_117, %c0_118] : memref<32x128xbf16, #tpu.memory_space<vmem>>, vector<8x128xbf16>
    %c0_119 = arith.constant 0 : index
    %c0_120 = arith.constant 0 : index
    %300 = vector.load %arg5[%c0_119, %c0_120] : memref<128x128xbf16, #tpu.memory_space<vmem>>, vector<128x128xbf16>
    %cst_121 = arith.constant dense<0.000000e+00> : vector<8x128xf32>
    %301 = tpu.matmul %299, %300, %cst_121 {dimension_numbers = #tpu.dot_dimension_numbers<[1], [0], [0], [1], [0, 0, 1, 1], [], []>} : vector<8x128xbf16>, vector<128x128xbf16>, vector<8x128xf32> -> vector<8x128xf32>
    %c0_122 = arith.constant 0 : index
    %c0_123 = arith.constant 0 : index
    %302 = vector.load %arg6[%c0_122, %c0_123] : memref<1x128xf32, #tpu.memory_space<vmem>>, vector<1x128xf32>
    %303 = vector.broadcast %302 : vector<1x128xf32> to vector<8x128xf32>
    %304 = arith.addf %301, %303 : vector<8x128xf32>
    %cst_124 = arith.constant dense<0xFF800000> : vector<8xf32>
    %305 = vector.multi_reduction <maximumf>, %304, %cst_124 [1] : vector<8x128xf32> to vector<8xf32>
    %306 = vector.shape_cast %305 : vector<8xf32> to vector<8x1xf32>
    %307 = vector.broadcast %306 : vector<8x1xf32> to vector<8x128xf32>
    %308 = arith.subf %304, %307 : vector<8x128xf32>
    %309 = math.exp %308 : vector<8x128xf32>
    %cst_125 = arith.constant dense<0.000000e+00> : vector<8xf32>
    %310 = vector.multi_reduction <add>, %309, %cst_125 [1] : vector<8x128xf32> to vector<8xf32>
    %311 = vector.shape_cast %310 : vector<8xf32> to vector<8x1xf32>
    %312 = math.log %311 : vector<8x1xf32>
    %313 = vector.broadcast %312 : vector<8x1xf32> to vector<8x128xf32>
    %314 = arith.subf %308, %313 : vector<8x128xf32>
    %c0_126 = arith.constant 0 : index
    %c0_127 = arith.constant 0 : index
    %315 = vector.load %arg15[%c0_126, %c0_127] : memref<8x128xf32, #tpu.memory_space<vmem>>, vector<8x128xf32>
    tpu.vector_store %arg15[%c0_126, %c0_127], %314 {strides = array<i32>} : memref<8x128xf32, #tpu.memory_space<vmem>>, vector<8x128xf32>,
    return
  }
}

</mosaic_0001>

<llo_original>
// kernel: decoder_forward.1
$region0: #{decoder_forward.1}
  #allocation0 [shape = 'u32[]', space=smem, size = 0x4, offset = 0x4, fixed_abs, tag = 'smem constant byte address 0x4 - core index']
  #allocation1 [shape = 'u32[144,128]{1,0:T(1,128)}', space=vmem, size = 0x12000, scoped, tag = 'internal scratch']
  #allocation2 [shape = 'f32[32,384]{1,0:T(8,128)}', space=vmem, size = 0xc000, scoped, tag = 'scratch operand']
  #allocation3 [shape = 'bf16[32,128]{1,0:T(8,128)(2,1)}', space=vmem, size = 0x2000, scoped, tag = 'scratch operand']
  %s0 = inlined_call_operand.vmem [shape: f32[2,8,128], index: 0, kind: input, shape index: {}, may-alias: {0,16}]
  %s1 = inlined_call_operand.vmem [shape: f32[32,128], index: 1, kind: input, shape index: {}]
  %s2 = inlined_call_operand.vmem [shape: f32[32,128], index: 2, kind: input, shape index: {}]
  %s3 = inlined_call_operand.vmem [shape: bf16[128,128], index: 3, kind: input, shape index: {}]
  %s4 = inlined_call_operand.vmem [shape: f32[1,128], index: 4, kind: input, shape index: {}]
  %s5 = inlined_call_operand.hbm [shape: bf16[128,128], index: 5, kind: input, shape index: {}]
  %s6 = inlined_call_operand.vmem [shape: f32[1,128], index: 6, kind: input, shape index: {}]
  %s7 = inlined_call_operand.vmem [shape: bf16[2,128,384], index: 7, kind: input, shape index: {}]
  %s8 = inlined_call_operand.hbm [shape: bf16[128,384], index: 8, kind: input, shape index: {}]
  %s9 = inlined_call_operand.hbm [shape: f32[1,384], index: 9, kind: input, shape index: {}]
  %s10 = inlined_call_operand.hbm [shape: f32[1,128], index: 10, kind: input, shape index: {}]
  %s11 = inlined_call_operand.hbm [shape: bf16[1,128,384], index: 11, kind: input, shape index: {}]
  %s12 = inlined_call_operand.hbm [shape: bf16[128,384], index: 12, kind: input, shape index: {}]
  %s13 = inlined_call_operand.hbm [shape: f32[1,384], index: 13, kind: input, shape index: {}]
  %s14 = inlined_call_operand.hbm [shape: f32[1,128], index: 14, kind: input, shape index: {}]
  %s15 = inlined_call_operand.hbm [shape: f32[8,128], index: 15, kind: output, shape index: {0}]
  %s16 = inlined_call_operand.vmem [shape: f32[2,8,128], index: 16, kind: output, shape index: {1}, may-alias: {0,16}]
  %17 = xla_tuple %s15, %s16
  %s18 = sld [smem:[#allocation0]]
  $region110: #{decoder_forward.1} parent=0
    _
  %s20 = ssub.s32 1, %s18
  %s21 = scalar_select 0, %s20, %s18
  $region1: #{decoder_forward.1} parent=0
    #allocation4 [shape = 'u8[32768]{0}', space=vmem, size = 0x8000, scoped, tag = 'input window, operand 5, single buffered']
    #allocation5 [shape = 's32[1]{0}', space=sflag, size = 0x4, scoped, tag = 'scoped memory for decoder_forward.1']
    #allocation6 [shape = 's32[1]{0}', space=sflag, size = 0x4, scoped, tag = 'scoped memory for decoder_forward.1']
    #allocation7 [shape = 'u8[98304]{0}', space=vmem, size = 0x18000, scoped, tag = 'input window, operand 8, single buffered']
    #allocation8 [shape = 's32[1]{0}', space=sflag, size = 0x4, scoped, tag = 'scoped memory for decoder_forward.1']
    #allocation9 [shape = 'u8[1536]{0}', space=vmem, size = 0x800, scoped, tag = 'input window, operand 9, single buffered']
    #allocation10 [shape = 'u8[512]{0}', space=vmem, size = 0x400, scoped, tag = 'input window, operand 10, single buffered']
    #allocation11 [shape = 's32[1]{0}', space=sflag, size = 0x4, scoped, tag = 'scoped memory for decoder_forward.1']
    #allocation12 [shape = 'u8[98304]{0}', space=vmem, size = 0x18000, scoped, tag = 'input window, operand 11, single buffered']
    #allocation13 [shape = 'u8[98304]{0}', space=vmem, size = 0x18000, scoped, tag = 'input window, operand 12, single buffered']
    #allocation14 [shape = 's32[1]{0}', space=sflag, size = 0x4, scoped, tag = 'scoped memory for decoder_forward.1']
    #allocation15 [shape = 'u8[1536]{0}', space=vmem, size = 0x800, scoped, tag = 'input window, operand 13, single buffered']
    #allocation16 [shape = 'u8[512]{0}', space=vmem, size = 0x400, scoped, tag = 'input window, operand 14, single buffered']
    #allocation17 [shape = 's32[1]{0}', space=sflag, size = 0x4, scoped, tag = 'scoped memory for decoder_forward.1']
    #allocation18 [shape = 'u8[4096]{0}', space=vmem, size = 0x1000, scoped, tag = 'output window, operand 0, single buffered']
    %22 = vsyncpa [#allocation5], 0
    %23 = vsyncpa [#allocation8], 0
    %24 = vsyncpa [#allocation11], 0
    %25 = vsyncpa [#allocation14], 0
    %26 = vsyncpa [#allocation17], 0
    %27 = vsyncpa [#allocation6], 0
    // Predicated region
    $region2: #{decoder_forward.1} parent=1 // pred_check
      _
    $region3: #{decoder_forward.1} parent=1 // pred_check_branch
      %29 = sbr.rel (0) target = $region5
    $region4: #{decoder_forward.1} parent=1 // pred_region
      _
    $region5: #{decoder_forward.1} parent=1 // pred_fallthru
      _
    // Predicated region
    $region6: #{decoder_forward.1} parent=1 // pred_check
      _
    $region7: #{decoder_forward.1} parent=1 // pred_check_branch
      %31 = sbr.rel (0) target = $region9
    $region8: #{decoder_forward.1} parent=1 // pred_region
      _
    $region9: #{decoder_forward.1} parent=1 // pred_fallthru
      _
    // Predicated region
    $region10: #{decoder_forward.1} parent=1 // pred_check
      _
    $region11: #{decoder_forward.1} parent=1 // pred_check_branch
      %33 = sbr.rel (0) target = $region13
    $region12: #{decoder_forward.1} parent=1 // pred_region
      _
    $region13: #{decoder_forward.1} parent=1 // pred_fallthru
      _
    // Predicated region
    $region14: #{decoder_forward.1} parent=1 // pred_check
      _
    $region15: #{decoder_forward.1} parent=1 // pred_check_branch
      %35 = sbr.rel (0) target = $region17
    $region16: #{decoder_forward.1} parent=1 // pred_region
      _
    $region17: #{decoder_forward.1} parent=1 // pred_fallthru
      _
    // Predicated region
    $region18: #{decoder_forward.1} parent=1 // pred_check
      _
    $region19: #{decoder_forward.1} parent=1 // pred_check_branch
      %37 = sbr.rel (0) target = $region21
    $region20: #{decoder_forward.1} parent=1 // pred_region
      _
    $region21: #{decoder_forward.1} parent=1 // pred_fallthru
      _
    // Predicated region
    $region22: #{decoder_forward.1} parent=1 // pred_check
      _
    $region23: #{decoder_forward.1} parent=1 // pred_check_branch
      %39 = sbr.rel (0) target = $region25
    $region24: #{decoder_forward.1} parent=1 // pred_region
      %s41 = ssub.s32 1024, 1024
      %42 = vsyncadd [#allocation5], %s41
      %s43 = sshll.u32 [#allocation4], 4
      %s44 = int_to_ptr.vmem [resolvable:$true] %s43
      %49 = dma.hbm_to_vmem [thread:$0]  %s5, 1024, %s44, [#allocation5], 64, 64, 4
    $region25: #{decoder_forward.1} parent=1 // pred_fallthru
      _
    // Predicated region
    $region26: #{decoder_forward.1} parent=1 // pred_check
      _
    $region27: #{decoder_forward.1} parent=1 // pred_check_branch
      %51 = sbr.rel (0) target = $region29
    $region28: #{decoder_forward.1} parent=1 // pred_region
      _
    $region29: #{decoder_forward.1} parent=1 // pred_fallthru
      _
    // Predicated region
    $region30: #{decoder_forward.1} parent=1 // pred_check
      _
    $region31: #{decoder_forward.1} parent=1 // pred_check_branch
      %53 = sbr.rel (0) target = $region33
    $region32: #{decoder_forward.1} parent=1 // pred_region
      _
    $region33: #{decoder_forward.1} parent=1 // pred_fallthru
      _
    // Predicated region
    $region34: #{decoder_forward.1} parent=1 // pred_check
      _
    $region35: #{decoder_forward.1} parent=1 // pred_check_branch
      %55 = sbr.rel (0) target = $region37
    $region36: #{decoder_forward.1} parent=1 // pred_region
      %s57 = ssub.s32 3072, 3072
      %58 = vsyncadd [#allocation8], %s57
      %s59 = sshll.u32 [#allocation7], 4
      %s60 = int_to_ptr.vmem [resolvable:$true] %s59
      %65 = dma.hbm_to_vmem [thread:$0]  %s8, 3072, %s60, [#allocation8], 192, 192, 12
    $region37: #{decoder_forward.1} parent=1 // pred_fallthru
      _
    // Predicated region
    $region38: #{decoder_forward.1} parent=1 // pred_check
      _
    $region39: #{decoder_forward.1} parent=1 // pred_check_branch
      %67 = sbr.rel (0) target = $region41
    $region40: #{decoder_forward.1} parent=1 // pred_region
      %s69 = ssub.s32 48, 48
      %70 = vsyncadd [#allocation8], %s69
      %s72 = sshll.u32 [#allocation9], 4
      %s73 = int_to_ptr.vmem [resolvable:$true] %s72
      %75 = dma.hbm_to_vmem [thread:$0]  %s9, 48, %s73, [#allocation8]
    $region41: #{decoder_forward.1} parent=1 // pred_fallthru
      _
    // Predicated region
    $region42: #{decoder_forward.1} parent=1 // pred_check
      _
    $region43: #{decoder_forward.1} parent=1 // pred_check_branch
      %77 = sbr.rel (0) target = $region45
    $region44: #{decoder_forward.1} parent=1 // pred_region
      %s79 = ssub.s32 16, 16
      %80 = vsyncadd [#allocation11], %s79
      %s82 = sshll.u32 [#allocation10], 4
      %s83 = int_to_ptr.vmem [resolvable:$true] %s82
      %85 = dma.hbm_to_vmem [thread:$0]  %s10, 16, %s83, [#allocation11]
    $region45: #{decoder_forward.1} parent=1 // pred_fallthru
      _
    // Predicated region
    $region46: #{decoder_forward.1} parent=1 // pred_check
      _
    $region47: #{decoder_forward.1} parent=1 // pred_check_branch
      %87 = sbr.rel (0) target = $region49
    $region48: #{decoder_forward.1} parent=1 // pred_region
      %s89 = ssub.s32 3072, 3072
      %90 = vsyncadd [#allocation11], %s89
      %s91 = sshll.u32 [#allocation12], 4
      %s92 = int_to_ptr.vmem [resolvable:$true] %s91
      %97 = dma.hbm_to_vmem [thread:$0]  %s11, 3072, %s92, [#allocation11], 192, 192, 12
    $region49: #{decoder_forward.1} parent=1 // pred_fallthru
      _
    // Predicated region
    $region50: #{decoder_forward.1} parent=1 // pred_check
      _
    $region51: #{decoder_forward.1} parent=1 // pred_check_branch
      %99 = sbr.rel (0) target = $region53
    $region52: #{decoder_forward.1} parent=1 // pred_region
      %s101 = ssub.s32 3072, 3072
      %102 = vsyncadd [#allocation14], %s101
      %s103 = sshll.u32 [#allocation13], 4
      %s104 = int_to_ptr.vmem [resolvable:$true] %s103
      %109 = dma.hbm_to_vmem [thread:$0]  %s12, 3072, %s104, [#allocation14], 192, 192, 12
    $region53: #{decoder_forward.1} parent=1 // pred_fallthru
      _
    // Predicated region
    $region54: #{decoder_forward.1} parent=1 // pred_check
      _
    $region55: #{decoder_forward.1} parent=1 // pred_check_branch
      %111 = sbr.rel (0) target = $region57
    $region56: #{decoder_forward.1} parent=1 // pred_region
      %s113 = ssub.s32 48, 48
      %114 = vsyncadd [#allocation14], %s113
      %s116 = sshll.u32 [#allocation15], 4
      %s117 = int_to_ptr.vmem [resolvable:$true] %s116
      %119 = dma.hbm_to_vmem [thread:$0]  %s13, 48, %s117, [#allocation14]
    $region57: #{decoder_forward.1} parent=1 // pred_fallthru
      _
    // Predicated region
    $region58: #{decoder_forward.1} parent=1 // pred_check
      _
    $region59: #{decoder_forward.1} parent=1 // pred_check_branch
      %121 = sbr.rel (0) target = $region61
    $region60: #{decoder_forward.1} parent=1 // pred_region
      %s123 = ssub.s32 16, 16
      %124 = vsyncadd [#allocation17], %s123
      %s126 = sshll.u32 [#allocation16], 4
      %s127 = int_to_ptr.vmem [resolvable:$true] %s126
      %129 = dma.hbm_to_vmem [thread:$0]  %s14, 16, %s127, [#allocation17]
    $region61: #{decoder_forward.1} parent=1 // pred_fallthru
      _
    // Predicated region
    $region62: #{decoder_forward.1} parent=1 // pred_check
      _
    $region63: #{decoder_forward.1} parent=1 // pred_check_branch
      %131 = sbr.rel (0) target = $region65
    $region64: #{decoder_forward.1} parent=1 // pred_region
      %132 = dma.done [#allocation5], 1024
    $region65: #{decoder_forward.1} parent=1 // pred_fallthru
      _
    // Predicated region
    $region66: #{decoder_forward.1} parent=1 // pred_check
      _
    $region67: #{decoder_forward.1} parent=1 // pred_check_branch
      %134 = sbr.rel (0) target = $region69
    $region68: #{decoder_forward.1} parent=1 // pred_region
      %135 = dma.done [#allocation8], 3072
    $region69: #{decoder_forward.1} parent=1 // pred_fallthru
      _
    // Predicated region
    $region70: #{decoder_forward.1} parent=1 // pred_check
      _
    $region71: #{decoder_forward.1} parent=1 // pred_check_branch
      %137 = sbr.rel (0) target = $region73
    $region72: #{decoder_forward.1} parent=1 // pred_region
      %138 = dma.done [#allocation8], 48
    $region73: #{decoder_forward.1} parent=1 // pred_fallthru
      _
    // Predicated region
    $region74: #{decoder_forward.1} parent=1 // pred_check
      _
    $region75: #{decoder_forward.1} parent=1 // pred_check_branch
      %140 = sbr.rel (0) target = $region77
    $region76: #{decoder_forward.1} parent=1 // pred_region
      %141 = dma.done [#allocation11], 16
    $region77: #{decoder_forward.1} parent=1 // pred_fallthru
      _
    // Predicated region
    $region78: #{decoder_forward.1} parent=1 // pred_check
      _
    $region79: #{decoder_forward.1} parent=1 // pred_check_branch
      %143 = sbr.rel (0) target = $region81
    $region80: #{decoder_forward.1} parent=1 // pred_region
      %144 = dma.done [#allocation11], 3072
    $region81: #{decoder_forward.1} parent=1 // pred_fallthru
      _
    // Predicated region
    $region82: #{decoder_forward.1} parent=1 // pred_check
      _
    $region83: #{decoder_forward.1} parent=1 // pred_check_branch
      %146 = sbr.rel (0) target = $region85
    $region84: #{decoder_forward.1} parent=1 // pred_region
      %147 = dma.done [#allocation14], 3072
    $region85: #{decoder_forward.1} parent=1 // pred_fallthru
      _
    // Predicated region
    $region86: #{decoder_forward.1} parent=1 // pred_check
      _
    $region87: #{decoder_forward.1} parent=1 // pred_check_branch
      %149 = sbr.rel (0) target = $region89
    $region88: #{decoder_forward.1} parent=1 // pred_region
      %150 = dma.done [#allocation14], 48
    $region89: #{decoder_forward.1} parent=1 // pred_fallthru
      _
    // Predicated region
    $region90: #{decoder_forward.1} parent=1 // pred_check
      _
    $region91: #{decoder_forward.1} parent=1 // pred_check_branch
      %152 = sbr.rel (0) target = $region93
    $region92: #{decoder_forward.1} parent=1 // pred_region
      %153 = dma.done [#allocation17], 16
    $region93: #{decoder_forward.1} parent=1 // pred_fallthru
      _
    %v155 = vld [vmem:[%s2] sm:$0xff]
    %v156 = vld [vmem:[%s2 + $0x8] sm:$0xff]
    %v157 = vld [vmem:[%s2 + $0x10] sm:$0xff]
    %v158 = vld [vmem:[%s2 + $0x18] sm:$0xff]
    %v159 = vpack.c.bf16 %v156, %v155
    %v160 = vpack.c.bf16 %v158, %v157
    %v161 = vld [vmem:[%s3] sm:$0xf]
    %v162 = vld [vmem:[%s3 + $0x4] sm:$0xf]
    %v163 = vld [vmem:[%s3 + $0x8] sm:$0xf]
    %v164 = vld [vmem:[%s3 + $0xc] sm:$0xf]
    %v165 = vld [vmem:[%s3 + $0x10] sm:$0xf]
    %v166 = vld [vmem:[%s3 + $0x14] sm:$0xf]
    %v167 = vld [vmem:[%s3 + $0x18] sm:$0xf]
    %v168 = vld [vmem:[%s3 + $0x1c] sm:$0xf]
    %v169 = vld [vmem:[%s3 + $0x20] sm:$0xf]
    %v170 = vld [vmem:[%s3 + $0x24] sm:$0xf]
    %v171 = vld [vmem:[%s3 + $0x28] sm:$0xf]
    %v172 = vld [vmem:[%s3 + $0x2c] sm:$0xf]
    %v173 = vld [vmem:[%s3 + $0x30] sm:$0xf]
    %v174 = vld [vmem:[%s3 + $0x34] sm:$0xf]
    %v175 = vld [vmem:[%s3 + $0x38] sm:$0xf]
    %v176 = vld [vmem:[%s3 + $0x3c] sm:$0xf]
    %v177 = vld [vmem:[%s4] sm:$0x1]
    %v179 = vlaneseq
    %v180 = vshrl.u32 %v179, 7
    %v181 = vsub.s32 0, %v180
    %v182 = vrot.slane %v177, %v181
    %v200 = vunpack.c.l.b16 %v161
    %v201 = vunpack.c.l.b16 %v162
    %v202 = vunpack.c.l.b16 %v163
    %v203 = vunpack.c.l.b16 %v164
    %v204 = vunpack.c.l.b16 %v165
    %v205 = vunpack.c.l.b16 %v166
    %v206 = vunpack.c.l.b16 %v167
    %v207 = vunpack.c.l.b16 %v168
    %v208 = vunpack.c.l.b16 %v169
    %v209 = vunpack.c.l.b16 %v170
    %v210 = vunpack.c.l.b16 %v171
    %v211 = vunpack.c.l.b16 %v172
    %v212 = vunpack.c.l.b16 %v173
    %v213 = vunpack.c.l.b16 %v174
    %v214 = vunpack.c.l.b16 %v175
    %v215 = vunpack.c.l.b16 %v176
    %v216 = vpack.c.b16 %v201, %v200
    %v217 = vpack.c.b16 %v203, %v202
    %v218 = vpack.c.b16 %v205, %v204
    %v219 = vpack.c.b16 %v207, %v206
    %v220 = vpack.c.b16 %v209, %v208
    %v221 = vpack.c.b16 %v211, %v210
    %v222 = vpack.c.b16 %v213, %v212
    %v223 = vpack.c.b16 %v215, %v214
    %232 = vmatprep.subr.bf16.mxu0 0
    %233 = vmatpush1.bf16.msra.mxu0 %v223
    %234 = vmatprep.subr.bf16.mxu0 0
    %235 = vmatpush1.bf16.msra.mxu0 %v222
    %236 = vmatprep.subr.bf16.mxu0 0
    %237 = vmatpush1.bf16.msra.mxu0 %v221
    %238 = vmatprep.subr.bf16.mxu0 0
    %239 = vmatpush1.bf16.msra.mxu0 %v220
    %240 = vmatprep.subr.bf16.mxu0 0
    %241 = vmatpush1.bf16.msra.mxu0 %v219
    %242 = vmatprep.subr.bf16.mxu0 0
    %243 = vmatpush1.bf16.msra.mxu0 %v218
    %244 = vmatprep.subr.bf16.mxu0 0
    %245 = vmatpush1.bf16.msra.mxu0 %v217
    %246 = vmatprep.subr.bf16.mxu0 0
    %247 = vmatpush1.bf16.msra.mxu0 %v216
    %248 = vmatprep.subr.bf16.mxu0 0
    %249 = vmatpush2.bf16.msra.mxu0 0
    %250 = vmatprep.subr.bf16.mxu0 0
    %251 = vmatpush2.bf16.msra.mxu0 0
    %252 = vmatprep.subr.bf16.mxu0 0
    %253 = vmatpush2.bf16.msra.mxu0 0
    %254 = vmatprep.subr.bf16.mxu0 0
    %255 = vmatpush2.bf16.msra.mxu0 0
    %256 = vmatprep.subr.bf16.mxu0 0
    %257 = vmatpush2.bf16.msra.mxu0 0
    %258 = vmatprep.subr.bf16.mxu0 0
    %259 = vmatpush2.bf16.msra.mxu0 0
    %260 = vmatprep.subr.bf16.mxu0 0
    %261 = vmatpush2.bf16.msra.mxu0 0
    %262 = vmatprep.subr.bf16.mxu0 0
    %263 = vmatpush2.bf16.msra.mxu0 0
    %264 = vmatprep.mubr.bf16.mxu0 0
    %265 = vmatmul.mubr.bf16.gmra.mxu0 %v159
    %v266 = vpop.f32.mrf.mxu0
    %v267 = vadd.f32 %v182, %v266
    %v268 = vpop.f32.mrf.mxu0
    %v269 = vpop.f32.mrf.mxu0
    %v270 = vadd.f32 %v182, %v269
    %v271 = vpop.f32.mrf.mxu0
    %272 = vmatprep.mubr.bf16.mxu0 0
    %273 = vmatmul.mubr.bf16.gmra.mxu0 %v160
    %v274 = vpop.f32.mrf.mxu0
    %v275 = vadd.f32 %v182, %v274
    %v276 = vpop.f32.mrf.mxu0
    %v277 = vpop.f32.mrf.mxu0
    %v278 = vadd.f32 %v182, %v277
    %v279 = vpop.f32.mrf.mxu0
    %280 = vdwg.mxu0
    %v281 = vpack.c.bf16 %v270, %v267
    %v282 = vpack.c.bf16 %v278, %v275
    %v283 = vld [vmem:[%s1] sm:$0xff]
    %v284 = vld [vmem:[%s1 + $0x8] sm:$0xff]
    %v285 = vld [vmem:[%s1 + $0x10] sm:$0xff]
    %v286 = vld [vmem:[%s1 + $0x18] sm:$0xff]
    %v287 = vmax.f32 %v283, 0.0
    %v288 = vmax.f32 %v284, 0.0
    %v289 = vmax.f32 %v285, 0.0
    %v290 = vmax.f32 %v286, 0.0
    %v291 = vpack.c.bf16 %v288, %v287
    %v292 = vpack.c.bf16 %v290, %v289
    %v293 = vld [vmem:[%s7] sm:$0xff]
    %v294 = vld [vmem:[%s7 + $0x8] sm:$0xf]
    %v295 = vld [vmem:[%s7 + $0xc] sm:$0xff]
    %v296 = vld [vmem:[%s7 + $0x14] sm:$0xf]
    %v297 = vld [vmem:[%s7 + $0x18] sm:$0xff]
    %v298 = vld [vmem:[%s7 + $0x20] sm:$0xf]
    %v299 = vld [vmem:[%s7 + $0x24] sm:$0xff]
    %v300 = vld [vmem:[%s7 + $0x2c] sm:$0xf]
    %v301 = vld [vmem:[%s7 + $0x30] sm:$0xff]
    %v302 = vld [vmem:[%s7 + $0x38] sm:$0xf]
    %v303 = vld [vmem:[%s7 + $0x3c] sm:$0xff]
    %v304 = vld [vmem:[%s7 + $0x44] sm:$0xf]
    %v305 = vld [vmem:[%s7 + $0x48] sm:$0xff]
    %v306 = vld [vmem:[%s7 + $0x50] sm:$0xf]
    %v307 = vld [vmem:[%s7 + $0x54] sm:$0xff]
    %v308 = vld [vmem:[%s7 + $0x5c] sm:$0xf]
    %v309 = vld [vmem:[%s7 + $0x60] sm:$0xff]
    %v310 = vld [vmem:[%s7 + $0x68] sm:$0xf]
    %v311 = vld [vmem:[%s7 + $0x6c] sm:$0xff]
    %v312 = vld [vmem:[%s7 + $0x74] sm:$0xf]
    %v313 = vld [vmem:[%s7 + $0x78] sm:$0xff]
    %v314 = vld [vmem:[%s7 + $0x80] sm:$0xf]
    %v315 = vld [vmem:[%s7 + $0x84] sm:$0xff]
    %v316 = vld [vmem:[%s7 + $0x8c] sm:$0xf]
    %v317 = vld [vmem:[%s7 + $0x90] sm:$0xff]
    %v318 = vld [vmem:[%s7 + $0x98] sm:$0xf]
    %v319 = vld [vmem:[%s7 + $0x9c] sm:$0xff]
    %v320 = vld [vmem:[%s7 + $0xa4] sm:$0xf]
    %v321 = vld [vmem:[%s7 + $0xa8] sm:$0xff]
    %v322 = vld [vmem:[%s7 + $0xb0] sm:$0xf]
    %v323 = vld [vmem:[%s7 + $0xb4] sm:$0xff]
    %v324 = vld [vmem:[%s7 + $0xbc] sm:$0xf]
    %s325 = scalar_lea.vmem %s7, 192
    %v326 = vld [vmem:[%s325] sm:$0xff]
    %v327 = vld [vmem:[%s325 + $0x8] sm:$0xf]
    %v328 = vld [vmem:[%s325 + $0xc] sm:$0xff]
    %v329 = vld [vmem:[%s325 + $0x14] sm:$0xf]
    %v330 = vld [vmem:[%s325 + $0x18] sm:$0xff]
    %v331 = vld [vmem:[%s325 + $0x20] sm:$0xf]
    %v332 = vld [vmem:[%s325 + $0x24] sm:$0xff]
    %v333 = vld [vmem:[%s325 + $0x2c] sm:$0xf]
    %v334 = vld [vmem:[%s325 + $0x30] sm:$0xff]
    %v335 = vld [vmem:[%s325 + $0x38] sm:$0xf]
    %v336 = vld [vmem:[%s325 + $0x3c] sm:$0xff]
    %v337 = vld [vmem:[%s325 + $0x44] sm:$0xf]
    %v338 = vld [vmem:[%s325 + $0x48] sm:$0xff]
    %v339 = vld [vmem:[%s325 + $0x50] sm:$0xf]
    %v340 = vld [vmem:[%s325 + $0x54] sm:$0xff]
    %v341 = vld [vmem:[%s325 + $0x5c] sm:$0xf]
    %v342 = vld [vmem:[%s325 + $0x60] sm:$0xff]
    %v343 = vld [vmem:[%s325 + $0x68] sm:$0xf]
    %v344 = vld [vmem:[%s325 + $0x6c] sm:$0xff]
    %v345 = vld [vmem:[%s325 + $0x74] sm:$0xf]
    %v346 = vld [vmem:[%s325 + $0x78] sm:$0xff]
    %v347 = vld [vmem:[%s325 + $0x80] sm:$0xf]
    %v348 = vld [vmem:[%s325 + $0x84] sm:$0xff]
    %v349 = vld [vmem:[%s325 + $0x8c] sm:$0xf]
    %v350 = vld [vmem:[%s325 + $0x90] sm:$0xff]
    %v351 = vld [vmem:[%s325 + $0x98] sm:$0xf]
    %v352 = vld [vmem:[%s325 + $0x9c] sm:$0xff]
    %v353 = vld [vmem:[%s325 + $0xa4] sm:$0xf]
    %v354 = vld [vmem:[%s325 + $0xa8] sm:$0xff]
    %v355 = vld [vmem:[%s325 + $0xb0] sm:$0xf]
    %v356 = vld [vmem:[%s325 + $0xb4] sm:$0xff]
    %v357 = vld [vmem:[%s325 + $0xbc] sm:$0xf]
    %v390 = vunpack.c.l.b16 %v326
    %v391 = vunpack.c.h.b16 %v326
    %v392 = vunpack.c.l.b16 %v327
    %v393 = vunpack.c.l.b16 %v328
    %v394 = vunpack.c.h.b16 %v328
    %v395 = vunpack.c.l.b16 %v329
    %v396 = vunpack.c.l.b16 %v330
    %v397 = vunpack.c.h.b16 %v330
    %v398 = vunpack.c.l.b16 %v331
    %v399 = vunpack.c.l.b16 %v332
    %v400 = vunpack.c.h.b16 %v332
    %v401 = vunpack.c.l.b16 %v333
    %v402 = vunpack.c.l.b16 %v334
    %v403 = vunpack.c.h.b16 %v334
    %v404 = vunpack.c.l.b16 %v335
    %v405 = vunpack.c.l.b16 %v336
    %v406 = vunpack.c.h.b16 %v336
    %v407 = vunpack.c.l.b16 %v337
    %v408 = vunpack.c.l.b16 %v338
    %v409 = vunpack.c.h.b16 %v338
    %v410 = vunpack.c.l.b16 %v339
    %v411 = vunpack.c.l.b16 %v340
    %v412 = vunpack.c.h.b16 %v340
    %v413 = vunpack.c.l.b16 %v341
    %v414 = vunpack.c.l.b16 %v342
    %v415 = vunpack.c.h.b16 %v342
    %v416 = vunpack.c.l.b16 %v343
    %v417 = vunpack.c.l.b16 %v344
    %v418 = vunpack.c.h.b16 %v344
    %v419 = vunpack.c.l.b16 %v345
    %v420 = vunpack.c.l.b16 %v346
    %v421 = vunpack.c.h.b16 %v346
    %v422 = vunpack.c.l.b16 %v347
    %v423 = vunpack.c.l.b16 %v348
    %v424 = vunpack.c.h.b16 %v348
    %v425 = vunpack.c.l.b16 %v349
    %v426 = vunpack.c.l.b16 %v350
    %v427 = vunpack.c.h.b16 %v350
    %v428 = vunpack.c.l.b16 %v351
    %v429 = vunpack.c.l.b16 %v352
    %v430 = vunpack.c.h.b16 %v352
    %v431 = vunpack.c.l.b16 %v353
    %v432 = vunpack.c.l.b16 %v354
    %v433 = vunpack.c.h.b16 %v354
    %v434 = vunpack.c.l.b16 %v355
    %v435 = vunpack.c.l.b16 %v356
    %v436 = vunpack.c.h.b16 %v356
    %v437 = vunpack.c.l.b16 %v357
    %v438 = vpack.c.b16 %v393, %v390
    %v439 = vpack.c.b16 %v394, %v391
    %v440 = vpack.c.b16 %v395, %v392
    %v441 = vpack.c.b16 %v399, %v396
    %v442 = vpack.c.b16 %v400, %v397
    %v443 = vpack.c.b16 %v401, %v398
    %v444 = vpack.c.b16 %v405, %v402
    %v445 = vpack.c.b16 %v406, %v403
    %v446 = vpack.c.b16 %v407, %v404
    %v447 = vpack.c.b16 %v411, %v408
    %v448 = vpack.c.b16 %v412, %v409
    %v449 = vpack.c.b16 %v413, %v410
    %v450 = vpack.c.b16 %v417, %v414
    %v451 = vpack.c.b16 %v418, %v415
    %v452 = vpack.c.b16 %v419, %v416
    %v453 = vpack.c.b16 %v423, %v420
    %v454 = vpack.c.b16 %v424, %v421
    %v455 = vpack.c.b16 %v425, %v422
    %v456 = vpack.c.b16 %v429, %v426
    %v457 = vpack.c.b16 %v430, %v427
    %v458 = vpack.c.b16 %v431, %v428
    %v459 = vpack.c.b16 %v435, %v432
    %v460 = vpack.c.b16 %v436, %v433
    %v461 = vpack.c.b16 %v437, %v434
    %486 = vmatprep.subr.bf16.mxu0 %v460
    %487 = vmatpush1.bf16.msra.mxu0 %v459
    %488 = vmatprep.subr.bf16.mxu0 %v457
    %489 = vmatpush1.bf16.msra.mxu0 %v456
    %490 = vmatprep.subr.bf16.mxu0 %v454
    %491 = vmatpush1.bf16.msra.mxu0 %v453
    %492 = vmatprep.subr.bf16.mxu0 %v451
    %493 = vmatpush1.bf16.msra.mxu0 %v450
    %494 = vmatprep.subr.bf16.mxu0 %v448
    %495 = vmatpush1.bf16.msra.mxu0 %v447
    %496 = vmatprep.subr.bf16.mxu0 %v445
    %497 = vmatpush1.bf16.msra.mxu0 %v444
    %498 = vmatprep.subr.bf16.mxu0 %v442
    %499 = vmatpush1.bf16.msra.mxu0 %v441
    %500 = vmatprep.subr.bf16.mxu0 %v439
    %501 = vmatpush1.bf16.msra.mxu0 %v438
    %502 = vmatprep.subr.bf16.mxu0 0
    %503 = vmatpush2.bf16.msra.mxu0 0
    %504 = vmatprep.subr.bf16.mxu0 0
    %505 = vmatpush2.bf16.msra.mxu0 0
    %506 = vmatprep.subr.bf16.mxu0 0
    %507 = vmatpush2.bf16.msra.mxu0 0
    %508 = vmatprep.subr.bf16.mxu0 0
    %509 = vmatpush2.bf16.msra.mxu0 0
    %510 = vmatprep.subr.bf16.mxu0 0
    %511 = vmatpush2.bf16.msra.mxu0 0
    %512 = vmatprep.subr.bf16.mxu0 0
    %513 = vmatpush2.bf16.msra.mxu0 0
    %514 = vmatprep.subr.bf16.mxu0 0
    %515 = vmatpush2.bf16.msra.mxu0 0
    %516 = vmatprep.subr.bf16.mxu0 0
    %517 = vmatpush2.bf16.msra.mxu0 0
    %518 = vmatprep.mubr.bf16.mxu0 0
    %519 = vmatmul.mubr.bf16.gmra.mxu0 %v291
    %v520 = vpop.f32.mrf.mxu0
    %v521 = vadd.f32 0.0, %v520
    %v522 = vpop.f32.mrf.mxu0
    %v523 = vadd.f32 0.0, %v522
    %v524 = vpop.f32.mrf.mxu0
    %v525 = vadd.f32 0.0, %v524
    %v526 = vpop.f32.mrf.mxu0
    %v527 = vadd.f32 0.0, %v526
    %528 = vmatprep.mubr.bf16.mxu0 0
    %529 = vmatmul.mubr.bf16.gmra.mxu0 %v292
    %v530 = vpop.f32.mrf.mxu0
    %v531 = vadd.f32 0.0, %v530
    %v532 = vpop.f32.mrf.mxu0
    %v533 = vadd.f32 0.0, %v532
    %v534 = vpop.f32.mrf.mxu0
    %v535 = vadd.f32 0.0, %v534
    %v536 = vpop.f32.mrf.mxu0
    %v537 = vadd.f32 0.0, %v536
    %538 = vdwg.mxu0
    %539 = vmatprep.subr.bf16.mxu0 0
    %540 = vmatpush1.bf16.msra.mxu0 %v461
    %541 = vmatprep.subr.bf16.mxu0 0
    %542 = vmatpush1.bf16.msra.mxu0 %v458
    %543 = vmatprep.subr.bf16.mxu0 0
    %544 = vmatpush1.bf16.msra.mxu0 %v455
    %545 = vmatprep.subr.bf16.mxu0 0
    %546 = vmatpush1.bf16.msra.mxu0 %v452
    %547 = vmatprep.subr.bf16.mxu0 0
    %548 = vmatpush1.bf16.msra.mxu0 %v449
    %549 = vmatprep.subr.bf16.mxu0 0
    %550 = vmatpush1.bf16.msra.mxu0 %v446
    %551 = vmatprep.subr.bf16.mxu0 0
    %552 = vmatpush1.bf16.msra.mxu0 %v443
    %553 = vmatprep.subr.bf16.mxu0 0
    %554 = vmatpush1.bf16.msra.mxu0 %v440
    %555 = vmatprep.subr.bf16.mxu0 0
    %556 = vmatpush2.bf16.msra.mxu0 0
    %557 = vmatprep.subr.bf16.mxu0 0
    %558 = vmatpush2.bf16.msra.mxu0 0
    %559 = vmatprep.subr.bf16.mxu0 0
    %560 = vmatpush2.bf16.msra.mxu0 0
    %561 = vmatprep.subr.bf16.mxu0 0
    %562 = vmatpush2.bf16.msra.mxu0 0
    %563 = vmatprep.subr.bf16.mxu0 0
    %564 = vmatpush2.bf16.msra.mxu0 0
    %565 = vmatprep.subr.bf16.mxu0 0
    %566 = vmatpush2.bf16.msra.mxu0 0
    %567 = vmatprep.subr.bf16.mxu0 0
    %568 = vmatpush2.bf16.msra.mxu0 0
    %569 = vmatprep.subr.bf16.mxu0 0
    %570 = vmatpush2.bf16.msra.mxu0 0
    %571 = vmatprep.mubr.bf16.mxu0 0
    %572 = vmatmul.mubr.bf16.gmra.mxu0 %v291
    %v573 = vpop.f32.mrf.mxu0
    %v574 = vadd.f32 0.0, %v573
    %v575 = vpop.f32.mrf.mxu0
    %v576 = vpop.f32.mrf.mxu0
    %v577 = vadd.f32 0.0, %v576
    %v578 = vpop.f32.mrf.mxu0
    %579 = vmatprep.mubr.bf16.mxu0 0
    %580 = vmatmul.mubr.bf16.gmra.mxu0 %v292
    %v581 = vpop.f32.mrf.mxu0
    %v582 = vadd.f32 0.0, %v581
    %v583 = vpop.f32.mrf.mxu0
    %v584 = vpop.f32.mrf.mxu0
    %v585 = vadd.f32 0.0, %v584
    %v586 = vpop.f32.mrf.mxu0
    %587 = vdwg.mxu0
    %v620 = vunpack.c.l.b16 %v293
    %v621 = vunpack.c.h.b16 %v293
    %v622 = vunpack.c.l.b16 %v294
    %v623 = vunpack.c.l.b16 %v295
    %v624 = vunpack.c.h.b16 %v295
    %v625 = vunpack.c.l.b16 %v296
    %v626 = vunpack.c.l.b16 %v297
    %v627 = vunpack.c.h.b16 %v297
    %v628 = vunpack.c.l.b16 %v298
    %v629 = vunpack.c.l.b16 %v299
    %v630 = vunpack.c.h.b16 %v299
    %v631 = vunpack.c.l.b16 %v300
    %v632 = vunpack.c.l.b16 %v301
    %v633 = vunpack.c.h.b16 %v301
    %v634 = vunpack.c.l.b16 %v302
    %v635 = vunpack.c.l.b16 %v303
    %v636 = vunpack.c.h.b16 %v303
    %v637 = vunpack.c.l.b16 %v304
    %v638 = vunpack.c.l.b16 %v305
    %v639 = vunpack.c.h.b16 %v305
    %v640 = vunpack.c.l.b16 %v306
    %v641 = vunpack.c.l.b16 %v307
    %v642 = vunpack.c.h.b16 %v307
    %v643 = vunpack.c.l.b16 %v308
    %v644 = vunpack.c.l.b16 %v309
    %v645 = vunpack.c.h.b16 %v309
    %v646 = vunpack.c.l.b16 %v310
    %v647 = vunpack.c.l.b16 %v311
    %v648 = vunpack.c.h.b16 %v311
    %v649 = vunpack.c.l.b16 %v312
    %v650 = vunpack.c.l.b16 %v313
    %v651 = vunpack.c.h.b16 %v313
    %v652 = vunpack.c.l.b16 %v314
    %v653 = vunpack.c.l.b16 %v315
    %v654 = vunpack.c.h.b16 %v315
    %v655 = vunpack.c.l.b16 %v316
    %v656 = vunpack.c.l.b16 %v317
    %v657 = vunpack.c.h.b16 %v317
    %v658 = vunpack.c.l.b16 %v318
    %v659 = vunpack.c.l.b16 %v319
    %v660 = vunpack.c.h.b16 %v319
    %v661 = vunpack.c.l.b16 %v320
    %v662 = vunpack.c.l.b16 %v321
    %v663 = vunpack.c.h.b16 %v321
    %v664 = vunpack.c.l.b16 %v322
    %v665 = vunpack.c.l.b16 %v323
    %v666 = vunpack.c.h.b16 %v323
    %v667 = vunpack.c.l.b16 %v324
    %v668 = vpack.c.b16 %v623, %v620
    %v669 = vpack.c.b16 %v624, %v621
    %v670 = vpack.c.b16 %v625, %v622
    %v671 = vpack.c.b16 %v629, %v626
    %v672 = vpack.c.b16 %v630, %v627
    %v673 = vpack.c.b16 %v631, %v628
    %v674 = vpack.c.b16 %v635, %v632
    %v675 = vpack.c.b16 %v636, %v633
    %v676 = vpack.c.b16 %v637, %v634
    %v677 = vpack.c.b16 %v641, %v638
    %v678 = vpack.c.b16 %v642, %v639
    %v679 = vpack.c.b16 %v643, %v640
    %v680 = vpack.c.b16 %v647, %v644
    %v681 = vpack.c.b16 %v648, %v645
    %v682 = vpack.c.b16 %v649, %v646
    %v683 = vpack.c.b16 %v653, %v650
    %v684 = vpack.c.b16 %v654, %v651
    %v685 = vpack.c.b16 %v655, %v652
    %v686 = vpack.c.b16 %v659, %v656
    %v687 = vpack.c.b16 %v660, %v657
    %v688 = vpack.c.b16 %v661, %v658
    %v689 = vpack.c.b16 %v665, %v662
    %v690 = vpack.c.b16 %v666, %v663
    %v691 = vpack.c.b16 %v667, %v664
    %716 = vmatprep.subr.bf16.mxu0 %v690
    %717 = vmatpush1.bf16.msra.mxu0 %v689
    %718 = vmatprep.subr.bf16.mxu0 %v687
    %719 = vmatpush1.bf16.msra.mxu0 %v686
    %720 = vmatprep.subr.bf16.mxu0 %v684
    %721 = vmatpush1.bf16.msra.mxu0 %v683
    %722 = vmatprep.subr.bf16.mxu0 %v681
    %723 = vmatpush1.bf16.msra.mxu0 %v680
    %724 = vmatprep.subr.bf16.mxu0 %v678
    %725 = vmatpush1.bf16.msra.mxu0 %v677
    %726 = vmatprep.subr.bf16.mxu0 %v675
    %727 = vmatpush1.bf16.msra.mxu0 %v674
    %728 = vmatprep.subr.bf16.mxu0 %v672
    %729 = vmatpush1.bf16.msra.mxu0 %v671
    %730 = vmatprep.subr.bf16.mxu0 %v669
    %731 = vmatpush1.bf16.msra.mxu0 %v668
    %732 = vmatprep.subr.bf16.mxu0 0
    %733 = vmatpush2.bf16.msra.mxu0 0
    %734 = vmatprep.subr.bf16.mxu0 0
    %735 = vmatpush2.bf16.msra.mxu0 0
    %736 = vmatprep.subr.bf16.mxu0 0
    %737 = vmatpush2.bf16.msra.mxu0 0
    %738 = vmatprep.subr.bf16.mxu0 0
    %739 = vmatpush2.bf16.msra.mxu0 0
    %740 = vmatprep.subr.bf16.mxu0 0
    %741 = vmatpush2.bf16.msra.mxu0 0
    %742 = vmatprep.subr.bf16.mxu0 0
    %743 = vmatpush2.bf16.msra.mxu0 0
    %744 = vmatprep.subr.bf16.mxu0 0
    %745 = vmatpush2.bf16.msra.mxu0 0
    %746 = vmatprep.subr.bf16.mxu0 0
    %747 = vmatpush2.bf16.msra.mxu0 0
    %748 = vmatprep.mubr.bf16.mxu0 0
    %749 = vmatmul.mubr.bf16.gmra.mxu0 %v281
    %v750 = vpop.f32.mrf.mxu0
    %v751 = vadd.f32 %v521, %v750
    %v752 = vpop.f32.mrf.mxu0
    %v753 = vadd.f32 %v523, %v752
    %v754 = vpop.f32.mrf.mxu0
    %v755 = vadd.f32 %v525, %v754
    %v756 = vpop.f32.mrf.mxu0
    %v757 = vadd.f32 %v527, %v756
    %758 = vmatprep.mubr.bf16.mxu0 0
    %759 = vmatmul.mubr.bf16.gmra.mxu0 %v282
    %v760 = vpop.f32.mrf.mxu0
    %v761 = vadd.f32 %v531, %v760
    %v762 = vpop.f32.mrf.mxu0
    %v763 = vadd.f32 %v533, %v762
    %v764 = vpop.f32.mrf.mxu0
    %v765 = vadd.f32 %v535, %v764
    %v766 = vpop.f32.mrf.mxu0
    %v767 = vadd.f32 %v537, %v766
    %768 = vdwg.mxu0
    %769 = vmatprep.subr.bf16.mxu0 0
    %770 = vmatpush1.bf16.msra.mxu0 %v691
    %771 = vmatprep.subr.bf16.mxu0 0
    %772 = vmatpush1.bf16.msra.mxu0 %v688
    %773 = vmatprep.subr.bf16.mxu0 0
    %774 = vmatpush1.bf16.msra.mxu0 %v685
    %775 = vmatprep.subr.bf16.mxu0 0
    %776 = vmatpush1.bf16.msra.mxu0 %v682
    %777 = vmatprep.subr.bf16.mxu0 0
    %778 = vmatpush1.bf16.msra.mxu0 %v679
    %779 = vmatprep.subr.bf16.mxu0 0
    %780 = vmatpush1.bf16.msra.mxu0 %v676
    %781 = vmatprep.subr.bf16.mxu0 0
    %782 = vmatpush1.bf16.msra.mxu0 %v673
    %783 = vmatprep.subr.bf16.mxu0 0
    %784 = vmatpush1.bf16.msra.mxu0 %v670
    %785 = vmatprep.subr.bf16.mxu0 0
    %786 = vmatpush2.bf16.msra.mxu0 0
    %787 = vmatprep.subr.bf16.mxu0 0
    %788 = vmatpush2.bf16.msra.mxu0 0
    %789 = vmatprep.subr.bf16.mxu0 0
    %790 = vmatpush2.bf16.msra.mxu0 0
    %791 = vmatprep.subr.bf16.mxu0 0
    %792 = vmatpush2.bf16.msra.mxu0 0
    %793 = vmatprep.subr.bf16.mxu0 0
    %794 = vmatpush2.bf16.msra.mxu0 0
    %795 = vmatprep.subr.bf16.mxu0 0
    %796 = vmatpush2.bf16.msra.mxu0 0
    %797 = vmatprep.subr.bf16.mxu0 0
    %798 = vmatpush2.bf16.msra.mxu0 0
    %799 = vmatprep.subr.bf16.mxu0 0
    %800 = vmatpush2.bf16.msra.mxu0 0
    %801 = vmatprep.mubr.bf16.mxu0 0
    %802 = vmatmul.mubr.bf16.gmra.mxu0 %v281
    %v803 = vpop.f32.mrf.mxu0
    %v804 = vadd.f32 %v574, %v803
    %v805 = vpop.f32.mrf.mxu0
    %v806 = vpop.f32.mrf.mxu0
    %v807 = vadd.f32 %v577, %v806
    %v808 = vpop.f32.mrf.mxu0
    %809 = vmatprep.mubr.bf16.mxu0 0
    %810 = vmatmul.mubr.bf16.gmra.mxu0 %v282
    %v811 = vpop.f32.mrf.mxu0
    %v812 = vadd.f32 %v582, %v811
    %v813 = vpop.f32.mrf.mxu0
    %v814 = vpop.f32.mrf.mxu0
    %v815 = vadd.f32 %v585, %v814
    %v816 = vpop.f32.mrf.mxu0
    %817 = vdwg.mxu0
    %v818 = vld [vmem:[#allocation9] sm:$0x7]
    %v820 = vlaneseq
    %v821 = vshrl.u32 %v820, 7
    %v822 = vsub.s32 0, %v821
    %v823 = vrot.slane %v818, %v822
    %v824 = vlaneseq
    %v825 = vshrl.u32 %v824, 7
    %v826 = vsub.s32 1, %v825
    %v827 = vrot.slane %v818, %v826
    %v828 = vlaneseq
    %v829 = vshrl.u32 %v828, 7
    %v830 = vsub.s32 2, %v829
    %v831 = vrot.slane %v818, %v830
    %v835 = vadd.f32 %v751, %v823
    %v836 = vadd.f32 %v753, %v827
    %v837 = vadd.f32 %v804, %v831
    %v838 = vadd.f32 %v755, %v823
    %v839 = vadd.f32 %v757, %v827
    %v840 = vadd.f32 %v807, %v831
    %v841 = vadd.f32 %v761, %v823
    %v842 = vadd.f32 %v763, %v827
    %v843 = vadd.f32 %v812, %v831
    %v844 = vadd.f32 %v765, %v823
    %v845 = vadd.f32 %v767, %v827
    %v846 = vadd.f32 %v815, %v831
    %847 = vst [vmem:[#allocation2] sm:$0xff] %v835
    %848 = vst [vmem:[#allocation2 + $0x8] sm:$0xff] %v836
    %849 = vst [vmem:[#allocation2 + $0x10] sm:$0xff] %v837
    %850 = vst [vmem:[#allocation2 + $0x18] sm:$0xff] %v838
    %851 = vst [vmem:[#allocation2 + $0x20] sm:$0xff] %v839
    %852 = vst [vmem:[#allocation2 + $0x28] sm:$0xff] %v840
    %853 = vst [vmem:[#allocation2 + $0x30] sm:$0xff] %v841
    %854 = vst [vmem:[#allocation2 + $0x38] sm:$0xff] %v842
    %855 = vst [vmem:[#allocation2 + $0x40] sm:$0xff] %v843
    %856 = vst [vmem:[#allocation2 + $0x48] sm:$0xff] %v844
    %857 = vst [vmem:[#allocation2 + $0x50] sm:$0xff] %v845
    %858 = vst [vmem:[#allocation2 + $0x58] sm:$0xff] %v846
    %v859 = vld [vmem:[#allocation10] sm:$0x1]
    %v860 = vld [vmem:[%s0] sm:$0xff]
    %s861 = smul.u32 0, 3
    %s862 = smul.addr %s861, 8
    %s863 = scalar_lea.vmem [#allocation2], %s862
    %v864 = vld [vmem:[%s863] sm:$0xff]
    %v865 = vld [vmem:[%s863 + $0x8] sm:$0xff]
    %v866 = vld [vmem:[%s863 + $0x10] sm:$0xff]
    %v867 = vpack.c.bf16 %v860, %v860
    %v868 = vld [vmem:[#allocation7] sm:$0xff]
    %v869 = vld [vmem:[#allocation7 + $0x8] sm:$0xf]
    %v870 = vld [vmem:[#allocation7 + $0xc] sm:$0xff]
    %v871 = vld [vmem:[#allocation7 + $0x14] sm:$0xf]
    %v872 = vld [vmem:[#allocation7 + $0x18] sm:$0xff]
    %v873 = vld [vmem:[#allocation7 + $0x20] sm:$0xf]
    %v874 = vld [vmem:[#allocation7 + $0x24] sm:$0xff]
    %v875 = vld [vmem:[#allocation7 + $0x2c] sm:$0xf]
    %v876 = vld [vmem:[#allocation7 + $0x30] sm:$0xff]
    %v877 = vld [vmem:[#allocation7 + $0x38] sm:$0xf]
    %v878 = vld [vmem:[#allocation7 + $0x3c] sm:$0xff]
    %v879 = vld [vmem:[#allocation7 + $0x44] sm:$0xf]
    %v880 = vld [vmem:[#allocation7 + $0x48] sm:$0xff]
    %v881 = vld [vmem:[#allocation7 + $0x50] sm:$0xf]
    %v882 = vld [vmem:[#allocation7 + $0x54] sm:$0xff]
    %v883 = vld [vmem:[#allocation7 + $0x5c] sm:$0xf]
    %v884 = vld [vmem:[#allocation7 + $0x60] sm:$0xff]
    %v885 = vld [vmem:[#allocation7 + $0x68] sm:$0xf]
    %v886 = vld [vmem:[#allocation7 + $0x6c] sm:$0xff]
    %v887 = vld [vmem:[#allocation7 + $0x74] sm:$0xf]
    %v888 = vld [vmem:[#allocation7 + $0x78] sm:$0xff]
    %v889 = vld [vmem:[#allocation7 + $0x80] sm:$0xf]
    %v890 = vld [vmem:[#allocation7 + $0x84] sm:$0xff]
    %v891 = vld [vmem:[#allocation7 + $0x8c] sm:$0xf]
    %v892 = vld [vmem:[#allocation7 + $0x90] sm:$0xff]
    %v893 = vld [vmem:[#allocation7 + $0x98] sm:$0xf]
    %v894 = vld [vmem:[#allocation7 + $0x9c] sm:$0xff]
    %v895 = vld [vmem:[#allocation7 + $0xa4] sm:$0xf]
    %v896 = vld [vmem:[#allocation7 + $0xa8] sm:$0xff]
    %v897 = vld [vmem:[#allocation7 + $0xb0] sm:$0xf]
    %v898 = vld [vmem:[#allocation7 + $0xb4] sm:$0xff]
    %v899 = vld [vmem:[#allocation7 + $0xbc] sm:$0xf]
    %v932 = vunpack.c.l.b16 %v868
    %v933 = vunpack.c.h.b16 %v868
    %v934 = vunpack.c.l.b16 %v869
    %v935 = vunpack.c.l.b16 %v870
    %v936 = vunpack.c.h.b16 %v870
    %v937 = vunpack.c.l.b16 %v871
    %v938 = vunpack.c.l.b16 %v872
    %v939 = vunpack.c.h.b16 %v872
    %v940 = vunpack.c.l.b16 %v873
    %v941 = vunpack.c.l.b16 %v874
    %v942 = vunpack.c.h.b16 %v874
    %v943 = vunpack.c.l.b16 %v875
    %v944 = vunpack.c.l.b16 %v876
    %v945 = vunpack.c.h.b16 %v876
    %v946 = vunpack.c.l.b16 %v877
    %v947 = vunpack.c.l.b16 %v878
    %v948 = vunpack.c.h.b16 %v878
    %v949 = vunpack.c.l.b16 %v879
    %v950 = vunpack.c.l.b16 %v880
    %v951 = vunpack.c.h.b16 %v880
    %v952 = vunpack.c.l.b16 %v881
    %v953 = vunpack.c.l.b16 %v882
    %v954 = vunpack.c.h.b16 %v882
    %v955 = vunpack.c.l.b16 %v883
    %v956 = vunpack.c.l.b16 %v884
    %v957 = vunpack.c.h.b16 %v884
    %v958 = vunpack.c.l.b16 %v885
    %v959 = vunpack.c.l.b16 %v886
    %v960 = vunpack.c.h.b16 %v886
    %v961 = vunpack.c.l.b16 %v887
    %v962 = vunpack.c.l.b16 %v888
    %v963 = vunpack.c.h.b16 %v888
    %v964 = vunpack.c.l.b16 %v889
    %v965 = vunpack.c.l.b16 %v890
    %v966 = vunpack.c.h.b16 %v890
    %v967 = vunpack.c.l.b16 %v891
    %v968 = vunpack.c.l.b16 %v892
    %v969 = vunpack.c.h.b16 %v892
    %v970 = vunpack.c.l.b16 %v893
    %v971 = vunpack.c.l.b16 %v894
    %v972 = vunpack.c.h.b16 %v894
    %v973 = vunpack.c.l.b16 %v895
    %v974 = vunpack.c.l.b16 %v896
    %v975 = vunpack.c.h.b16 %v896
    %v976 = vunpack.c.l.b16 %v897
    %v977 = vunpack.c.l.b16 %v898
    %v978 = vunpack.c.h.b16 %v898
    %v979 = vunpack.c.l.b16 %v899
    %v980 = vpack.c.b16 %v935, %v932
    %v981 = vpack.c.b16 %v936, %v933
    %v982 = vpack.c.b16 %v937, %v934
    %v983 = vpack.c.b16 %v941, %v938
    %v984 = vpack.c.b16 %v942, %v939
    %v985 = vpack.c.b16 %v943, %v940
    %v986 = vpack.c.b16 %v947, %v944
    %v987 = vpack.c.b16 %v948, %v945
    %v988 = vpack.c.b16 %v949, %v946
    %v989 = vpack.c.b16 %v953, %v950
    %v990 = vpack.c.b16 %v954, %v951
    %v991 = vpack.c.b16 %v955, %v952
    %v992 = vpack.c.b16 %v959, %v956
    %v993 = vpack.c.b16 %v960, %v957
    %v994 = vpack.c.b16 %v961, %v958
    %v995 = vpack.c.b16 %v965, %v962
    %v996 = vpack.c.b16 %v966, %v963
    %v997 = vpack.c.b16 %v967, %v964
    %v998 = vpack.c.b16 %v971, %v968
    %v999 = vpack.c.b16 %v972, %v969
    %v1000 = vpack.c.b16 %v973, %v970
    %v1001 = vpack.c.b16 %v977, %v974
    %v1002 = vpack.c.b16 %v978, %v975
    %v1003 = vpack.c.b16 %v979, %v976
    %1028 = vmatprep.subr.bf16.mxu0 %v1002
    %1029 = vmatpush1.bf16.msra.mxu0 %v1001
    %1030 = vmatprep.subr.bf16.mxu0 %v999
    %1031 = vmatpush1.bf16.msra.mxu0 %v998
    %1032 = vmatprep.subr.bf16.mxu0 %v996
    %1033 = vmatpush1.bf16.msra.mxu0 %v995
    %1034 = vmatprep.subr.bf16.mxu0 %v993
    %1035 = vmatpush1.bf16.msra.mxu0 %v992
    %1036 = vmatprep.subr.bf16.mxu0 %v990
    %1037 = vmatpush1.bf16.msra.mxu0 %v989
    %1038 = vmatprep.subr.bf16.mxu0 %v987
    %1039 = vmatpush1.bf16.msra.mxu0 %v986
    %1040 = vmatprep.subr.bf16.mxu0 %v984
    %1041 = vmatpush1.bf16.msra.mxu0 %v983
    %1042 = vmatprep.subr.bf16.mxu0 %v981
    %1043 = vmatpush1.bf16.msra.mxu0 %v980
    %1044 = vmatprep.subr.bf16.mxu0 0
    %1045 = vmatpush2.bf16.msra.mxu0 0
    %1046 = vmatprep.subr.bf16.mxu0 0
    %1047 = vmatpush2.bf16.msra.mxu0 0
    %1048 = vmatprep.subr.bf16.mxu0 0
    %1049 = vmatpush2.bf16.msra.mxu0 0
    %1050 = vmatprep.subr.bf16.mxu0 0
    %1051 = vmatpush2.bf16.msra.mxu0 0
    %1052 = vmatprep.subr.bf16.mxu0 0
    %1053 = vmatpush2.bf16.msra.mxu0 0
    %1054 = vmatprep.subr.bf16.mxu0 0
    %1055 = vmatpush2.bf16.msra.mxu0 0
    %1056 = vmatprep.subr.bf16.mxu0 0
    %1057 = vmatpush2.bf16.msra.mxu0 0
    %1058 = vmatprep.subr.bf16.mxu0 0
    %1059 = vmatpush2.bf16.msra.mxu0 0
    %1060 = vmatprep.mubr.bf16.mxu0 0
    %1061 = vmatmul.mubr.bf16.gmra.mxu0 %v867
    %v1062 = vpop.f32.mrf.mxu0
    %v1063 = vadd.f32 0.0, %v1062
    %v1064 = vpop.f32.mrf.mxu0
    %v1065 = vadd.f32 0.0, %v1064
    %v1066 = vpop.f32.mrf.mxu0
    %v1067 = vpop.f32.mrf.mxu0
    %1068 = vdwg.mxu0
    %1069 = vmatprep.subr.bf16.mxu0 0
    %1070 = vmatpush1.bf16.msra.mxu0 %v1003
    %1071 = vmatprep.subr.bf16.mxu0 0
    %1072 = vmatpush1.bf16.msra.mxu0 %v1000
    %1073 = vmatprep.subr.bf16.mxu0 0
    %1074 = vmatpush1.bf16.msra.mxu0 %v997
    %1075 = vmatprep.subr.bf16.mxu0 0
    %1076 = vmatpush1.bf16.msra.mxu0 %v994
    %1077 = vmatprep.subr.bf16.mxu0 0
    %1078 = vmatpush1.bf16.msra.mxu0 %v991
    %1079 = vmatprep.subr.bf16.mxu0 0
    %1080 = vmatpush1.bf16.msra.mxu0 %v988
    %1081 = vmatprep.subr.bf16.mxu0 0
    %1082 = vmatpush1.bf16.msra.mxu0 %v985
    %1083 = vmatprep.subr.bf16.mxu0 0
    %1084 = vmatpush1.bf16.msra.mxu0 %v982
    %1085 = vmatprep.subr.bf16.mxu0 0
    %1086 = vmatpush2.bf16.msra.mxu0 0
    %1087 = vmatprep.subr.bf16.mxu0 0
    %1088 = vmatpush2.bf16.msra.mxu0 0
    %1089 = vmatprep.subr.bf16.mxu0 0
    %1090 = vmatpush2.bf16.msra.mxu0 0
    %1091 = vmatprep.subr.bf16.mxu0 0
    %1092 = vmatpush2.bf16.msra.mxu0 0
    %1093 = vmatprep.subr.bf16.mxu0 0
    %1094 = vmatpush2.bf16.msra.mxu0 0
    %1095 = vmatprep.subr.bf16.mxu0 0
    %1096 = vmatpush2.bf16.msra.mxu0 0
    %1097 = vmatprep.subr.bf16.mxu0 0
    %1098 = vmatpush2.bf16.msra.mxu0 0
    %1099 = vmatprep.subr.bf16.mxu0 0
    %1100 = vmatpush2.bf16.msra.mxu0 0
    %1101 = vmatprep.mubr.bf16.mxu0 0
    %1102 = vmatmul.mubr.bf16.gmra.mxu0 %v867
    %v1103 = vpop.f32.mrf.mxu0
    %v1104 = vadd.f32 0.0, %v1103
    %v1105 = vpop.f32.mrf.mxu0
    %v1106 = vpop.f32.mrf.mxu0
    %v1107 = vpop.f32.mrf.mxu0
    %1108 = vdwg.mxu0
    %v1109 = vadd.f32 %v864, %v1063
    %v1110 = vadd.f32 %v865, %v1065
    %v1111 = vxor.u32 %v1109, 2147483648
    %v1112 = vxor.u32 %v1110, 2147483648
    %v1113 = vmul.f32 %v1111, 1.442695
    %v1114 = vpow.pop %v1113
    %v1115 = vmul.f32 %v1112, 1.442695
    %v1116 = vpow.pop %v1115
    %v1117 = vadd.f32 %v1114, 1.0
    %v1118 = vadd.f32 %v1116, 1.0
    %v1119 = vrcp.pop %v1117
    %v1120 = vmul.f32 1.0, %v1119
    %v1121 = vrcp.pop %v1118
    %v1122 = vmul.f32 1.0, %v1121
    %v1124 = vlaneseq
    %v1125 = vshrl.u32 %v1124, 7
    %v1126 = vsub.s32 0, %v1125
    %v1127 = vrot.slane %v859, %v1126
    %v1129 = vadd.f32 %v1104, %v1127
    %v1130 = vmul.f32 %v1120, %v1129
    %v1131 = vadd.f32 %v866, %v1130
    %v1132 = vtanh.pop %v1131
    %v1133 = vsub.f32 1.0, %v1122
    %v1134 = vmul.f32 %v1133, %v1132
    %v1135 = vmul.f32 %v1122, %v860
    %v1136 = vadd.f32 %v1134, %v1135
    %v1137 = vpack.c.bf16 %v1136, %v1136
    %1138 = vst [vmem:[#allocation3] sm:$0xf] %v1137
    %s1139 = smul.u32 1, 3
    %s1140 = smul.addr %s1139, 8
    %s1141 = scalar_lea.vmem [#allocation2], %s1140
    %v1142 = vld [vmem:[%s1141] sm:$0xff]
    %v1143 = vld [vmem:[%s1141 + $0x8] sm:$0xff]
    %v1144 = vld [vmem:[%s1141 + $0x10] sm:$0xff]
    %v1145 = vld [vmem:[#allocation7] sm:$0xff]
    %v1146 = vld [vmem:[#allocation7 + $0x8] sm:$0xf]
    %v1147 = vld [vmem:[#allocation7 + $0xc] sm:$0xff]
    %v1148 = vld [vmem:[#allocation7 + $0x14] sm:$0xf]
    %v1149 = vld [vmem:[#allocation7 + $0x18] sm:$0xff]
    %v1150 = vld [vmem:[#allocation7 + $0x20] sm:$0xf]
    %v1151 = vld [vmem:[#allocation7 + $0x24] sm:$0xff]
    %v1152 = vld [vmem:[#allocation7 + $0x2c] sm:$0xf]
    %v1153 = vld [vmem:[#allocation7 + $0x30] sm:$0xff]
    %v1154 = vld [vmem:[#allocation7 + $0x38] sm:$0xf]
    %v1155 = vld [vmem:[#allocation7 + $0x3c] sm:$0xff]
    %v1156 = vld [vmem:[#allocation7 + $0x44] sm:$0xf]
    %v1157 = vld [vmem:[#allocation7 + $0x48] sm:$0xff]
    %v1158 = vld [vmem:[#allocation7 + $0x50] sm:$0xf]
    %v1159 = vld [vmem:[#allocation7 + $0x54] sm:$0xff]
    %v1160 = vld [vmem:[#allocation7 + $0x5c] sm:$0xf]
    %v1161 = vld [vmem:[#allocation7 + $0x60] sm:$0xff]
    %v1162 = vld [vmem:[#allocation7 + $0x68] sm:$0xf]
    %v1163 = vld [vmem:[#allocation7 + $0x6c] sm:$0xff]
    %v1164 = vld [vmem:[#allocation7 + $0x74] sm:$0xf]
    %v1165 = vld [vmem:[#allocation7 + $0x78] sm:$0xff]
    %v1166 = vld [vmem:[#allocation7 + $0x80] sm:$0xf]
    %v1167 = vld [vmem:[#allocation7 + $0x84] sm:$0xff]
    %v1168 = vld [vmem:[#allocation7 + $0x8c] sm:$0xf]
    %v1169 = vld [vmem:[#allocation7 + $0x90] sm:$0xff]
    %v1170 = vld [vmem:[#allocation7 + $0x98] sm:$0xf]
    %v1171 = vld [vmem:[#allocation7 + $0x9c] sm:$0xff]
    %v1172 = vld [vmem:[#allocation7 + $0xa4] sm:$0xf]
    %v1173 = vld [vmem:[#allocation7 + $0xa8] sm:$0xff]
    %v1174 = vld [vmem:[#allocation7 + $0xb0] sm:$0xf]
    %v1175 = vld [vmem:[#allocation7 + $0xb4] sm:$0xff]
    %v1176 = vld [vmem:[#allocation7 + $0xbc] sm:$0xf]
    %v1209 = vunpack.c.l.b16 %v1145
    %v1210 = vunpack.c.h.b16 %v1145
    %v1211 = vunpack.c.l.b16 %v1146
    %v1212 = vunpack.c.l.b16 %v1147
    %v1213 = vunpack.c.h.b16 %v1147
    %v1214 = vunpack.c.l.b16 %v1148
    %v1215 = vunpack.c.l.b16 %v1149
    %v1216 = vunpack.c.h.b16 %v1149
    %v1217 = vunpack.c.l.b16 %v1150
    %v1218 = vunpack.c.l.b16 %v1151
    %v1219 = vunpack.c.h.b16 %v1151
    %v1220 = vunpack.c.l.b16 %v1152
    %v1221 = vunpack.c.l.b16 %v1153
    %v1222 = vunpack.c.h.b16 %v1153
    %v1223 = vunpack.c.l.b16 %v1154
    %v1224 = vunpack.c.l.b16 %v1155
    %v1225 = vunpack.c.h.b16 %v1155
    %v1226 = vunpack.c.l.b16 %v1156
    %v1227 = vunpack.c.l.b16 %v1157
    %v1228 = vunpack.c.h.b16 %v1157
    %v1229 = vunpack.c.l.b16 %v1158
    %v1230 = vunpack.c.l.b16 %v1159
    %v1231 = vunpack.c.h.b16 %v1159
    %v1232 = vunpack.c.l.b16 %v1160
    %v1233 = vunpack.c.l.b16 %v1161
    %v1234 = vunpack.c.h.b16 %v1161
    %v1235 = vunpack.c.l.b16 %v1162
    %v1236 = vunpack.c.l.b16 %v1163
    %v1237 = vunpack.c.h.b16 %v1163
    %v1238 = vunpack.c.l.b16 %v1164
    %v1239 = vunpack.c.l.b16 %v1165
    %v1240 = vunpack.c.h.b16 %v1165
    %v1241 = vunpack.c.l.b16 %v1166
    %v1242 = vunpack.c.l.b16 %v1167
    %v1243 = vunpack.c.h.b16 %v1167
    %v1244 = vunpack.c.l.b16 %v1168
    %v1245 = vunpack.c.l.b16 %v1169
    %v1246 = vunpack.c.h.b16 %v1169
    %v1247 = vunpack.c.l.b16 %v1170
    %v1248 = vunpack.c.l.b16 %v1171
    %v1249 = vunpack.c.h.b16 %v1171
    %v1250 = vunpack.c.l.b16 %v1172
    %v1251 = vunpack.c.l.b16 %v1173
    %v1252 = vunpack.c.h.b16 %v1173
    %v1253 = vunpack.c.l.b16 %v1174
    %v1254 = vunpack.c.l.b16 %v1175
    %v1255 = vunpack.c.h.b16 %v1175
    %v1256 = vunpack.c.l.b16 %v1176
    %v1257 = vpack.c.b16 %v1212, %v1209
    %v1258 = vpack.c.b16 %v1213, %v1210
    %v1259 = vpack.c.b16 %v1214, %v1211
    %v1260 = vpack.c.b16 %v1218, %v1215
    %v1261 = vpack.c.b16 %v1219, %v1216
    %v1262 = vpack.c.b16 %v1220, %v1217
    %v1263 = vpack.c.b16 %v1224, %v1221
    %v1264 = vpack.c.b16 %v1225, %v1222
    %v1265 = vpack.c.b16 %v1226, %v1223
    %v1266 = vpack.c.b16 %v1230, %v1227
    %v1267 = vpack.c.b16 %v1231, %v1228
    %v1268 = vpack.c.b16 %v1232, %v1229
    %v1269 = vpack.c.b16 %v1236, %v1233
    %v1270 = vpack.c.b16 %v1237, %v1234
    %v1271 = vpack.c.b16 %v1238, %v1235
    %v1272 = vpack.c.b16 %v1242, %v1239
    %v1273 = vpack.c.b16 %v1243, %v1240
    %v1274 = vpack.c.b16 %v1244, %v1241
    %v1275 = vpack.c.b16 %v1248, %v1245
    %v1276 = vpack.c.b16 %v1249, %v1246
    %v1277 = vpack.c.b16 %v1250, %v1247
    %v1278 = vpack.c.b16 %v1254, %v1251
    %v1279 = vpack.c.b16 %v1255, %v1252
    %v1280 = vpack.c.b16 %v1256, %v1253
    %1305 = vmatprep.subr.bf16.mxu0 %v1279
    %1306 = vmatpush1.bf16.msra.mxu0 %v1278
    %1307 = vmatprep.subr.bf16.mxu0 %v1276
    %1308 = vmatpush1.bf16.msra.mxu0 %v1275
    %1309 = vmatprep.subr.bf16.mxu0 %v1273
    %1310 = vmatpush1.bf16.msra.mxu0 %v1272
    %1311 = vmatprep.subr.bf16.mxu0 %v1270
    %1312 = vmatpush1.bf16.msra.mxu0 %v1269
    %1313 = vmatprep.subr.bf16.mxu0 %v1267
    %1314 = vmatpush1.bf16.msra.mxu0 %v1266
    %1315 = vmatprep.subr.bf16.mxu0 %v1264
    %1316 = vmatpush1.bf16.msra.mxu0 %v1263
    %1317 = vmatprep.subr.bf16.mxu0 %v1261
    %1318 = vmatpush1.bf16.msra.mxu0 %v1260
    %1319 = vmatprep.subr.bf16.mxu0 %v1258
    %1320 = vmatpush1.bf16.msra.mxu0 %v1257
    %1321 = vmatprep.subr.bf16.mxu0 0
    %1322 = vmatpush2.bf16.msra.mxu0 0
    %1323 = vmatprep.subr.bf16.mxu0 0
    %1324 = vmatpush2.bf16.msra.mxu0 0
    %1325 = vmatprep.subr.bf16.mxu0 0
    %1326 = vmatpush2.bf16.msra.mxu0 0
    %1327 = vmatprep.subr.bf16.mxu0 0
    %1328 = vmatpush2.bf16.msra.mxu0 0
    %1329 = vmatprep.subr.bf16.mxu0 0
    %1330 = vmatpush2.bf16.msra.mxu0 0
    %1331 = vmatprep.subr.bf16.mxu0 0
    %1332 = vmatpush2.bf16.msra.mxu0 0
    %1333 = vmatprep.subr.bf16.mxu0 0
    %1334 = vmatpush2.bf16.msra.mxu0 0
    %1335 = vmatprep.subr.bf16.mxu0 0
    %1336 = vmatpush2.bf16.msra.mxu0 0
    %1337 = vmatprep.mubr.bf16.mxu0 0
    %1338 = vmatmul.mubr.bf16.gmra.mxu0 %v1137
    %v1339 = vpop.f32.mrf.mxu0
    %v1340 = vadd.f32 0.0, %v1339
    %v1341 = vpop.f32.mrf.mxu0
    %v1342 = vadd.f32 0.0, %v1341
    %v1343 = vpop.f32.mrf.mxu0
    %v1344 = vpop.f32.mrf.mxu0
    %1345 = vdwg.mxu0
    %1346 = vmatprep.subr.bf16.mxu0 0
    %1347 = vmatpush1.bf16.msra.mxu0 %v1280
    %1348 = vmatprep.subr.bf16.mxu0 0
    %1349 = vmatpush1.bf16.msra.mxu0 %v1277
    %1350 = vmatprep.subr.bf16.mxu0 0
    %1351 = vmatpush1.bf16.msra.mxu0 %v1274
    %1352 = vmatprep.subr.bf16.mxu0 0
    %1353 = vmatpush1.bf16.msra.mxu0 %v1271
    %1354 = vmatprep.subr.bf16.mxu0 0
    %1355 = vmatpush1.bf16.msra.mxu0 %v1268
    %1356 = vmatprep.subr.bf16.mxu0 0
    %1357 = vmatpush1.bf16.msra.mxu0 %v1265
    %1358 = vmatprep.subr.bf16.mxu0 0
    %1359 = vmatpush1.bf16.msra.mxu0 %v1262
    %1360 = vmatprep.subr.bf16.mxu0 0
    %1361 = vmatpush1.bf16.msra.mxu0 %v1259
    %1362 = vmatprep.subr.bf16.mxu0 0
    %1363 = vmatpush2.bf16.msra.mxu0 0
    %1364 = vmatprep.subr.bf16.mxu0 0
    %1365 = vmatpush2.bf16.msra.mxu0 0
    %1366 = vmatprep.subr.bf16.mxu0 0
    %1367 = vmatpush2.bf16.msra.mxu0 0
    %1368 = vmatprep.subr.bf16.mxu0 0
    %1369 = vmatpush2.bf16.msra.mxu0 0
    %1370 = vmatprep.subr.bf16.mxu0 0
    %1371 = vmatpush2.bf16.msra.mxu0 0
    %1372 = vmatprep.subr.bf16.mxu0 0
    %1373 = vmatpush2.bf16.msra.mxu0 0
    %1374 = vmatprep.subr.bf16.mxu0 0
    %1375 = vmatpush2.bf16.msra.mxu0 0
    %1376 = vmatprep.subr.bf16.mxu0 0
    %1377 = vmatpush2.bf16.msra.mxu0 0
    %1378 = vmatprep.mubr.bf16.mxu0 0
    %1379 = vmatmul.mubr.bf16.gmra.mxu0 %v1137
    %v1380 = vpop.f32.mrf.mxu0
    %v1381 = vadd.f32 0.0, %v1380
    %v1382 = vpop.f32.mrf.mxu0
    %v1383 = vpop.f32.mrf.mxu0
    %v1384 = vpop.f32.mrf.mxu0
    %1385 = vdwg.mxu0
    %v1386 = vadd.f32 %v1142, %v1340
    %v1387 = vadd.f32 %v1143, %v1342
    %v1388 = vxor.u32 %v1386, 2147483648
    %v1389 = vxor.u32 %v1387, 2147483648
    %v1390 = vmul.f32 %v1388, 1.442695
    %v1391 = vpow.pop %v1390
    %v1392 = vmul.f32 %v1389, 1.442695
    %v1393 = vpow.pop %v1392
    %v1394 = vadd.f32 %v1391, 1.0
    %v1395 = vadd.f32 %v1393, 1.0
    %v1396 = vrcp.pop %v1394
    %v1397 = vmul.f32 1.0, %v1396
    %v1398 = vrcp.pop %v1395
    %v1399 = vmul.f32 1.0, %v1398
    %v1400 = vadd.f32 %v1381, %v1127
    %v1401 = vmul.f32 %v1397, %v1400
    %v1402 = vadd.f32 %v1144, %v1401
    %v1403 = vtanh.pop %v1402
    %v1404 = vsub.f32 1.0, %v1399
    %v1405 = vmul.f32 %v1404, %v1403
    %v1406 = vmul.f32 %v1399, %v1136
    %v1407 = vadd.f32 %v1405, %v1406
    %v1408 = vpack.c.bf16 %v1407, %v1407
    %s1409 = scalar_lea.vmem [#allocation3], 4
    %1410 = vst [vmem:[%s1409] sm:$0xf] %v1408
    %s1411 = smul.u32 2, 3
    %s1412 = smul.addr %s1411, 8
    %s1413 = scalar_lea.vmem [#allocation2], %s1412
    %v1414 = vld [vmem:[%s1413] sm:$0xff]
    %v1415 = vld [vmem:[%s1413 + $0x8] sm:$0xff]
    %v1416 = vld [vmem:[%s1413 + $0x10] sm:$0xff]
    %v1417 = vld [vmem:[#allocation7] sm:$0xff]
    %v1418 = vld [vmem:[#allocation7 + $0x8] sm:$0xf]
    %v1419 = vld [vmem:[#allocation7 + $0xc] sm:$0xff]
    %v1420 = vld [vmem:[#allocation7 + $0x14] sm:$0xf]
    %v1421 = vld [vmem:[#allocation7 + $0x18] sm:$0xff]
    %v1422 = vld [vmem:[#allocation7 + $0x20] sm:$0xf]
    %v1423 = vld [vmem:[#allocation7 + $0x24] sm:$0xff]
    %v1424 = vld [vmem:[#allocation7 + $0x2c] sm:$0xf]
    %v1425 = vld [vmem:[#allocation7 + $0x30] sm:$0xff]
    %v1426 = vld [vmem:[#allocation7 + $0x38] sm:$0xf]
    %v1427 = vld [vmem:[#allocation7 + $0x3c] sm:$0xff]
    %v1428 = vld [vmem:[#allocation7 + $0x44] sm:$0xf]
    %v1429 = vld [vmem:[#allocation7 + $0x48] sm:$0xff]
    %v1430 = vld [vmem:[#allocation7 + $0x50] sm:$0xf]
    %v1431 = vld [vmem:[#allocation7 + $0x54] sm:$0xff]
    %v1432 = vld [vmem:[#allocation7 + $0x5c] sm:$0xf]
    %v1433 = vld [vmem:[#allocation7 + $0x60] sm:$0xff]
    %v1434 = vld [vmem:[#allocation7 + $0x68] sm:$0xf]
    %v1435 = vld [vmem:[#allocation7 + $0x6c] sm:$0xff]
    %v1436 = vld [vmem:[#allocation7 + $0x74] sm:$0xf]
    %v1437 = vld [vmem:[#allocation7 + $0x78] sm:$0xff]
    %v1438 = vld [vmem:[#allocation7 + $0x80] sm:$0xf]
    %v1439 = vld [vmem:[#allocation7 + $0x84] sm:$0xff]
    %v1440 = vld [vmem:[#allocation7 + $0x8c] sm:$0xf]
    %v1441 = vld [vmem:[#allocation7 + $0x90] sm:$0xff]
    %v1442 = vld [vmem:[#allocation7 + $0x98] sm:$0xf]
    %v1443 = vld [vmem:[#allocation7 + $0x9c] sm:$0xff]
    %v1444 = vld [vmem:[#allocation7 + $0xa4] sm:$0xf]
    %v1445 = vld [vmem:[#allocation7 + $0xa8] sm:$0xff]
    %v1446 = vld [vmem:[#allocation7 + $0xb0] sm:$0xf]
    %v1447 = vld [vmem:[#allocation7 + $0xb4] sm:$0xff]
    %v1448 = vld [vmem:[#allocation7 + $0xbc] sm:$0xf]
    %v1481 = vunpack.c.l.b16 %v1417
    %v1482 = vunpack.c.h.b16 %v1417
    %v1483 = vunpack.c.l.b16 %v1418
    %v1484 = vunpack.c.l.b16 %v1419
    %v1485 = vunpack.c.h.b16 %v1419
    %v1486 = vunpack.c.l.b16 %v1420
    %v1487 = vunpack.c.l.b16 %v1421
    %v1488 = vunpack.c.h.b16 %v1421
    %v1489 = vunpack.c.l.b16 %v1422
    %v1490 = vunpack.c.l.b16 %v1423
    %v1491 = vunpack.c.h.b16 %v1423
    %v1492 = vunpack.c.l.b16 %v1424
    %v1493 = vunpack.c.l.b16 %v1425
    %v1494 = vunpack.c.h.b16 %v1425
    %v1495 = vunpack.c.l.b16 %v1426
    %v1496 = vunpack.c.l.b16 %v1427
    %v1497 = vunpack.c.h.b16 %v1427
    %v1498 = vunpack.c.l.b16 %v1428
    %v1499 = vunpack.c.l.b16 %v1429
    %v1500 = vunpack.c.h.b16 %v1429
    %v1501 = vunpack.c.l.b16 %v1430
    %v1502 = vunpack.c.l.b16 %v1431
    %v1503 = vunpack.c.h.b16 %v1431
    %v1504 = vunpack.c.l.b16 %v1432
    %v1505 = vunpack.c.l.b16 %v1433
    %v1506 = vunpack.c.h.b16 %v1433
    %v1507 = vunpack.c.l.b16 %v1434
    %v1508 = vunpack.c.l.b16 %v1435
    %v1509 = vunpack.c.h.b16 %v1435
    %v1510 = vunpack.c.l.b16 %v1436
    %v1511 = vunpack.c.l.b16 %v1437
    %v1512 = vunpack.c.h.b16 %v1437
    %v1513 = vunpack.c.l.b16 %v1438
    %v1514 = vunpack.c.l.b16 %v1439
    %v1515 = vunpack.c.h.b16 %v1439
    %v1516 = vunpack.c.l.b16 %v1440
    %v1517 = vunpack.c.l.b16 %v1441
    %v1518 = vunpack.c.h.b16 %v1441
    %v1519 = vunpack.c.l.b16 %v1442
    %v1520 = vunpack.c.l.b16 %v1443
    %v1521 = vunpack.c.h.b16 %v1443
    %v1522 = vunpack.c.l.b16 %v1444
    %v1523 = vunpack.c.l.b16 %v1445
    %v1524 = vunpack.c.h.b16 %v1445
    %v1525 = vunpack.c.l.b16 %v1446
    %v1526 = vunpack.c.l.b16 %v1447
    %v1527 = vunpack.c.h.b16 %v1447
    %v1528 = vunpack.c.l.b16 %v1448
    %v1529 = vpack.c.b16 %v1484, %v1481
    %v1530 = vpack.c.b16 %v1485, %v1482
    %v1531 = vpack.c.b16 %v1486, %v1483
    %v1532 = vpack.c.b16 %v1490, %v1487
    %v1533 = vpack.c.b16 %v1491, %v1488
    %v1534 = vpack.c.b16 %v1492, %v1489
    %v1535 = vpack.c.b16 %v1496, %v1493
    %v1536 = vpack.c.b16 %v1497, %v1494
    %v1537 = vpack.c.b16 %v1498, %v1495
    %v1538 = vpack.c.b16 %v1502, %v1499
    %v1539 = vpack.c.b16 %v1503, %v1500
    %v1540 = vpack.c.b16 %v1504, %v1501
    %v1541 = vpack.c.b16 %v1508, %v1505
    %v1542 = vpack.c.b16 %v1509, %v1506
    %v1543 = vpack.c.b16 %v1510, %v1507
    %v1544 = vpack.c.b16 %v1514, %v1511
    %v1545 = vpack.c.b16 %v1515, %v1512
    %v1546 = vpack.c.b16 %v1516, %v1513
    %v1547 = vpack.c.b16 %v1520, %v1517
    %v1548 = vpack.c.b16 %v1521, %v1518
    %v1549 = vpack.c.b16 %v1522, %v1519
    %v1550 = vpack.c.b16 %v1526, %v1523
    %v1551 = vpack.c.b16 %v1527, %v1524
    %v1552 = vpack.c.b16 %v1528, %v1525
    %1577 = vmatprep.subr.bf16.mxu0 %v1551
    %1578 = vmatpush1.bf16.msra.mxu0 %v1550
    %1579 = vmatprep.subr.bf16.mxu0 %v1548
    %1580 = vmatpush1.bf16.msra.mxu0 %v1547
    %1581 = vmatprep.subr.bf16.mxu0 %v1545
    %1582 = vmatpush1.bf16.msra.mxu0 %v1544
    %1583 = vmatprep.subr.bf16.mxu0 %v1542
    %1584 = vmatpush1.bf16.msra.mxu0 %v1541
    %1585 = vmatprep.subr.bf16.mxu0 %v1539
    %1586 = vmatpush1.bf16.msra.mxu0 %v1538
    %1587 = vmatprep.subr.bf16.mxu0 %v1536
    %1588 = vmatpush1.bf16.msra.mxu0 %v1535
    %1589 = vmatprep.subr.bf16.mxu0 %v1533
    %1590 = vmatpush1.bf16.msra.mxu0 %v1532
    %1591 = vmatprep.subr.bf16.mxu0 %v1530
    %1592 = vmatpush1.bf16.msra.mxu0 %v1529
    %1593 = vmatprep.subr.bf16.mxu0 0
    %1594 = vmatpush2.bf16.msra.mxu0 0
    %1595 = vmatprep.subr.bf16.mxu0 0
    %1596 = vmatpush2.bf16.msra.mxu0 0
    %1597 = vmatprep.subr.bf16.mxu0 0
    %1598 = vmatpush2.bf16.msra.mxu0 0
    %1599 = vmatprep.subr.bf16.mxu0 0
    %1600 = vmatpush2.bf16.msra.mxu0 0
    %1601 = vmatprep.subr.bf16.mxu0 0
    %1602 = vmatpush2.bf16.msra.mxu0 0
    %1603 = vmatprep.subr.bf16.mxu0 0
    %1604 = vmatpush2.bf16.msra.mxu0 0
    %1605 = vmatprep.subr.bf16.mxu0 0
    %1606 = vmatpush2.bf16.msra.mxu0 0
    %1607 = vmatprep.subr.bf16.mxu0 0
    %1608 = vmatpush2.bf16.msra.mxu0 0
    %1609 = vmatprep.mubr.bf16.mxu0 0
    %1610 = vmatmul.mubr.bf16.gmra.mxu0 %v1408
    %v1611 = vpop.f32.mrf.mxu0
    %v1612 = vadd.f32 0.0, %v1611
    %v1613 = vpop.f32.mrf.mxu0
    %v1614 = vadd.f32 0.0, %v1613
    %v1615 = vpop.f32.mrf.mxu0
    %v1616 = vpop.f32.mrf.mxu0
    %1617 = vdwg.mxu0
    %1618 = vmatprep.subr.bf16.mxu0 0
    %1619 = vmatpush1.bf16.msra.mxu0 %v1552
    %1620 = vmatprep.subr.bf16.mxu0 0
    %1621 = vmatpush1.bf16.msra.mxu0 %v1549
    %1622 = vmatprep.subr.bf16.mxu0 0
    %1623 = vmatpush1.bf16.msra.mxu0 %v1546
    %1624 = vmatprep.subr.bf16.mxu0 0
    %1625 = vmatpush1.bf16.msra.mxu0 %v1543
    %1626 = vmatprep.subr.bf16.mxu0 0
    %1627 = vmatpush1.bf16.msra.mxu0 %v1540
    %1628 = vmatprep.subr.bf16.mxu0 0
    %1629 = vmatpush1.bf16.msra.mxu0 %v1537
    %1630 = vmatprep.subr.bf16.mxu0 0
    %1631 = vmatpush1.bf16.msra.mxu0 %v1534
    %1632 = vmatprep.subr.bf16.mxu0 0
    %1633 = vmatpush1.bf16.msra.mxu0 %v1531
    %1634 = vmatprep.subr.bf16.mxu0 0
    %1635 = vmatpush2.bf16.msra.mxu0 0
    %1636 = vmatprep.subr.bf16.mxu0 0
    %1637 = vmatpush2.bf16.msra.mxu0 0
    %1638 = vmatprep.subr.bf16.mxu0 0
    %1639 = vmatpush2.bf16.msra.mxu0 0
    %1640 = vmatprep.subr.bf16.mxu0 0
    %1641 = vmatpush2.bf16.msra.mxu0 0
    %1642 = vmatprep.subr.bf16.mxu0 0
    %1643 = vmatpush2.bf16.msra.mxu0 0
    %1644 = vmatprep.subr.bf16.mxu0 0
    %1645 = vmatpush2.bf16.msra.mxu0 0
    %1646 = vmatprep.subr.bf16.mxu0 0
    %1647 = vmatpush2.bf16.msra.mxu0 0
    %1648 = vmatprep.subr.bf16.mxu0 0
    %1649 = vmatpush2.bf16.msra.mxu0 0
    %1650 = vmatprep.mubr.bf16.mxu0 0
    %1651 = vmatmul.mubr.bf16.gmra.mxu0 %v1408
    %v1652 = vpop.f32.mrf.mxu0
    %v1653 = vadd.f32 0.0, %v1652
    %v1654 = vpop.f32.mrf.mxu0
    %v1655 = vpop.f32.mrf.mxu0
    %v1656 = vpop.f32.mrf.mxu0
    %1657 = vdwg.mxu0
    %v1658 = vadd.f32 %v1414, %v1612
    %v1659 = vadd.f32 %v1415, %v1614
    %v1660 = vxor.u32 %v1658, 2147483648
    %v1661 = vxor.u32 %v1659, 2147483648
    %v1662 = vmul.f32 %v1660, 1.442695
    %v1663 = vpow.pop %v1662
    %v1664 = vmul.f32 %v1661, 1.442695
    %v1665 = vpow.pop %v1664
    %v1666 = vadd.f32 %v1663, 1.0
    %v1667 = vadd.f32 %v1665, 1.0
    %v1668 = vrcp.pop %v1666
    %v1669 = vmul.f32 1.0, %v1668
    %v1670 = vrcp.pop %v1667
    %v1671 = vmul.f32 1.0, %v1670
    %v1672 = vadd.f32 %v1653, %v1127
    %v1673 = vmul.f32 %v1669, %v1672
    %v1674 = vadd.f32 %v1416, %v1673
    %v1675 = vtanh.pop %v1674
    %v1676 = vsub.f32 1.0, %v1671
    %v1677 = vmul.f32 %v1676, %v1675
    %v1678 = vmul.f32 %v1671, %v1407
    %v1679 = vadd.f32 %v1677, %v1678
    %v1680 = vpack.c.bf16 %v1679, %v1679
    %s1681 = scalar_lea.vmem [#allocation3], 8
    %1682 = vst [vmem:[%s1681] sm:$0xf] %v1680
    %s1683 = smul.u32 3, 3
    %s1684 = smul.addr %s1683, 8
    %s1685 = scalar_lea.vmem [#allocation2], %s1684
    %v1686 = vld [vmem:[%s1685] sm:$0xff]
    %v1687 = vld [vmem:[%s1685 + $0x8] sm:$0xff]
    %v1688 = vld [vmem:[%s1685 + $0x10] sm:$0xff]
    %v1689 = vld [vmem:[#allocation7] sm:$0xff]
    %v1690 = vld [vmem:[#allocation7 + $0x8] sm:$0xf]
    %v1691 = vld [vmem:[#allocation7 + $0xc] sm:$0xff]
    %v1692 = vld [vmem:[#allocation7 + $0x14] sm:$0xf]
    %v1693 = vld [vmem:[#allocation7 + $0x18] sm:$0xff]
    %v1694 = vld [vmem:[#allocation7 + $0x20] sm:$0xf]
    %v1695 = vld [vmem:[#allocation7 + $0x24] sm:$0xff]
    %v1696 = vld [vmem:[#allocation7 + $0x2c] sm:$0xf]
    %v1697 = vld [vmem:[#allocation7 + $0x30] sm:$0xff]
    %v1698 = vld [vmem:[#allocation7 + $0x38] sm:$0xf]
    %v1699 = vld [vmem:[#allocation7 + $0x3c] sm:$0xff]
    %v1700 = vld [vmem:[#allocation7 + $0x44] sm:$0xf]
    %v1701 = vld [vmem:[#allocation7 + $0x48] sm:$0xff]
    %v1702 = vld [vmem:[#allocation7 + $0x50] sm:$0xf]
    %v1703 = vld [vmem:[#allocation7 + $0x54] sm:$0xff]
    %v1704 = vld [vmem:[#allocation7 + $0x5c] sm:$0xf]
    %v1705 = vld [vmem:[#allocation7 + $0x60] sm:$0xff]
    %v1706 = vld [vmem:[#allocation7 + $0x68] sm:$0xf]
    %v1707 = vld [vmem:[#allocation7 + $0x6c] sm:$0xff]
    %v1708 = vld [vmem:[#allocation7 + $0x74] sm:$0xf]
    %v1709 = vld [vmem:[#allocation7 + $0x78] sm:$0xff]
    %v1710 = vld [vmem:[#allocation7 + $0x80] sm:$0xf]
    %v1711 = vld [vmem:[#allocation7 + $0x84] sm:$0xff]
    %v1712 = vld [vmem:[#allocation7 + $0x8c] sm:$0xf]
    %v1713 = vld [vmem:[#allocation7 + $0x90] sm:$0xff]
    %v1714 = vld [vmem:[#allocation7 + $0x98] sm:$0xf]
    %v1715 = vld [vmem:[#allocation7 + $0x9c] sm:$0xff]
    %v1716 = vld [vmem:[#allocation7 + $0xa4] sm:$0xf]
    %v1717 = vld [vmem:[#allocation7 + $0xa8] sm:$0xff]
    %v1718 = vld [vmem:[#allocation7 + $0xb0] sm:$0xf]
    %v1719 = vld [vmem:[#allocation7 + $0xb4] sm:$0xff]
    %v1720 = vld [vmem:[#allocation7 + $0xbc] sm:$0xf]
    %v1753 = vunpack.c.l.b16 %v1689
    %v1754 = vunpack.c.h.b16 %v1689
    %v1755 = vunpack.c.l.b16 %v1690
    %v1756 = vunpack.c.l.b16 %v1691
    %v1757 = vunpack.c.h.b16 %v1691
    %v1758 = vunpack.c.l.b16 %v1692
    %v1759 = vunpack.c.l.b16 %v1693
    %v1760 = vunpack.c.h.b16 %v1693
    %v1761 = vunpack.c.l.b16 %v1694
    %v1762 = vunpack.c.l.b16 %v1695
    %v1763 = vunpack.c.h.b16 %v1695
    %v1764 = vunpack.c.l.b16 %v1696
    %v1765 = vunpack.c.l.b16 %v1697
    %v1766 = vunpack.c.h.b16 %v1697
    %v1767 = vunpack.c.l.b16 %v1698
    %v1768 = vunpack.c.l.b16 %v1699
    %v1769 = vunpack.c.h.b16 %v1699
    %v1770 = vunpack.c.l.b16 %v1700
    %v1771 = vunpack.c.l.b16 %v1701
    %v1772 = vunpack.c.h.b16 %v1701
    %v1773 = vunpack.c.l.b16 %v1702
    %v1774 = vunpack.c.l.b16 %v1703
    %v1775 = vunpack.c.h.b16 %v1703
    %v1776 = vunpack.c.l.b16 %v1704
    %v1777 = vunpack.c.l.b16 %v1705
    %v1778 = vunpack.c.h.b16 %v1705
    %v1779 = vunpack.c.l.b16 %v1706
    %v1780 = vunpack.c.l.b16 %v1707
    %v1781 = vunpack.c.h.b16 %v1707
    %v1782 = vunpack.c.l.b16 %v1708
    %v1783 = vunpack.c.l.b16 %v1709
    %v1784 = vunpack.c.h.b16 %v1709
    %v1785 = vunpack.c.l.b16 %v1710
    %v1786 = vunpack.c.l.b16 %v1711
    %v1787 = vunpack.c.h.b16 %v1711
    %v1788 = vunpack.c.l.b16 %v1712
    %v1789 = vunpack.c.l.b16 %v1713
    %v1790 = vunpack.c.h.b16 %v1713
    %v1791 = vunpack.c.l.b16 %v1714
    %v1792 = vunpack.c.l.b16 %v1715
    %v1793 = vunpack.c.h.b16 %v1715
    %v1794 = vunpack.c.l.b16 %v1716
    %v1795 = vunpack.c.l.b16 %v1717
    %v1796 = vunpack.c.h.b16 %v1717
    %v1797 = vunpack.c.l.b16 %v1718
    %v1798 = vunpack.c.l.b16 %v1719
    %v1799 = vunpack.c.h.b16 %v1719
    %v1800 = vunpack.c.l.b16 %v1720
    %v1801 = vpack.c.b16 %v1756, %v1753
    %v1802 = vpack.c.b16 %v1757, %v1754
    %v1803 = vpack.c.b16 %v1758, %v1755
    %v1804 = vpack.c.b16 %v1762, %v1759
    %v1805 = vpack.c.b16 %v1763, %v1760
    %v1806 = vpack.c.b16 %v1764, %v1761
    %v1807 = vpack.c.b16 %v1768, %v1765
    %v1808 = vpack.c.b16 %v1769, %v1766
    %v1809 = vpack.c.b16 %v1770, %v1767
    %v1810 = vpack.c.b16 %v1774, %v1771
    %v1811 = vpack.c.b16 %v1775, %v1772
    %v1812 = vpack.c.b16 %v1776, %v1773
    %v1813 = vpack.c.b16 %v1780, %v1777
    %v1814 = vpack.c.b16 %v1781, %v1778
    %v1815 = vpack.c.b16 %v1782, %v1779
    %v1816 = vpack.c.b16 %v1786, %v1783
    %v1817 = vpack.c.b16 %v1787, %v1784
    %v1818 = vpack.c.b16 %v1788, %v1785
    %v1819 = vpack.c.b16 %v1792, %v1789
    %v1820 = vpack.c.b16 %v1793, %v1790
    %v1821 = vpack.c.b16 %v1794, %v1791
    %v1822 = vpack.c.b16 %v1798, %v1795
    %v1823 = vpack.c.b16 %v1799, %v1796
    %v1824 = vpack.c.b16 %v1800, %v1797
    %1849 = vmatprep.subr.bf16.mxu0 %v1823
    %1850 = vmatpush1.bf16.msra.mxu0 %v1822
    %1851 = vmatprep.subr.bf16.mxu0 %v1820
    %1852 = vmatpush1.bf16.msra.mxu0 %v1819
    %1853 = vmatprep.subr.bf16.mxu0 %v1817
    %1854 = vmatpush1.bf16.msra.mxu0 %v1816
    %1855 = vmatprep.subr.bf16.mxu0 %v1814
    %1856 = vmatpush1.bf16.msra.mxu0 %v1813
    %1857 = vmatprep.subr.bf16.mxu0 %v1811
    %1858 = vmatpush1.bf16.msra.mxu0 %v1810
    %1859 = vmatprep.subr.bf16.mxu0 %v1808
    %1860 = vmatpush1.bf16.msra.mxu0 %v1807
    %1861 = vmatprep.subr.bf16.mxu0 %v1805
    %1862 = vmatpush1.bf16.msra.mxu0 %v1804
    %1863 = vmatprep.subr.bf16.mxu0 %v1802
    %1864 = vmatpush1.bf16.msra.mxu0 %v1801
    %1865 = vmatprep.subr.bf16.mxu0 0
    %1866 = vmatpush2.bf16.msra.mxu0 0
    %1867 = vmatprep.subr.bf16.mxu0 0
    %1868 = vmatpush2.bf16.msra.mxu0 0
    %1869 = vmatprep.subr.bf16.mxu0 0
    %1870 = vmatpush2.bf16.msra.mxu0 0
    %1871 = vmatprep.subr.bf16.mxu0 0
    %1872 = vmatpush2.bf16.msra.mxu0 0
    %1873 = vmatprep.subr.bf16.mxu0 0
    %1874 = vmatpush2.bf16.msra.mxu0 0
    %1875 = vmatprep.subr.bf16.mxu0 0
    %1876 = vmatpush2.bf16.msra.mxu0 0
    %1877 = vmatprep.subr.bf16.mxu0 0
    %1878 = vmatpush2.bf16.msra.mxu0 0
    %1879 = vmatprep.subr.bf16.mxu0 0
    %1880 = vmatpush2.bf16.msra.mxu0 0
    %1881 = vmatprep.mubr.bf16.mxu0 0
    %1882 = vmatmul.mubr.bf16.gmra.mxu0 %v1680
    %v1883 = vpop.f32.mrf.mxu0
    %v1884 = vadd.f32 0.0, %v1883
    %v1885 = vpop.f32.mrf.mxu0
    %v1886 = vadd.f32 0.0, %v1885
    %v1887 = vpop.f32.mrf.mxu0
    %v1888 = vpop.f32.mrf.mxu0
    %1889 = vdwg.mxu0
    %1890 = vmatprep.subr.bf16.mxu0 0
    %1891 = vmatpush1.bf16.msra.mxu0 %v1824
    %1892 = vmatprep.subr.bf16.mxu0 0
    %1893 = vmatpush1.bf16.msra.mxu0 %v1821
    %1894 = vmatprep.subr.bf16.mxu0 0
    %1895 = vmatpush1.bf16.msra.mxu0 %v1818
    %1896 = vmatprep.subr.bf16.mxu0 0
    %1897 = vmatpush1.bf16.msra.mxu0 %v1815
    %1898 = vmatprep.subr.bf16.mxu0 0
    %1899 = vmatpush1.bf16.msra.mxu0 %v1812
    %1900 = vmatprep.subr.bf16.mxu0 0
    %1901 = vmatpush1.bf16.msra.mxu0 %v1809
    %1902 = vmatprep.subr.bf16.mxu0 0
    %1903 = vmatpush1.bf16.msra.mxu0 %v1806
    %1904 = vmatprep.subr.bf16.mxu0 0
    %1905 = vmatpush1.bf16.msra.mxu0 %v1803
    %1906 = vmatprep.subr.bf16.mxu0 0
    %1907 = vmatpush2.bf16.msra.mxu0 0
    %1908 = vmatprep.subr.bf16.mxu0 0
    %1909 = vmatpush2.bf16.msra.mxu0 0
    %1910 = vmatprep.subr.bf16.mxu0 0
    %1911 = vmatpush2.bf16.msra.mxu0 0
    %1912 = vmatprep.subr.bf16.mxu0 0
    %1913 = vmatpush2.bf16.msra.mxu0 0
    %1914 = vmatprep.subr.bf16.mxu0 0
    %1915 = vmatpush2.bf16.msra.mxu0 0
    %1916 = vmatprep.subr.bf16.mxu0 0
    %1917 = vmatpush2.bf16.msra.mxu0 0
    %1918 = vmatprep.subr.bf16.mxu0 0
    %1919 = vmatpush2.bf16.msra.mxu0 0
    %1920 = vmatprep.subr.bf16.mxu0 0
    %1921 = vmatpush2.bf16.msra.mxu0 0
    %1922 = vmatprep.mubr.bf16.mxu0 0
    %1923 = vmatmul.mubr.bf16.gmra.mxu0 %v1680
    %v1924 = vpop.f32.mrf.mxu0
    %v1925 = vadd.f32 0.0, %v1924
    %v1926 = vpop.f32.mrf.mxu0
    %v1927 = vpop.f32.mrf.mxu0
    %v1928 = vpop.f32.mrf.mxu0
    %1929 = vdwg.mxu0
    %v1930 = vadd.f32 %v1686, %v1884
    %v1931 = vadd.f32 %v1687, %v1886
    %v1932 = vxor.u32 %v1930, 2147483648
    %v1933 = vxor.u32 %v1931, 2147483648
    %v1934 = vmul.f32 %v1932, 1.442695
    %v1935 = vpow.pop %v1934
    %v1936 = vmul.f32 %v1933, 1.442695
    %v1937 = vpow.pop %v1936
    %v1938 = vadd.f32 %v1935, 1.0
    %v1939 = vadd.f32 %v1937, 1.0
    %v1940 = vrcp.pop %v1938
    %v1941 = vmul.f32 1.0, %v1940
    %v1942 = vrcp.pop %v1939
    %v1943 = vmul.f32 1.0, %v1942
    %v1944 = vadd.f32 %v1925, %v1127
    %v1945 = vmul.f32 %v1941, %v1944
    %v1946 = vadd.f32 %v1688, %v1945
    %v1947 = vtanh.pop %v1946
    %v1948 = vsub.f32 1.0, %v1943
    %v1949 = vmul.f32 %v1948, %v1947
    %v1950 = vmul.f32 %v1943, %v1679
    %v1951 = vadd.f32 %v1949, %v1950
    %v1952 = vpack.c.bf16 %v1951, %v1951
    %s1953 = scalar_lea.vmem [#allocation3], 12
    %1954 = vst [vmem:[%s1953] sm:$0xf] %v1952
    %1955 = vst [vmem:[%s16] sm:$0xff] %v1951
    %v1956 = vld [vmem:[#allocation3] sm:$0xf]
    %v1957 = vld [vmem:[#allocation3 + $0x4] sm:$0xf]
    %v1958 = vld [vmem:[#allocation3 + $0x8] sm:$0xf]
    %v1959 = vld [vmem:[#allocation3 + $0xc] sm:$0xf]
    %v1960 = vld [vmem:[#allocation12] sm:$0xff]
    %v1961 = vld [vmem:[#allocation12 + $0x8] sm:$0xf]
    %v1962 = vld [vmem:[#allocation12 + $0xc] sm:$0xff]
    %v1963 = vld [vmem:[#allocation12 + $0x14] sm:$0xf]
    %v1964 = vld [vmem:[#allocation12 + $0x18] sm:$0xff]
    %v1965 = vld [vmem:[#allocation12 + $0x20] sm:$0xf]
    %v1966 = vld [vmem:[#allocation12 + $0x24] sm:$0xff]
    %v1967 = vld [vmem:[#allocation12 + $0x2c] sm:$0xf]
    %v1968 = vld [vmem:[#allocation12 + $0x30] sm:$0xff]
    %v1969 = vld [vmem:[#allocation12 + $0x38] sm:$0xf]
    %v1970 = vld [vmem:[#allocation12 + $0x3c] sm:$0xff]
    %v1971 = vld [vmem:[#allocation12 + $0x44] sm:$0xf]
    %v1972 = vld [vmem:[#allocation12 + $0x48] sm:$0xff]
    %v1973 = vld [vmem:[#allocation12 + $0x50] sm:$0xf]
    %v1974 = vld [vmem:[#allocation12 + $0x54] sm:$0xff]
    %v1975 = vld [vmem:[#allocation12 + $0x5c] sm:$0xf]
    %v1976 = vld [vmem:[#allocation12 + $0x60] sm:$0xff]
    %v1977 = vld [vmem:[#allocation12 + $0x68] sm:$0xf]
    %v1978 = vld [vmem:[#allocation12 + $0x6c] sm:$0xff]
    %v1979 = vld [vmem:[#allocation12 + $0x74] sm:$0xf]
    %v1980 = vld [vmem:[#allocation12 + $0x78] sm:$0xff]
    %v1981 = vld [vmem:[#allocation12 + $0x80] sm:$0xf]
    %v1982 = vld [vmem:[#allocation12 + $0x84] sm:$0xff]
    %v1983 = vld [vmem:[#allocation12 + $0x8c] sm:$0xf]
    %v1984 = vld [vmem:[#allocation12 + $0x90] sm:$0xff]
    %v1985 = vld [vmem:[#allocation12 + $0x98] sm:$0xf]
    %v1986 = vld [vmem:[#allocation12 + $0x9c] sm:$0xff]
    %v1987 = vld [vmem:[#allocation12 + $0xa4] sm:$0xf]
    %v1988 = vld [vmem:[#allocation12 + $0xa8] sm:$0xff]
    %v1989 = vld [vmem:[#allocation12 + $0xb0] sm:$0xf]
    %v1990 = vld [vmem:[#allocation12 + $0xb4] sm:$0xff]
    %v1991 = vld [vmem:[#allocation12 + $0xbc] sm:$0xf]
    %v1992 = vld [vmem:[#allocation15] sm:$0x7]
    %v1994 = vlaneseq
    %v1995 = vshrl.u32 %v1994, 7
    %v1996 = vsub.s32 0, %v1995
    %v1997 = vrot.slane %v1992, %v1996
    %v1998 = vlaneseq
    %v1999 = vshrl.u32 %v1998, 7
    %v2000 = vsub.s32 1, %v1999
    %v2001 = vrot.slane %v1992, %v2000
    %v2002 = vlaneseq
    %v2003 = vshrl.u32 %v2002, 7
    %v2004 = vsub.s32 2, %v2003
    %v2005 = vrot.slane %v1992, %v2004
    %v2013 = vunpack.c.l.b16 %v1956
    %v2014 = vunpack.c.l.b16 %v1957
    %v2015 = vunpack.c.l.b16 %v1958
    %v2016 = vunpack.c.l.b16 %v1959
    %v2017 = vpack.c.b16 %v2014, %v2013
    %v2018 = vpack.c.b16 %v2016, %v2015
    %v2053 = vunpack.c.l.b16 %v1960
    %v2054 = vunpack.c.h.b16 %v1960
    %v2055 = vunpack.c.l.b16 %v1961
    %v2056 = vunpack.c.l.b16 %v1962
    %v2057 = vunpack.c.h.b16 %v1962
    %v2058 = vunpack.c.l.b16 %v1963
    %v2059 = vunpack.c.l.b16 %v1964
    %v2060 = vunpack.c.h.b16 %v1964
    %v2061 = vunpack.c.l.b16 %v1965
    %v2062 = vunpack.c.l.b16 %v1966
    %v2063 = vunpack.c.h.b16 %v1966
    %v2064 = vunpack.c.l.b16 %v1967
    %v2065 = vunpack.c.l.b16 %v1968
    %v2066 = vunpack.c.h.b16 %v1968
    %v2067 = vunpack.c.l.b16 %v1969
    %v2068 = vunpack.c.l.b16 %v1970
    %v2069 = vunpack.c.h.b16 %v1970
    %v2070 = vunpack.c.l.b16 %v1971
    %v2071 = vunpack.c.l.b16 %v1972
    %v2072 = vunpack.c.h.b16 %v1972
    %v2073 = vunpack.c.l.b16 %v1973
    %v2074 = vunpack.c.l.b16 %v1974
    %v2075 = vunpack.c.h.b16 %v1974
    %v2076 = vunpack.c.l.b16 %v1975
    %v2077 = vunpack.c.l.b16 %v1976
    %v2078 = vunpack.c.h.b16 %v1976
    %v2079 = vunpack.c.l.b16 %v1977
    %v2080 = vunpack.c.l.b16 %v1978
    %v2081 = vunpack.c.h.b16 %v1978
    %v2082 = vunpack.c.l.b16 %v1979
    %v2083 = vunpack.c.l.b16 %v1980
    %v2084 = vunpack.c.h.b16 %v1980
    %v2085 = vunpack.c.l.b16 %v1981
    %v2086 = vunpack.c.l.b16 %v1982
    %v2087 = vunpack.c.h.b16 %v1982
    %v2088 = vunpack.c.l.b16 %v1983
    %v2089 = vunpack.c.l.b16 %v1984
    %v2090 = vunpack.c.h.b16 %v1984
    %v2091 = vunpack.c.l.b16 %v1985
    %v2092 = vunpack.c.l.b16 %v1986
    %v2093 = vunpack.c.h.b16 %v1986
    %v2094 = vunpack.c.l.b16 %v1987
    %v2095 = vunpack.c.l.b16 %v1988
    %v2096 = vunpack.c.h.b16 %v1988
    %v2097 = vunpack.c.l.b16 %v1989
    %v2098 = vunpack.c.l.b16 %v1990
    %v2099 = vunpack.c.h.b16 %v1990
    %v2100 = vunpack.c.l.b16 %v1991
    %v2101 = vpack.c.b16 %v2056, %v2053
    %v2102 = vpack.c.b16 %v2057, %v2054
    %v2103 = vpack.c.b16 %v2058, %v2055
    %v2104 = vpack.c.b16 %v2062, %v2059
    %v2105 = vpack.c.b16 %v2063, %v2060
    %v2106 = vpack.c.b16 %v2064, %v2061
    %v2107 = vpack.c.b16 %v2068, %v2065
    %v2108 = vpack.c.b16 %v2069, %v2066
    %v2109 = vpack.c.b16 %v2070, %v2067
    %v2110 = vpack.c.b16 %v2074, %v2071
    %v2111 = vpack.c.b16 %v2075, %v2072
    %v2112 = vpack.c.b16 %v2076, %v2073
    %v2113 = vpack.c.b16 %v2080, %v2077
    %v2114 = vpack.c.b16 %v2081, %v2078
    %v2115 = vpack.c.b16 %v2082, %v2079
    %v2116 = vpack.c.b16 %v2086, %v2083
    %v2117 = vpack.c.b16 %v2087, %v2084
    %v2118 = vpack.c.b16 %v2088, %v2085
    %v2119 = vpack.c.b16 %v2092, %v2089
    %v2120 = vpack.c.b16 %v2093, %v2090
    %v2121 = vpack.c.b16 %v2094, %v2091
    %v2122 = vpack.c.b16 %v2098, %v2095
    %v2123 = vpack.c.b16 %v2099, %v2096
    %v2124 = vpack.c.b16 %v2100, %v2097
    %2149 = vmatprep.subr.bf16.mxu0 %v2123
    %2150 = vmatpush1.bf16.msra.mxu0 %v2122
    %2151 = vmatprep.subr.bf16.mxu0 %v2120
    %2152 = vmatpush1.bf16.msra.mxu0 %v2119
    %2153 = vmatprep.subr.bf16.mxu0 %v2117
    %2154 = vmatpush1.bf16.msra.mxu0 %v2116
    %2155 = vmatprep.subr.bf16.mxu0 %v2114
    %2156 = vmatpush1.bf16.msra.mxu0 %v2113
    %2157 = vmatprep.subr.bf16.mxu0 %v2111
    %2158 = vmatpush1.bf16.msra.mxu0 %v2110
    %2159 = vmatprep.subr.bf16.mxu0 %v2108
    %2160 = vmatpush1.bf16.msra.mxu0 %v2107
    %2161 = vmatprep.subr.bf16.mxu0 %v2105
    %2162 = vmatpush1.bf16.msra.mxu0 %v2104
    %2163 = vmatprep.subr.bf16.mxu0 %v2102
    %2164 = vmatpush1.bf16.msra.mxu0 %v2101
    %2165 = vmatprep.subr.bf16.mxu0 0
    %2166 = vmatpush2.bf16.msra.mxu0 0
    %2167 = vmatprep.subr.bf16.mxu0 0
    %2168 = vmatpush2.bf16.msra.mxu0 0
    %2169 = vmatprep.subr.bf16.mxu0 0
    %2170 = vmatpush2.bf16.msra.mxu0 0
    %2171 = vmatprep.subr.bf16.mxu0 0
    %2172 = vmatpush2.bf16.msra.mxu0 0
    %2173 = vmatprep.subr.bf16.mxu0 0
    %2174 = vmatpush2.bf16.msra.mxu0 0
    %2175 = vmatprep.subr.bf16.mxu0 0
    %2176 = vmatpush2.bf16.msra.mxu0 0
    %2177 = vmatprep.subr.bf16.mxu0 0
    %2178 = vmatpush2.bf16.msra.mxu0 0
    %2179 = vmatprep.subr.bf16.mxu0 0
    %2180 = vmatpush2.bf16.msra.mxu0 0
    %2181 = vmatprep.mubr.bf16.mxu0 0
    %2182 = vmatmul.mubr.bf16.gmra.mxu0 %v2017
    %v2183 = vpop.f32.mrf.mxu0
    %v2184 = vadd.f32 %v1997, %v2183
    %v2185 = vpop.f32.mrf.mxu0
    %v2186 = vadd.f32 %v2001, %v2185
    %v2187 = vpop.f32.mrf.mxu0
    %v2188 = vadd.f32 %v1997, %v2187
    %v2189 = vpop.f32.mrf.mxu0
    %v2190 = vadd.f32 %v2001, %v2189
    %2191 = vmatprep.mubr.bf16.mxu0 0
    %2192 = vmatmul.mubr.bf16.gmra.mxu0 %v2018
    %v2193 = vpop.f32.mrf.mxu0
    %v2194 = vadd.f32 %v1997, %v2193
    %v2195 = vpop.f32.mrf.mxu0
    %v2196 = vadd.f32 %v2001, %v2195
    %v2197 = vpop.f32.mrf.mxu0
    %v2198 = vadd.f32 %v1997, %v2197
    %v2199 = vpop.f32.mrf.mxu0
    %v2200 = vadd.f32 %v2001, %v2199
    %2201 = vdwg.mxu0
    %2202 = vmatprep.subr.bf16.mxu0 0
    %2203 = vmatpush1.bf16.msra.mxu0 %v2124
    %2204 = vmatprep.subr.bf16.mxu0 0
    %2205 = vmatpush1.bf16.msra.mxu0 %v2121
    %2206 = vmatprep.subr.bf16.mxu0 0
    %2207 = vmatpush1.bf16.msra.mxu0 %v2118
    %2208 = vmatprep.subr.bf16.mxu0 0
    %2209 = vmatpush1.bf16.msra.mxu0 %v2115
    %2210 = vmatprep.subr.bf16.mxu0 0
    %2211 = vmatpush1.bf16.msra.mxu0 %v2112
    %2212 = vmatprep.subr.bf16.mxu0 0
    %2213 = vmatpush1.bf16.msra.mxu0 %v2109
    %2214 = vmatprep.subr.bf16.mxu0 0
    %2215 = vmatpush1.bf16.msra.mxu0 %v2106
    %2216 = vmatprep.subr.bf16.mxu0 0
    %2217 = vmatpush1.bf16.msra.mxu0 %v2103
    %2218 = vmatprep.subr.bf16.mxu0 0
    %2219 = vmatpush2.bf16.msra.mxu0 0
    %2220 = vmatprep.subr.bf16.mxu0 0
    %2221 = vmatpush2.bf16.msra.mxu0 0
    %2222 = vmatprep.subr.bf16.mxu0 0
    %2223 = vmatpush2.bf16.msra.mxu0 0
    %2224 = vmatprep.subr.bf16.mxu0 0
    %2225 = vmatpush2.bf16.msra.mxu0 0
    %2226 = vmatprep.subr.bf16.mxu0 0
    %2227 = vmatpush2.bf16.msra.mxu0 0
    %2228 = vmatprep.subr.bf16.mxu0 0
    %2229 = vmatpush2.bf16.msra.mxu0 0
    %2230 = vmatprep.subr.bf16.mxu0 0
    %2231 = vmatpush2.bf16.msra.mxu0 0
    %2232 = vmatprep.subr.bf16.mxu0 0
    %2233 = vmatpush2.bf16.msra.mxu0 0
    %2234 = vmatprep.mubr.bf16.mxu0 0
    %2235 = vmatmul.mubr.bf16.gmra.mxu0 %v2017
    %v2236 = vpop.f32.mrf.mxu0
    %v2237 = vadd.f32 %v2005, %v2236
    %v2238 = vpop.f32.mrf.mxu0
    %v2239 = vpop.f32.mrf.mxu0
    %v2240 = vadd.f32 %v2005, %v2239
    %v2241 = vpop.f32.mrf.mxu0
    %2242 = vmatprep.mubr.bf16.mxu0 0
    %2243 = vmatmul.mubr.bf16.gmra.mxu0 %v2018
    %v2244 = vpop.f32.mrf.mxu0
    %v2245 = vadd.f32 %v2005, %v2244
    %v2246 = vpop.f32.mrf.mxu0
    %v2247 = vpop.f32.mrf.mxu0
    %v2248 = vadd.f32 %v2005, %v2247
    %v2249 = vpop.f32.mrf.mxu0
    %2250 = vdwg.mxu0
    %2251 = vst [vmem:[#allocation2] sm:$0xff] %v2184
    %2252 = vst [vmem:[#allocation2 + $0x8] sm:$0xff] %v2186
    %2253 = vst [vmem:[#allocation2 + $0x10] sm:$0xff] %v2237
    %2254 = vst [vmem:[#allocation2 + $0x18] sm:$0xff] %v2188
    %2255 = vst [vmem:[#allocation2 + $0x20] sm:$0xff] %v2190
    %2256 = vst [vmem:[#allocation2 + $0x28] sm:$0xff] %v2240
    %2257 = vst [vmem:[#allocation2 + $0x30] sm:$0xff] %v2194
    %2258 = vst [vmem:[#allocation2 + $0x38] sm:$0xff] %v2196
    %2259 = vst [vmem:[#allocation2 + $0x40] sm:$0xff] %v2245
    %2260 = vst [vmem:[#allocation2 + $0x48] sm:$0xff] %v2198
    %2261 = vst [vmem:[#allocation2 + $0x50] sm:$0xff] %v2200
    %2262 = vst [vmem:[#allocation2 + $0x58] sm:$0xff] %v2248
    %v2263 = vld [vmem:[#allocation16] sm:$0x1]
    %s2264 = scalar_lea.vmem %s0, 8
    %v2265 = vld [vmem:[%s2264] sm:$0xff]
    %v2266 = vld [vmem:[%s863] sm:$0xff]
    %v2267 = vld [vmem:[%s863 + $0x8] sm:$0xff]
    %v2268 = vld [vmem:[%s863 + $0x10] sm:$0xff]
    %v2269 = vpack.c.bf16 %v2265, %v2265
    %v2270 = vld [vmem:[#allocation13] sm:$0xff]
    %v2271 = vld [vmem:[#allocation13 + $0x8] sm:$0xf]
    %v2272 = vld [vmem:[#allocation13 + $0xc] sm:$0xff]
    %v2273 = vld [vmem:[#allocation13 + $0x14] sm:$0xf]
    %v2274 = vld [vmem:[#allocation13 + $0x18] sm:$0xff]
    %v2275 = vld [vmem:[#allocation13 + $0x20] sm:$0xf]
    %v2276 = vld [vmem:[#allocation13 + $0x24] sm:$0xff]
    %v2277 = vld [vmem:[#allocation13 + $0x2c] sm:$0xf]
    %v2278 = vld [vmem:[#allocation13 + $0x30] sm:$0xff]
    %v2279 = vld [vmem:[#allocation13 + $0x38] sm:$0xf]
    %v2280 = vld [vmem:[#allocation13 + $0x3c] sm:$0xff]
    %v2281 = vld [vmem:[#allocation13 + $0x44] sm:$0xf]
    %v2282 = vld [vmem:[#allocation13 + $0x48] sm:$0xff]
    %v2283 = vld [vmem:[#allocation13 + $0x50] sm:$0xf]
    %v2284 = vld [vmem:[#allocation13 + $0x54] sm:$0xff]
    %v2285 = vld [vmem:[#allocation13 + $0x5c] sm:$0xf]
    %v2286 = vld [vmem:[#allocation13 + $0x60] sm:$0xff]
    %v2287 = vld [vmem:[#allocation13 + $0x68] sm:$0xf]
    %v2288 = vld [vmem:[#allocation13 + $0x6c] sm:$0xff]
    %v2289 = vld [vmem:[#allocation13 + $0x74] sm:$0xf]
    %v2290 = vld [vmem:[#allocation13 + $0x78] sm:$0xff]
    %v2291 = vld [vmem:[#allocation13 + $0x80] sm:$0xf]
    %v2292 = vld [vmem:[#allocation13 + $0x84] sm:$0xff]
    %v2293 = vld [vmem:[#allocation13 + $0x8c] sm:$0xf]
    %v2294 = vld [vmem:[#allocation13 + $0x90] sm:$0xff]
    %v2295 = vld [vmem:[#allocation13 + $0x98] sm:$0xf]
    %v2296 = vld [vmem:[#allocation13 + $0x9c] sm:$0xff]
    %v2297 = vld [vmem:[#allocation13 + $0xa4] sm:$0xf]
    %v2298 = vld [vmem:[#allocation13 + $0xa8] sm:$0xff]
    %v2299 = vld [vmem:[#allocation13 + $0xb0] sm:$0xf]
    %v2300 = vld [vmem:[#allocation13 + $0xb4] sm:$0xff]
    %v2301 = vld [vmem:[#allocation13 + $0xbc] sm:$0xf]
    %v2334 = vunpack.c.l.b16 %v2270
    %v2335 = vunpack.c.h.b16 %v2270
    %v2336 = vunpack.c.l.b16 %v2271
    %v2337 = vunpack.c.l.b16 %v2272
    %v2338 = vunpack.c.h.b16 %v2272
    %v2339 = vunpack.c.l.b16 %v2273
    %v2340 = vunpack.c.l.b16 %v2274
    %v2341 = vunpack.c.h.b16 %v2274
    %v2342 = vunpack.c.l.b16 %v2275
    %v2343 = vunpack.c.l.b16 %v2276
    %v2344 = vunpack.c.h.b16 %v2276
    %v2345 = vunpack.c.l.b16 %v2277
    %v2346 = vunpack.c.l.b16 %v2278
    %v2347 = vunpack.c.h.b16 %v2278
    %v2348 = vunpack.c.l.b16 %v2279
    %v2349 = vunpack.c.l.b16 %v2280
    %v2350 = vunpack.c.h.b16 %v2280
    %v2351 = vunpack.c.l.b16 %v2281
    %v2352 = vunpack.c.l.b16 %v2282
    %v2353 = vunpack.c.h.b16 %v2282
    %v2354 = vunpack.c.l.b16 %v2283
    %v2355 = vunpack.c.l.b16 %v2284
    %v2356 = vunpack.c.h.b16 %v2284
    %v2357 = vunpack.c.l.b16 %v2285
    %v2358 = vunpack.c.l.b16 %v2286
    %v2359 = vunpack.c.h.b16 %v2286
    %v2360 = vunpack.c.l.b16 %v2287
    %v2361 = vunpack.c.l.b16 %v2288
    %v2362 = vunpack.c.h.b16 %v2288
    %v2363 = vunpack.c.l.b16 %v2289
    %v2364 = vunpack.c.l.b16 %v2290
    %v2365 = vunpack.c.h.b16 %v2290
    %v2366 = vunpack.c.l.b16 %v2291
    %v2367 = vunpack.c.l.b16 %v2292
    %v2368 = vunpack.c.h.b16 %v2292
    %v2369 = vunpack.c.l.b16 %v2293
    %v2370 = vunpack.c.l.b16 %v2294
    %v2371 = vunpack.c.h.b16 %v2294
    %v2372 = vunpack.c.l.b16 %v2295
    %v2373 = vunpack.c.l.b16 %v2296
    %v2374 = vunpack.c.h.b16 %v2296
    %v2375 = vunpack.c.l.b16 %v2297
    %v2376 = vunpack.c.l.b16 %v2298
    %v2377 = vunpack.c.h.b16 %v2298
    %v2378 = vunpack.c.l.b16 %v2299
    %v2379 = vunpack.c.l.b16 %v2300
    %v2380 = vunpack.c.h.b16 %v2300
    %v2381 = vunpack.c.l.b16 %v2301
    %v2382 = vpack.c.b16 %v2337, %v2334
    %v2383 = vpack.c.b16 %v2338, %v2335
    %v2384 = vpack.c.b16 %v2339, %v2336
    %v2385 = vpack.c.b16 %v2343, %v2340
    %v2386 = vpack.c.b16 %v2344, %v2341
    %v2387 = vpack.c.b16 %v2345, %v2342
    %v2388 = vpack.c.b16 %v2349, %v2346
    %v2389 = vpack.c.b16 %v2350, %v2347
    %v2390 = vpack.c.b16 %v2351, %v2348
    %v2391 = vpack.c.b16 %v2355, %v2352
    %v2392 = vpack.c.b16 %v2356, %v2353
    %v2393 = vpack.c.b16 %v2357, %v2354
    %v2394 = vpack.c.b16 %v2361, %v2358
    %v2395 = vpack.c.b16 %v2362, %v2359
    %v2396 = vpack.c.b16 %v2363, %v2360
    %v2397 = vpack.c.b16 %v2367, %v2364
    %v2398 = vpack.c.b16 %v2368, %v2365
    %v2399 = vpack.c.b16 %v2369, %v2366
    %v2400 = vpack.c.b16 %v2373, %v2370
    %v2401 = vpack.c.b16 %v2374, %v2371
    %v2402 = vpack.c.b16 %v2375, %v2372
    %v2403 = vpack.c.b16 %v2379, %v2376
    %v2404 = vpack.c.b16 %v2380, %v2377
    %v2405 = vpack.c.b16 %v2381, %v2378
    %2430 = vmatprep.subr.bf16.mxu0 %v2404
    %2431 = vmatpush1.bf16.msra.mxu0 %v2403
    %2432 = vmatprep.subr.bf16.mxu0 %v2401
    %2433 = vmatpush1.bf16.msra.mxu0 %v2400
    %2434 = vmatprep.subr.bf16.mxu0 %v2398
    %2435 = vmatpush1.bf16.msra.mxu0 %v2397
    %2436 = vmatprep.subr.bf16.mxu0 %v2395
    %2437 = vmatpush1.bf16.msra.mxu0 %v2394
    %2438 = vmatprep.subr.bf16.mxu0 %v2392
    %2439 = vmatpush1.bf16.msra.mxu0 %v2391
    %2440 = vmatprep.subr.bf16.mxu0 %v2389
    %2441 = vmatpush1.bf16.msra.mxu0 %v2388
    %2442 = vmatprep.subr.bf16.mxu0 %v2386
    %2443 = vmatpush1.bf16.msra.mxu0 %v2385
    %2444 = vmatprep.subr.bf16.mxu0 %v2383
    %2445 = vmatpush1.bf16.msra.mxu0 %v2382
    %2446 = vmatprep.subr.bf16.mxu0 0
    %2447 = vmatpush2.bf16.msra.mxu0 0
    %2448 = vmatprep.subr.bf16.mxu0 0
    %2449 = vmatpush2.bf16.msra.mxu0 0
    %2450 = vmatprep.subr.bf16.mxu0 0
    %2451 = vmatpush2.bf16.msra.mxu0 0
    %2452 = vmatprep.subr.bf16.mxu0 0
    %2453 = vmatpush2.bf16.msra.mxu0 0
    %2454 = vmatprep.subr.bf16.mxu0 0
    %2455 = vmatpush2.bf16.msra.mxu0 0
    %2456 = vmatprep.subr.bf16.mxu0 0
    %2457 = vmatpush2.bf16.msra.mxu0 0
    %2458 = vmatprep.subr.bf16.mxu0 0
    %2459 = vmatpush2.bf16.msra.mxu0 0
    %2460 = vmatprep.subr.bf16.mxu0 0
    %2461 = vmatpush2.bf16.msra.mxu0 0
    %2462 = vmatprep.mubr.bf16.mxu0 0
    %2463 = vmatmul.mubr.bf16.gmra.mxu0 %v2269
    %v2464 = vpop.f32.mrf.mxu0
    %v2465 = vadd.f32 0.0, %v2464
    %v2466 = vpop.f32.mrf.mxu0
    %v2467 = vadd.f32 0.0, %v2466
    %v2468 = vpop.f32.mrf.mxu0
    %v2469 = vpop.f32.mrf.mxu0
    %2470 = vdwg.mxu0
    %2471 = vmatprep.subr.bf16.mxu0 0
    %2472 = vmatpush1.bf16.msra.mxu0 %v2405
    %2473 = vmatprep.subr.bf16.mxu0 0
    %2474 = vmatpush1.bf16.msra.mxu0 %v2402
    %2475 = vmatprep.subr.bf16.mxu0 0
    %2476 = vmatpush1.bf16.msra.mxu0 %v2399
    %2477 = vmatprep.subr.bf16.mxu0 0
    %2478 = vmatpush1.bf16.msra.mxu0 %v2396
    %2479 = vmatprep.subr.bf16.mxu0 0
    %2480 = vmatpush1.bf16.msra.mxu0 %v2393
    %2481 = vmatprep.subr.bf16.mxu0 0
    %2482 = vmatpush1.bf16.msra.mxu0 %v2390
    %2483 = vmatprep.subr.bf16.mxu0 0
    %2484 = vmatpush1.bf16.msra.mxu0 %v2387
    %2485 = vmatprep.subr.bf16.mxu0 0
    %2486 = vmatpush1.bf16.msra.mxu0 %v2384
    %2487 = vmatprep.subr.bf16.mxu0 0
    %2488 = vmatpush2.bf16.msra.mxu0 0
    %2489 = vmatprep.subr.bf16.mxu0 0
    %2490 = vmatpush2.bf16.msra.mxu0 0
    %2491 = vmatprep.subr.bf16.mxu0 0
    %2492 = vmatpush2.bf16.msra.mxu0 0
    %2493 = vmatprep.subr.bf16.mxu0 0
    %2494 = vmatpush2.bf16.msra.mxu0 0
    %2495 = vmatprep.subr.bf16.mxu0 0
    %2496 = vmatpush2.bf16.msra.mxu0 0
    %2497 = vmatprep.subr.bf16.mxu0 0
    %2498 = vmatpush2.bf16.msra.mxu0 0
    %2499 = vmatprep.subr.bf16.mxu0 0
    %2500 = vmatpush2.bf16.msra.mxu0 0
    %2501 = vmatprep.subr.bf16.mxu0 0
    %2502 = vmatpush2.bf16.msra.mxu0 0
    %2503 = vmatprep.mubr.bf16.mxu0 0
    %2504 = vmatmul.mubr.bf16.gmra.mxu0 %v2269
    %v2505 = vpop.f32.mrf.mxu0
    %v2506 = vadd.f32 0.0, %v2505
    %v2507 = vpop.f32.mrf.mxu0
    %v2508 = vpop.f32.mrf.mxu0
    %v2509 = vpop.f32.mrf.mxu0
    %2510 = vdwg.mxu0
    %v2511 = vadd.f32 %v2266, %v2465
    %v2512 = vadd.f32 %v2267, %v2467
    %v2513 = vxor.u32 %v2511, 2147483648
    %v2514 = vxor.u32 %v2512, 2147483648
    %v2515 = vmul.f32 %v2513, 1.442695
    %v2516 = vpow.pop %v2515
    %v2517 = vmul.f32 %v2514, 1.442695
    %v2518 = vpow.pop %v2517
    %v2519 = vadd.f32 %v2516, 1.0
    %v2520 = vadd.f32 %v2518, 1.0
    %v2521 = vrcp.pop %v2519
    %v2522 = vmul.f32 1.0, %v2521
    %v2523 = vrcp.pop %v2520
    %v2524 = vmul.f32 1.0, %v2523
    %v2526 = vlaneseq
    %v2527 = vshrl.u32 %v2526, 7
    %v2528 = vsub.s32 0, %v2527
    %v2529 = vrot.slane %v2263, %v2528
    %v2531 = vadd.f32 %v2506, %v2529
    %v2532 = vmul.f32 %v2522, %v2531
    %v2533 = vadd.f32 %v2268, %v2532
    %v2534 = vtanh.pop %v2533
    %v2535 = vsub.f32 1.0, %v2524
    %v2536 = vmul.f32 %v2535, %v2534
    %v2537 = vmul.f32 %v2524, %v2265
    %v2538 = vadd.f32 %v2536, %v2537
    %v2539 = vpack.c.bf16 %v2538, %v2538
    %2540 = vst [vmem:[#allocation3] sm:$0xf] %v2539
    %v2541 = vld [vmem:[%s1141] sm:$0xff]
    %v2542 = vld [vmem:[%s1141 + $0x8] sm:$0xff]
    %v2543 = vld [vmem:[%s1141 + $0x10] sm:$0xff]
    %v2544 = vld [vmem:[#allocation13] sm:$0xff]
    %v2545 = vld [vmem:[#allocation13 + $0x8] sm:$0xf]
    %v2546 = vld [vmem:[#allocation13 + $0xc] sm:$0xff]
    %v2547 = vld [vmem:[#allocation13 + $0x14] sm:$0xf]
    %v2548 = vld [vmem:[#allocation13 + $0x18] sm:$0xff]
    %v2549 = vld [vmem:[#allocation13 + $0x20] sm:$0xf]
    %v2550 = vld [vmem:[#allocation13 + $0x24] sm:$0xff]
    %v2551 = vld [vmem:[#allocation13 + $0x2c] sm:$0xf]
    %v2552 = vld [vmem:[#allocation13 + $0x30] sm:$0xff]
    %v2553 = vld [vmem:[#allocation13 + $0x38] sm:$0xf]
    %v2554 = vld [vmem:[#allocation13 + $0x3c] sm:$0xff]
    %v2555 = vld [vmem:[#allocation13 + $0x44] sm:$0xf]
    %v2556 = vld [vmem:[#allocation13 + $0x48] sm:$0xff]
    %v2557 = vld [vmem:[#allocation13 + $0x50] sm:$0xf]
    %v2558 = vld [vmem:[#allocation13 + $0x54] sm:$0xff]
    %v2559 = vld [vmem:[#allocation13 + $0x5c] sm:$0xf]
    %v2560 = vld [vmem:[#allocation13 + $0x60] sm:$0xff]
    %v2561 = vld [vmem:[#allocation13 + $0x68] sm:$0xf]
    %v2562 = vld [vmem:[#allocation13 + $0x6c] sm:$0xff]
    %v2563 = vld [vmem:[#allocation13 + $0x74] sm:$0xf]
    %v2564 = vld [vmem:[#allocation13 + $0x78] sm:$0xff]
    %v2565 = vld [vmem:[#allocation13 + $0x80] sm:$0xf]
    %v2566 = vld [vmem:[#allocation13 + $0x84] sm:$0xff]
    %v2567 = vld [vmem:[#allocation13 + $0x8c] sm:$0xf]
    %v2568 = vld [vmem:[#allocation13 + $0x90] sm:$0xff]
    %v2569 = vld [vmem:[#allocation13 + $0x98] sm:$0xf]
    %v2570 = vld [vmem:[#allocation13 + $0x9c] sm:$0xff]
    %v2571 = vld [vmem:[#allocation13 + $0xa4] sm:$0xf]
    %v2572 = vld [vmem:[#allocation13 + $0xa8] sm:$0xff]
    %v2573 = vld [vmem:[#allocation13 + $0xb0] sm:$0xf]
    %v2574 = vld [vmem:[#allocation13 + $0xb4] sm:$0xff]
    %v2575 = vld [vmem:[#allocation13 + $0xbc] sm:$0xf]
    %v2608 = vunpack.c.l.b16 %v2544
    %v2609 = vunpack.c.h.b16 %v2544
    %v2610 = vunpack.c.l.b16 %v2545
    %v2611 = vunpack.c.l.b16 %v2546
    %v2612 = vunpack.c.h.b16 %v2546
    %v2613 = vunpack.c.l.b16 %v2547
    %v2614 = vunpack.c.l.b16 %v2548
    %v2615 = vunpack.c.h.b16 %v2548
    %v2616 = vunpack.c.l.b16 %v2549
    %v2617 = vunpack.c.l.b16 %v2550
    %v2618 = vunpack.c.h.b16 %v2550
    %v2619 = vunpack.c.l.b16 %v2551
    %v2620 = vunpack.c.l.b16 %v2552
    %v2621 = vunpack.c.h.b16 %v2552
    %v2622 = vunpack.c.l.b16 %v2553
    %v2623 = vunpack.c.l.b16 %v2554
    %v2624 = vunpack.c.h.b16 %v2554
    %v2625 = vunpack.c.l.b16 %v2555
    %v2626 = vunpack.c.l.b16 %v2556
    %v2627 = vunpack.c.h.b16 %v2556
    %v2628 = vunpack.c.l.b16 %v2557
    %v2629 = vunpack.c.l.b16 %v2558
    %v2630 = vunpack.c.h.b16 %v2558
    %v2631 = vunpack.c.l.b16 %v2559
    %v2632 = vunpack.c.l.b16 %v2560
    %v2633 = vunpack.c.h.b16 %v2560
    %v2634 = vunpack.c.l.b16 %v2561
    %v2635 = vunpack.c.l.b16 %v2562
    %v2636 = vunpack.c.h.b16 %v2562
    %v2637 = vunpack.c.l.b16 %v2563
    %v2638 = vunpack.c.l.b16 %v2564
    %v2639 = vunpack.c.h.b16 %v2564
    %v2640 = vunpack.c.l.b16 %v2565
    %v2641 = vunpack.c.l.b16 %v2566
    %v2642 = vunpack.c.h.b16 %v2566
    %v2643 = vunpack.c.l.b16 %v2567
    %v2644 = vunpack.c.l.b16 %v2568
    %v2645 = vunpack.c.h.b16 %v2568
    %v2646 = vunpack.c.l.b16 %v2569
    %v2647 = vunpack.c.l.b16 %v2570
    %v2648 = vunpack.c.h.b16 %v2570
    %v2649 = vunpack.c.l.b16 %v2571
    %v2650 = vunpack.c.l.b16 %v2572
    %v2651 = vunpack.c.h.b16 %v2572
    %v2652 = vunpack.c.l.b16 %v2573
    %v2653 = vunpack.c.l.b16 %v2574
    %v2654 = vunpack.c.h.b16 %v2574
    %v2655 = vunpack.c.l.b16 %v2575
    %v2656 = vpack.c.b16 %v2611, %v2608
    %v2657 = vpack.c.b16 %v2612, %v2609
    %v2658 = vpack.c.b16 %v2613, %v2610
    %v2659 = vpack.c.b16 %v2617, %v2614
    %v2660 = vpack.c.b16 %v2618, %v2615
    %v2661 = vpack.c.b16 %v2619, %v2616
    %v2662 = vpack.c.b16 %v2623, %v2620
    %v2663 = vpack.c.b16 %v2624, %v2621
    %v2664 = vpack.c.b16 %v2625, %v2622
    %v2665 = vpack.c.b16 %v2629, %v2626
    %v2666 = vpack.c.b16 %v2630, %v2627
    %v2667 = vpack.c.b16 %v2631, %v2628
    %v2668 = vpack.c.b16 %v2635, %v2632
    %v2669 = vpack.c.b16 %v2636, %v2633
    %v2670 = vpack.c.b16 %v2637, %v2634
    %v2671 = vpack.c.b16 %v2641, %v2638
    %v2672 = vpack.c.b16 %v2642, %v2639
    %v2673 = vpack.c.b16 %v2643, %v2640
    %v2674 = vpack.c.b16 %v2647, %v2644
    %v2675 = vpack.c.b16 %v2648, %v2645
    %v2676 = vpack.c.b16 %v2649, %v2646
    %v2677 = vpack.c.b16 %v2653, %v2650
    %v2678 = vpack.c.b16 %v2654, %v2651
    %v2679 = vpack.c.b16 %v2655, %v2652
    %2704 = vmatprep.subr.bf16.mxu0 %v2678
    %2705 = vmatpush1.bf16.msra.mxu0 %v2677
    %2706 = vmatprep.subr.bf16.mxu0 %v2675
    %2707 = vmatpush1.bf16.msra.mxu0 %v2674
    %2708 = vmatprep.subr.bf16.mxu0 %v2672
    %2709 = vmatpush1.bf16.msra.mxu0 %v2671
    %2710 = vmatprep.subr.bf16.mxu0 %v2669
    %2711 = vmatpush1.bf16.msra.mxu0 %v2668
    %2712 = vmatprep.subr.bf16.mxu0 %v2666
    %2713 = vmatpush1.bf16.msra.mxu0 %v2665
    %2714 = vmatprep.subr.bf16.mxu0 %v2663
    %2715 = vmatpush1.bf16.msra.mxu0 %v2662
    %2716 = vmatprep.subr.bf16.mxu0 %v2660
    %2717 = vmatpush1.bf16.msra.mxu0 %v2659
    %2718 = vmatprep.subr.bf16.mxu0 %v2657
    %2719 = vmatpush1.bf16.msra.mxu0 %v2656
    %2720 = vmatprep.subr.bf16.mxu0 0
    %2721 = vmatpush2.bf16.msra.mxu0 0
    %2722 = vmatprep.subr.bf16.mxu0 0
    %2723 = vmatpush2.bf16.msra.mxu0 0
    %2724 = vmatprep.subr.bf16.mxu0 0
    %2725 = vmatpush2.bf16.msra.mxu0 0
    %2726 = vmatprep.subr.bf16.mxu0 0
    %2727 = vmatpush2.bf16.msra.mxu0 0
    %2728 = vmatprep.subr.bf16.mxu0 0
    %2729 = vmatpush2.bf16.msra.mxu0 0
    %2730 = vmatprep.subr.bf16.mxu0 0
    %2731 = vmatpush2.bf16.msra.mxu0 0
    %2732 = vmatprep.subr.bf16.mxu0 0
    %2733 = vmatpush2.bf16.msra.mxu0 0
    %2734 = vmatprep.subr.bf16.mxu0 0
    %2735 = vmatpush2.bf16.msra.mxu0 0
    %2736 = vmatprep.mubr.bf16.mxu0 0
    %2737 = vmatmul.mubr.bf16.gmra.mxu0 %v2539
    %v2738 = vpop.f32.mrf.mxu0
    %v2739 = vadd.f32 0.0, %v2738
    %v2740 = vpop.f32.mrf.mxu0
    %v2741 = vadd.f32 0.0, %v2740
    %v2742 = vpop.f32.mrf.mxu0
    %v2743 = vpop.f32.mrf.mxu0
    %2744 = vdwg.mxu0
    %2745 = vmatprep.subr.bf16.mxu0 0
    %2746 = vmatpush1.bf16.msra.mxu0 %v2679
    %2747 = vmatprep.subr.bf16.mxu0 0
    %2748 = vmatpush1.bf16.msra.mxu0 %v2676
    %2749 = vmatprep.subr.bf16.mxu0 0
    %2750 = vmatpush1.bf16.msra.mxu0 %v2673
    %2751 = vmatprep.subr.bf16.mxu0 0
    %2752 = vmatpush1.bf16.msra.mxu0 %v2670
    %2753 = vmatprep.subr.bf16.mxu0 0
    %2754 = vmatpush1.bf16.msra.mxu0 %v2667
    %2755 = vmatprep.subr.bf16.mxu0 0
    %2756 = vmatpush1.bf16.msra.mxu0 %v2664
    %2757 = vmatprep.subr.bf16.mxu0 0
    %2758 = vmatpush1.bf16.msra.mxu0 %v2661
    %2759 = vmatprep.subr.bf16.mxu0 0
    %2760 = vmatpush1.bf16.msra.mxu0 %v2658
    %2761 = vmatprep.subr.bf16.mxu0 0
    %2762 = vmatpush2.bf16.msra.mxu0 0
    %2763 = vmatprep.subr.bf16.mxu0 0
    %2764 = vmatpush2.bf16.msra.mxu0 0
    %2765 = vmatprep.subr.bf16.mxu0 0
    %2766 = vmatpush2.bf16.msra.mxu0 0
    %2767 = vmatprep.subr.bf16.mxu0 0
    %2768 = vmatpush2.bf16.msra.mxu0 0
    %2769 = vmatprep.subr.bf16.mxu0 0
    %2770 = vmatpush2.bf16.msra.mxu0 0
    %2771 = vmatprep.subr.bf16.mxu0 0
    %2772 = vmatpush2.bf16.msra.mxu0 0
    %2773 = vmatprep.subr.bf16.mxu0 0
    %2774 = vmatpush2.bf16.msra.mxu0 0
    %2775 = vmatprep.subr.bf16.mxu0 0
    %2776 = vmatpush2.bf16.msra.mxu0 0
    %2777 = vmatprep.mubr.bf16.mxu0 0
    %2778 = vmatmul.mubr.bf16.gmra.mxu0 %v2539
    %v2779 = vpop.f32.mrf.mxu0
    %v2780 = vadd.f32 0.0, %v2779
    %v2781 = vpop.f32.mrf.mxu0
    %v2782 = vpop.f32.mrf.mxu0
    %v2783 = vpop.f32.mrf.mxu0
    %2784 = vdwg.mxu0
    %v2785 = vadd.f32 %v2541, %v2739
    %v2786 = vadd.f32 %v2542, %v2741
    %v2787 = vxor.u32 %v2785, 2147483648
    %v2788 = vxor.u32 %v2786, 2147483648
    %v2789 = vmul.f32 %v2787, 1.442695
    %v2790 = vpow.pop %v2789
    %v2791 = vmul.f32 %v2788, 1.442695
    %v2792 = vpow.pop %v2791
    %v2793 = vadd.f32 %v2790, 1.0
    %v2794 = vadd.f32 %v2792, 1.0
    %v2795 = vrcp.pop %v2793
    %v2796 = vmul.f32 1.0, %v2795
    %v2797 = vrcp.pop %v2794
    %v2798 = vmul.f32 1.0, %v2797
    %v2799 = vadd.f32 %v2780, %v2529
    %v2800 = vmul.f32 %v2796, %v2799
    %v2801 = vadd.f32 %v2543, %v2800
    %v2802 = vtanh.pop %v2801
    %v2803 = vsub.f32 1.0, %v2798
    %v2804 = vmul.f32 %v2803, %v2802
    %v2805 = vmul.f32 %v2798, %v2538
    %v2806 = vadd.f32 %v2804, %v2805
    %v2807 = vld [vmem:[%s1413] sm:$0xff]
    %v2808 = vld [vmem:[%s1413 + $0x8] sm:$0xff]
    %v2809 = vld [vmem:[%s1413 + $0x10] sm:$0xff]
    %v2810 = vpack.c.bf16 %v2806, %v2806
    %2811 = vmatprep.subr.bf16.mxu0 %v2678
    %2812 = vmatpush1.bf16.msra.mxu0 %v2677
    %2813 = vmatprep.subr.bf16.mxu0 %v2675
    %2814 = vmatpush1.bf16.msra.mxu0 %v2674
    %2815 = vmatprep.subr.bf16.mxu0 %v2672
    %2816 = vmatpush1.bf16.msra.mxu0 %v2671
    %2817 = vmatprep.subr.bf16.mxu0 %v2669
    %2818 = vmatpush1.bf16.msra.mxu0 %v2668
    %2819 = vmatprep.subr.bf16.mxu0 %v2666
    %2820 = vmatpush1.bf16.msra.mxu0 %v2665
    %2821 = vmatprep.subr.bf16.mxu0 %v2663
    %2822 = vmatpush1.bf16.msra.mxu0 %v2662
    %2823 = vmatprep.subr.bf16.mxu0 %v2660
    %2824 = vmatpush1.bf16.msra.mxu0 %v2659
    %2825 = vmatprep.subr.bf16.mxu0 %v2657
    %2826 = vmatpush1.bf16.msra.mxu0 %v2656
    %2827 = vmatprep.subr.bf16.mxu0 0
    %2828 = vmatpush2.bf16.msra.mxu0 0
    %2829 = vmatprep.subr.bf16.mxu0 0
    %2830 = vmatpush2.bf16.msra.mxu0 0
    %2831 = vmatprep.subr.bf16.mxu0 0
    %2832 = vmatpush2.bf16.msra.mxu0 0
    %2833 = vmatprep.subr.bf16.mxu0 0
    %2834 = vmatpush2.bf16.msra.mxu0 0
    %2835 = vmatprep.subr.bf16.mxu0 0
    %2836 = vmatpush2.bf16.msra.mxu0 0
    %2837 = vmatprep.subr.bf16.mxu0 0
    %2838 = vmatpush2.bf16.msra.mxu0 0
    %2839 = vmatprep.subr.bf16.mxu0 0
    %2840 = vmatpush2.bf16.msra.mxu0 0
    %2841 = vmatprep.subr.bf16.mxu0 0
    %2842 = vmatpush2.bf16.msra.mxu0 0
    %2843 = vmatprep.mubr.bf16.mxu0 0
    %2844 = vmatmul.mubr.bf16.gmra.mxu0 %v2810
    %v2845 = vpop.f32.mrf.mxu0
    %v2846 = vadd.f32 0.0, %v2845
    %v2847 = vpop.f32.mrf.mxu0
    %v2848 = vadd.f32 0.0, %v2847
    %v2849 = vpop.f32.mrf.mxu0
    %v2850 = vpop.f32.mrf.mxu0
    %2851 = vdwg.mxu0
    %2852 = vmatprep.subr.bf16.mxu0 0
    %2853 = vmatpush1.bf16.msra.mxu0 %v2679
    %2854 = vmatprep.subr.bf16.mxu0 0
    %2855 = vmatpush1.bf16.msra.mxu0 %v2676
    %2856 = vmatprep.subr.bf16.mxu0 0
    %2857 = vmatpush1.bf16.msra.mxu0 %v2673
    %2858 = vmatprep.subr.bf16.mxu0 0
    %2859 = vmatpush1.bf16.msra.mxu0 %v2670
    %2860 = vmatprep.subr.bf16.mxu0 0
    %2861 = vmatpush1.bf16.msra.mxu0 %v2667
    %2862 = vmatprep.subr.bf16.mxu0 0
    %2863 = vmatpush1.bf16.msra.mxu0 %v2664
    %2864 = vmatprep.subr.bf16.mxu0 0
    %2865 = vmatpush1.bf16.msra.mxu0 %v2661
    %2866 = vmatprep.subr.bf16.mxu0 0
    %2867 = vmatpush1.bf16.msra.mxu0 %v2658
    %2868 = vmatprep.subr.bf16.mxu0 0
    %2869 = vmatpush2.bf16.msra.mxu0 0
    %2870 = vmatprep.subr.bf16.mxu0 0
    %2871 = vmatpush2.bf16.msra.mxu0 0
    %2872 = vmatprep.subr.bf16.mxu0 0
    %2873 = vmatpush2.bf16.msra.mxu0 0
    %2874 = vmatprep.subr.bf16.mxu0 0
    %2875 = vmatpush2.bf16.msra.mxu0 0
    %2876 = vmatprep.subr.bf16.mxu0 0
    %2877 = vmatpush2.bf16.msra.mxu0 0
    %2878 = vmatprep.subr.bf16.mxu0 0
    %2879 = vmatpush2.bf16.msra.mxu0 0
    %2880 = vmatprep.subr.bf16.mxu0 0
    %2881 = vmatpush2.bf16.msra.mxu0 0
    %2882 = vmatprep.subr.bf16.mxu0 0
    %2883 = vmatpush2.bf16.msra.mxu0 0
    %2884 = vmatprep.mubr.bf16.mxu0 0
    %2885 = vmatmul.mubr.bf16.gmra.mxu0 %v2810
    %v2886 = vpop.f32.mrf.mxu0
    %v2887 = vadd.f32 0.0, %v2886
    %v2888 = vpop.f32.mrf.mxu0
    %v2889 = vpop.f32.mrf.mxu0
    %v2890 = vpop.f32.mrf.mxu0
    %2891 = vdwg.mxu0
    %v2892 = vadd.f32 %v2807, %v2846
    %v2893 = vadd.f32 %v2808, %v2848
    %v2894 = vxor.u32 %v2892, 2147483648
    %v2895 = vxor.u32 %v2893, 2147483648
    %v2896 = vmul.f32 %v2894, 1.442695
    %v2897 = vpow.pop %v2896
    %v2898 = vmul.f32 %v2895, 1.442695
    %v2899 = vpow.pop %v2898
    %v2900 = vadd.f32 %v2897, 1.0
    %v2901 = vadd.f32 %v2899, 1.0
    %v2902 = vrcp.pop %v2900
    %v2903 = vmul.f32 1.0, %v2902
    %v2904 = vrcp.pop %v2901
    %v2905 = vmul.f32 1.0, %v2904
    %v2906 = vadd.f32 %v2887, %v2529
    %v2907 = vmul.f32 %v2903, %v2906
    %v2908 = vadd.f32 %v2809, %v2907
    %v2909 = vtanh.pop %v2908
    %v2910 = vsub.f32 1.0, %v2905
    %v2911 = vmul.f32 %v2910, %v2909
    %v2912 = vmul.f32 %v2905, %v2806
    %v2913 = vadd.f32 %v2911, %v2912
    %v2914 = vld [vmem:[%s1685] sm:$0xff]
    %v2915 = vld [vmem:[%s1685 + $0x8] sm:$0xff]
    %v2916 = vld [vmem:[%s1685 + $0x10] sm:$0xff]
    %v2917 = vpack.c.bf16 %v2913, %v2913
    %2918 = vmatprep.subr.bf16.mxu0 %v2678
    %2919 = vmatpush1.bf16.msra.mxu0 %v2677
    %2920 = vmatprep.subr.bf16.mxu0 %v2675
    %2921 = vmatpush1.bf16.msra.mxu0 %v2674
    %2922 = vmatprep.subr.bf16.mxu0 %v2672
    %2923 = vmatpush1.bf16.msra.mxu0 %v2671
    %2924 = vmatprep.subr.bf16.mxu0 %v2669
    %2925 = vmatpush1.bf16.msra.mxu0 %v2668
    %2926 = vmatprep.subr.bf16.mxu0 %v2666
    %2927 = vmatpush1.bf16.msra.mxu0 %v2665
    %2928 = vmatprep.subr.bf16.mxu0 %v2663
    %2929 = vmatpush1.bf16.msra.mxu0 %v2662
    %2930 = vmatprep.subr.bf16.mxu0 %v2660
    %2931 = vmatpush1.bf16.msra.mxu0 %v2659
    %2932 = vmatprep.subr.bf16.mxu0 %v2657
    %2933 = vmatpush1.bf16.msra.mxu0 %v2656
    %2934 = vmatprep.subr.bf16.mxu0 0
    %2935 = vmatpush2.bf16.msra.mxu0 0
    %2936 = vmatprep.subr.bf16.mxu0 0
    %2937 = vmatpush2.bf16.msra.mxu0 0
    %2938 = vmatprep.subr.bf16.mxu0 0
    %2939 = vmatpush2.bf16.msra.mxu0 0
    %2940 = vmatprep.subr.bf16.mxu0 0
    %2941 = vmatpush2.bf16.msra.mxu0 0
    %2942 = vmatprep.subr.bf16.mxu0 0
    %2943 = vmatpush2.bf16.msra.mxu0 0
    %2944 = vmatprep.subr.bf16.mxu0 0
    %2945 = vmatpush2.bf16.msra.mxu0 0
    %2946 = vmatprep.subr.bf16.mxu0 0
    %2947 = vmatpush2.bf16.msra.mxu0 0
    %2948 = vmatprep.subr.bf16.mxu0 0
    %2949 = vmatpush2.bf16.msra.mxu0 0
    %2950 = vmatprep.mubr.bf16.mxu0 0
    %2951 = vmatmul.mubr.bf16.gmra.mxu0 %v2917
    %v2952 = vpop.f32.mrf.mxu0
    %v2953 = vadd.f32 0.0, %v2952
    %v2954 = vpop.f32.mrf.mxu0
    %v2955 = vadd.f32 0.0, %v2954
    %v2956 = vpop.f32.mrf.mxu0
    %v2957 = vpop.f32.mrf.mxu0
    %2958 = vdwg.mxu0
    %2959 = vmatprep.subr.bf16.mxu0 0
    %2960 = vmatpush1.bf16.msra.mxu0 %v2679
    %2961 = vmatprep.subr.bf16.mxu0 0
    %2962 = vmatpush1.bf16.msra.mxu0 %v2676
    %2963 = vmatprep.subr.bf16.mxu0 0
    %2964 = vmatpush1.bf16.msra.mxu0 %v2673
    %2965 = vmatprep.subr.bf16.mxu0 0
    %2966 = vmatpush1.bf16.msra.mxu0 %v2670
    %2967 = vmatprep.subr.bf16.mxu0 0
    %2968 = vmatpush1.bf16.msra.mxu0 %v2667
    %2969 = vmatprep.subr.bf16.mxu0 0
    %2970 = vmatpush1.bf16.msra.mxu0 %v2664
    %2971 = vmatprep.subr.bf16.mxu0 0
    %2972 = vmatpush1.bf16.msra.mxu0 %v2661
    %2973 = vmatprep.subr.bf16.mxu0 0
    %2974 = vmatpush1.bf16.msra.mxu0 %v2658
    %2975 = vmatprep.subr.bf16.mxu0 0
    %2976 = vmatpush2.bf16.msra.mxu0 0
    %2977 = vmatprep.subr.bf16.mxu0 0
    %2978 = vmatpush2.bf16.msra.mxu0 0
    %2979 = vmatprep.subr.bf16.mxu0 0
    %2980 = vmatpush2.bf16.msra.mxu0 0
    %2981 = vmatprep.subr.bf16.mxu0 0
    %2982 = vmatpush2.bf16.msra.mxu0 0
    %2983 = vmatprep.subr.bf16.mxu0 0
    %2984 = vmatpush2.bf16.msra.mxu0 0
    %2985 = vmatprep.subr.bf16.mxu0 0
    %2986 = vmatpush2.bf16.msra.mxu0 0
    %2987 = vmatprep.subr.bf16.mxu0 0
    %2988 = vmatpush2.bf16.msra.mxu0 0
    %2989 = vmatprep.subr.bf16.mxu0 0
    %2990 = vmatpush2.bf16.msra.mxu0 0
    %2991 = vmatprep.mubr.bf16.mxu0 0
    %2992 = vmatmul.mubr.bf16.gmra.mxu0 %v2917
    %v2993 = vpop.f32.mrf.mxu0
    %v2994 = vadd.f32 0.0, %v2993
    %v2995 = vpop.f32.mrf.mxu0
    %v2996 = vpop.f32.mrf.mxu0
    %v2997 = vpop.f32.mrf.mxu0
    %2998 = vdwg.mxu0
    %v2999 = vadd.f32 %v2914, %v2953
    %v3000 = vadd.f32 %v2915, %v2955
    %v3001 = vxor.u32 %v2999, 2147483648
    %v3002 = vxor.u32 %v3000, 2147483648
    %v3003 = vmul.f32 %v3001, 1.442695
    %v3004 = vpow.pop %v3003
    %v3005 = vmul.f32 %v3002, 1.442695
    %v3006 = vpow.pop %v3005
    %v3007 = vadd.f32 %v3004, 1.0
    %v3008 = vadd.f32 %v3006, 1.0
    %v3009 = vrcp.pop %v3007
    %v3010 = vmul.f32 1.0, %v3009
    %v3011 = vrcp.pop %v3008
    %v3012 = vmul.f32 1.0, %v3011
    %v3013 = vadd.f32 %v2994, %v2529
    %v3014 = vmul.f32 %v3010, %v3013
    %v3015 = vadd.f32 %v2916, %v3014
    %v3016 = vtanh.pop %v3015
    %v3017 = vsub.f32 1.0, %v3012
    %v3018 = vmul.f32 %v3017, %v3016
    %v3019 = vmul.f32 %v3012, %v2913
    %v3020 = vadd.f32 %v3018, %v3019
    %s3021 = scalar_lea.vmem %s16, 8
    %3022 = vst [vmem:[%s3021] sm:$0xff] %v3020
    %v3023 = vld [vmem:[#allocation3] sm:$0xf]
    %v3024 = vld [vmem:[#allocation4] sm:$0xf]
    %v3025 = vld [vmem:[#allocation4 + $0x4] sm:$0xf]
    %v3026 = vld [vmem:[#allocation4 + $0x8] sm:$0xf]
    %v3027 = vld [vmem:[#allocation4 + $0xc] sm:$0xf]
    %v3028 = vld [vmem:[#allocation4 + $0x10] sm:$0xf]
    %v3029 = vld [vmem:[#allocation4 + $0x14] sm:$0xf]
    %v3030 = vld [vmem:[#allocation4 + $0x18] sm:$0xf]
    %v3031 = vld [vmem:[#allocation4 + $0x1c] sm:$0xf]
    %v3032 = vld [vmem:[#allocation4 + $0x20] sm:$0xf]
    %v3033 = vld [vmem:[#allocation4 + $0x24] sm:$0xf]
    %v3034 = vld [vmem:[#allocation4 + $0x28] sm:$0xf]
    %v3035 = vld [vmem:[#allocation4 + $0x2c] sm:$0xf]
    %v3036 = vld [vmem:[#allocation4 + $0x30] sm:$0xf]
    %v3037 = vld [vmem:[#allocation4 + $0x34] sm:$0xf]
    %v3038 = vld [vmem:[#allocation4 + $0x38] sm:$0xf]
    %v3039 = vld [vmem:[#allocation4 + $0x3c] sm:$0xf]
    %v3040 = vld [vmem:[%s6] sm:$0x1]
    %v3042 = vlaneseq
    %v3043 = vshrl.u32 %v3042, 7
    %v3044 = vsub.s32 0, %v3043
    %v3045 = vrot.slane %v3040, %v3044
    %v3063 = vunpack.c.l.b16 %v3024
    %v3064 = vunpack.c.l.b16 %v3025
    %v3065 = vunpack.c.l.b16 %v3026
    %v3066 = vunpack.c.l.b16 %v3027
    %v3067 = vunpack.c.l.b16 %v3028
    %v3068 = vunpack.c.l.b16 %v3029
    %v3069 = vunpack.c.l.b16 %v3030
    %v3070 = vunpack.c.l.b16 %v3031
    %v3071 = vunpack.c.l.b16 %v3032
    %v3072 = vunpack.c.l.b16 %v3033
    %v3073 = vunpack.c.l.b16 %v3034
    %v3074 = vunpack.c.l.b16 %v3035
    %v3075 = vunpack.c.l.b16 %v3036
    %v3076 = vunpack.c.l.b16 %v3037
    %v3077 = vunpack.c.l.b16 %v3038
    %v3078 = vunpack.c.l.b16 %v3039
    %v3079 = vpack.c.b16 %v3064, %v3063
    %v3080 = vpack.c.b16 %v3066, %v3065
    %v3081 = vpack.c.b16 %v3068, %v3067
    %v3082 = vpack.c.b16 %v3070, %v3069
    %v3083 = vpack.c.b16 %v3072, %v3071
    %v3084 = vpack.c.b16 %v3074, %v3073
    %v3085 = vpack.c.b16 %v3076, %v3075
    %v3086 = vpack.c.b16 %v3078, %v3077
    %3095 = vmatprep.subr.bf16.mxu0 0
    %3096 = vmatpush1.bf16.msra.mxu0 %v3086
    %3097 = vmatprep.subr.bf16.mxu0 0
    %3098 = vmatpush1.bf16.msra.mxu0 %v3085
    %3099 = vmatprep.subr.bf16.mxu0 0
    %3100 = vmatpush1.bf16.msra.mxu0 %v3084
    %3101 = vmatprep.subr.bf16.mxu0 0
    %3102 = vmatpush1.bf16.msra.mxu0 %v3083
    %3103 = vmatprep.subr.bf16.mxu0 0
    %3104 = vmatpush1.bf16.msra.mxu0 %v3082
    %3105 = vmatprep.subr.bf16.mxu0 0
    %3106 = vmatpush1.bf16.msra.mxu0 %v3081
    %3107 = vmatprep.subr.bf16.mxu0 0
    %3108 = vmatpush1.bf16.msra.mxu0 %v3080
    %3109 = vmatprep.subr.bf16.mxu0 0
    %3110 = vmatpush1.bf16.msra.mxu0 %v3079
    %3111 = vmatprep.subr.bf16.mxu0 0
    %3112 = vmatpush2.bf16.msra.mxu0 0
    %3113 = vmatprep.subr.bf16.mxu0 0
    %3114 = vmatpush2.bf16.msra.mxu0 0
    %3115 = vmatprep.subr.bf16.mxu0 0
    %3116 = vmatpush2.bf16.msra.mxu0 0
    %3117 = vmatprep.subr.bf16.mxu0 0
    %3118 = vmatpush2.bf16.msra.mxu0 0
    %3119 = vmatprep.subr.bf16.mxu0 0
    %3120 = vmatpush2.bf16.msra.mxu0 0
    %3121 = vmatprep.subr.bf16.mxu0 0
    %3122 = vmatpush2.bf16.msra.mxu0 0
    %3123 = vmatprep.subr.bf16.mxu0 0
    %3124 = vmatpush2.bf16.msra.mxu0 0
    %3125 = vmatprep.subr.bf16.mxu0 0
    %3126 = vmatpush2.bf16.msra.mxu0 0
    %3127 = vmatprep.mubr.bf16.mxu0 0
    %3128 = vmatmul.mubr.bf16.gmra.mxu0 %v3023
    %v3129 = vpop.f32.mrf.mxu0
    %v3130 = vadd.f32 %v3045, %v3129
    %v3131 = vpop.f32.mrf.mxu0
    %v3132 = vpop.f32.mrf.mxu0
    %v3133 = vpop.f32.mrf.mxu0
    %3134 = vdwg.mxu0
    %3135 = vmax.xlane.f32.xlu0 %v3130
    %v3136 = vpop.xlane.xlu0 %3135
    %v3137 = vsub.f32 %v3130, %v3136
    %v3138 = vmul.f32 %v3137, 1.442695
    %v3139 = vpow.pop %v3138
    %3140 = vadd.xlane.f32.xlu0 %v3139
    %v3141 = vpop.xlane.xlu0 %3140
    %v3142 = vlog2.pop %v3141
    %v3143 = vmul.f32 %v3142, 0.6931472
    %v3144 = vsub.f32 %v3137, %v3143
    %3145 = vst [vmem:[#allocation18] sm:$0xff] %v3144
    // Predicated region
    $region94: #{decoder_forward.1} parent=1 // pred_check
      _
    $region95: #{decoder_forward.1} parent=1 // pred_check_branch
      %3147 = sbr.rel (0) target = $region97
    $region96: #{decoder_forward.1} parent=1 // pred_region
      %s3149 = ssub.s32 128, 128
      %3150 = vsyncadd [#allocation6], %s3149
      %s3152 = sshll.u32 [#allocation18], 4
      %s3153 = int_to_ptr.vmem [resolvable:$true] %s3152
      %3155 = dma.vmem_to_hbm [thread:$0]  %s3153, 128, %s15, [#allocation6]
    $region97: #{decoder_forward.1} parent=1 // pred_fallthru
      _
    // Predicated region
    $region98: #{decoder_forward.1} parent=1 // pred_check
      _
    $region99: #{decoder_forward.1} parent=1 // pred_check_branch
      %3157 = sbr.rel (0) target = $region101
    $region100: #{decoder_forward.1} parent=1 // pred_region
      _
    $region101: #{decoder_forward.1} parent=1 // pred_fallthru
      _
    // Predicated region
    $region102: #{decoder_forward.1} parent=1 // pred_check
      _
    $region103: #{decoder_forward.1} parent=1 // pred_check_branch
      %3159 = sbr.rel (0) target = $region105
    $region104: #{decoder_forward.1} parent=1 // pred_region
      %3160 = dma.done [#allocation6], 128
    $region105: #{decoder_forward.1} parent=1 // pred_fallthru
      _
    // Predicated region
    $region106: #{decoder_forward.1} parent=1 // pred_check
      _
    $region107: #{decoder_forward.1} parent=1 // pred_check_branch
      %3162 = sbr.rel (0) target = $region109
    $region108: #{decoder_forward.1} parent=1 // pred_region
      _
    $region109: #{decoder_forward.1} parent=1 // pred_fallthru
      _
    %3163 = vsyncpa [#allocation5], 1
    %3164 = vsyncpa [#allocation8], 1
    %3165 = vsyncpa [#allocation11], 1
    %3166 = vsyncpa [#allocation14], 1
    %3167 = vsyncpa [#allocation17], 1
    %3168 = vsyncpa [#allocation6], 1

</llo_original>
